<compile_context>
chip_gen: v6e
topology: v6e:2x2x1
jax: 0.10.0
libtpu: 0.0.40
codegen_flags: <defaults>
</compile_context>

<pallas_src>
import functools

import jax
import jax.numpy as jnp
import numpy as np
from jax import lax
from jax.experimental import pallas as pl
from jax.experimental.pallas import tpu as pltpu

BN_EPS = 1e-5
C1 = 64            # conv1 real out-channels
C1P = 128          # conv1 out-channels padded to a full lane group
C2 = 128           # conv2 out-channels
KH1, KW1 = 3, 18   # conv1 kernel
KH2 = 5            # conv2 kernel is (5, 1)
WPAD = 16          # width padding granularity (bf16 sublane pack)


# ----------------------------- fused Pallas kernel --------------------------

def _make_fused_kernel(B, H1, W1, W1P, H2, HP, cdtype):
    M1 = B * H1 * W1      # real conv1 positions  (BN1 divisor)
    M2 = B * H2 * W1      # real conv2 positions  (BN2 divisor); W2 == W1
    M1P = B * H1 * W1P    # width-padded conv1 rows
    RB = H2 * W1P         # width-padded conv2 rows per batch sample

    def kernel(p1_ref, w1_ref, g1_ref, be1_ref, w2_ref, g2_ref, be2_ref,
               o_ref, y1_s):
        # ---- conv1 (im2col matmul, N padded 64->128) + batch BN1 + ReLU ----
        acc1 = jnp.dot(p1_ref[...], w1_ref[...],
                       preferred_element_type=jnp.float32)          # (M1P, 128)
        mean1 = jnp.sum(acc1, axis=0, keepdims=True) * (1.0 / M1)
        ex2_1 = jnp.sum(acc1 * acc1, axis=0, keepdims=True) * (1.0 / M1)
        var1 = jnp.maximum(ex2_1 - mean1 * mean1, 0.0)
        scale1 = lax.rsqrt(var1 + BN_EPS) * g1_ref[...]              # (1, 128)
        shift1 = be1_ref[...] - mean1 * scale1
        y1 = jnp.maximum(acc1 * scale1 + shift1, 0.0)
        # Zero the width-pad rows (w in [W1, W1P)) so they stay inert in conv2
        # and in BN2's sums (divisors stay at the true M1 / M2).
        ridx = lax.broadcasted_iota(jnp.int32, (M1P, C1P), 0)
        y1 = jnp.where((ridx % W1P) < W1, y1, 0.0)
        y1_s[...] = y1.astype(cdtype)

        # ---- conv2 (5,1): ONE tap-fused matmul, K = 5*64 = 320 (no K pad) ---
        # lhs[(b, h2, w), i*64 + c] = y1[b, h2 + i, w, c]
        per_batch = []
        for b in range(B):
            base = b * H1 * W1P
            taps = [y1_s[base + i * W1P: base + i * W1P + RB, 0:C1]
                    for i in range(KH2)]                              # (RB, 64)
            per_batch.append(jnp.concatenate(taps, axis=1))           # (RB, 320)
        lhs = jnp.concatenate(per_batch, axis=0)                      # (B*RB, 320)
        acc2 = jnp.dot(lhs, w2_ref[...],
                       preferred_element_type=jnp.float32)            # (B*RB, 128)

        # ---- batch BN2 + ReLU ----------------------------------------------
        mean2 = jnp.sum(acc2, axis=0, keepdims=True) * (1.0 / M2)
        ex2_2 = jnp.sum(acc2 * acc2, axis=0, keepdims=True) * (1.0 / M2)
        var2 = jnp.maximum(ex2_2 - mean2 * mean2, 0.0)
        scale2 = lax.rsqrt(var2 + BN_EPS) * g2_ref[...]
        shift2 = be2_ref[...] - mean2 * scale2
        y2 = jnp.maximum(acc2 * scale2 + shift2, 0.0)                 # (B*RB, 128)

        # ---- vertical half of the 2x2 max-pool ------------------------------
        # rows are (b, h2, w)-ordered with W1P (16-aligned) rows per h2, so
        # pairing h2 = 2hp / 2hp+1 is one aligned reshape + one wide max and a
        # single lane-dense, sublane-aligned store.
        y2p = y2.reshape(B * HP, 2 * W1P, C2)
        vmax = jnp.maximum(y2p[:, :W1P, :], y2p[:, W1P:, :])          # (B*HP, W1P, 128)
        o_ref[...] = vmax.reshape(B * HP * W1P, C2)

    return kernel


# --------------------------------- wrappers ---------------------------------

def prepare_params(params, compute_dtype=jnp.bfloat16):
    """One-time weight / BN-parameter packing (hoisted out of the jitted fwd)."""
    (w1, b1, g1, be1, w2, b2, g2, be2) = params
    del b1, b2   # conv bias + train-mode BN mean subtraction cancel exactly
    w1m = jnp.pad(w1.reshape(C1, -1).T,
                  ((0, 0), (0, C1P - C1))).astype(compute_dtype)      # (162, 128)
    g1p = jnp.concatenate([g1, jnp.ones((C1P - C1,), g1.dtype)]).reshape(1, C1P)
    be1p = jnp.concatenate([be1, jnp.zeros((C1P - C1,), be1.dtype)]).reshape(1, C1P)
    # torch (Cout, Cin, 5, 1) -> (5, Cin, Cout) -> (5*Cin, Cout); K unpadded.
    w2f = (jnp.transpose(w2[..., 0], (2, 1, 0))
           .reshape(KH2 * C1, C2).astype(compute_dtype))              # (320, 128)
    g2r = g2.reshape(1, C2)
    be2r = be2.reshape(1, C2)
    return (w1m, g1p, be1p, w2f, g2r, be2r)


def _im2col_width_padded(x_nhwc, kh, kw, w_out_padded):
    """Valid-conv patches, feature order (Cin, KH, KW); width zero-padded."""
    B, H, W, C = x_nhwc.shape
    Ho, Wo = H - kh + 1, W - kw + 1
    pats = jnp.stack([x_nhwc[:, i:i + Ho, j:j + Wo, :]
                      for i in range(kh) for j in range(kw)], axis=3)  # (B,Ho,Wo,kh*kw,C)
    pats = jnp.transpose(pats, (0, 1, 2, 4, 3)).reshape(B, Ho, Wo, C * kh * kw)
    pats = jnp.pad(pats, ((0, 0), (0, 0), (0, w_out_padded - Wo), (0, 0)))
    return pats.reshape(B * Ho * w_out_padded, C * kh * kw), (Ho, Wo)


@jax.jit
def model_forward(x_nchw, prepped):
    w1m, g1p, be1p, w2f, g2r, be2r = prepped
    cdtype = w1m.dtype                       # compute dtype for MXU operands

    B = x_nchw.shape[0]
    x = jnp.transpose(x_nchw, (0, 2, 3, 1))                  # NCHW -> NHWC
    H1 = x.shape[1] - KH1 + 1
    W1 = x.shape[2] - KW1 + 1
    W1P = ((W1 + WPAD - 1) // WPAD) * WPAD
    H2 = H1 - (KH2 - 1)
    HP, WP = H2 // 2, W1 // 2
    assert H2 % 2 == 0, "in-kernel pool assumes an even conv2 height"
    # TODO(synk): support odd H2 by dropping the last conv2 row before pooling.

    p1, _ = _im2col_width_padded(x, KH1, KW1, W1P)            # only XLA-side gather
    p1 = p1.astype(cdtype)
    K1 = p1.shape[1]
    K2 = KH2 * C1
    M1P = B * H1 * W1P
    MOUT = B * HP * W1P

    def full(shape):
        return pl.BlockSpec(shape, lambda i: (0,) * len(shape))

    flops = 2 * (M1P * K1 * C1P + B * H2 * W1P * K2 * C2)
    bytes_accessed = (p1.size * p1.dtype.itemsize
                      + w1m.size * w1m.dtype.itemsize
                      + w2f.size * w2f.dtype.itemsize
                      + 4 * (g1p.size + be1p.size + g2r.size + be2r.size)
                      + MOUT * C2 * 4)

    vpool = pl.pallas_call(
        _make_fused_kernel(B, H1, W1, W1P, H2, HP, cdtype),
        out_shape=jax.ShapeDtypeStruct((MOUT, C2), jnp.float32),
        grid=(1,),
        in_specs=[full((M1P, K1)), full((K1, C1P)),
                  full((1, C1P)), full((1, C1P)),
                  full((K2, C2)), full((1, C2)), full((1, C2))],
        out_specs=full((MOUT, C2)),
        scratch_shapes=[pltpu.VMEM((M1P, C1P), cdtype)],       # y1 (post BN1+ReLU)
        compiler_params=pltpu.CompilerParams(
            dimension_semantics=("arbitrary",)),
        cost_estimate=pl.CostEstimate(flops=int(flops),
                                      transcendentals=2 * C2,
                                      bytes_accessed=int(bytes_accessed)),
    )(p1, w1m, g1p, be1p, w2f, g2r, be2r)

    # Horizontal half of the 2x2 pool, pad-column drop and the NCHW flatten:
    # a few tiny XLA ops on the small (B*HP*16, 128) lane-dense kernel output.
    v = vpool.reshape(B, HP, W1P, C2)
    pooled = jnp.maximum(v[:, :, 0:2 * WP:2, :], v[:, :, 1:2 * WP:2, :])  # (B,HP,WP,C2)
    return jnp.transpose(pooled, (0, 3, 1, 2)).reshape(B, -1)


# --------------------------- pure-JAX reference -----------------------------

@functools.partial(jax.jit, static_argnames=("conv_dtype",))
def reference_forward(x_nchw, params, conv_dtype=jnp.float32):
    (w1, b1, g1, be1, w2, b2, g2, be2) = params

    def conv(x, w, b):
        y = lax.conv_general_dilated(x.astype(conv_dtype), w.astype(conv_dtype),
                                     (1, 1), 'VALID',
                                     dimension_numbers=('NCHW', 'OIHW', 'NCHW'),
                                     preferred_element_type=jnp.float32)
        return y + b[None, :, None, None]

    def bn_relu(x, g, be):
        mean = jnp.mean(x, axis=(0, 2, 3), keepdims=True)
        var = jnp.mean((x - mean) ** 2, axis=(0, 2, 3), keepdims=True)
        y = (x - mean) / jnp.sqrt(var + BN_EPS)
        y = y * g[None, :, None, None] + be[None, :, None, None]
        return jnp.maximum(y, 0.0)

    v3 = bn_relu(conv(x_nchw, w1, b1), g1, be1)
    v6 = bn_relu(conv(v3, w2, b2), g2, be2)
    Bn, C, Hh, Ww = v6.shape
    Hp, Wp = Hh // 2, Ww // 2
    v6c = v6[:, :, :Hp * 2, :Wp * 2].reshape(Bn, C, Hp, 2, Wp, 2)
    v7 = jnp.max(v6c, axis=(3, 5))
    return v7.reshape(Bn, -1)


# --------------------------------- main --------------------------------------

if __name__ == "__main__":
    key = jax.random.PRNGKey(0)
    ks = jax.random.split(key, 10)

    B, Cin, H, W = 2, 3, 16, 32          # W >= 18, H >= 7 required by the convs
    x = jax.random.normal(ks[0], (B, Cin, H, W), jnp.float32)

    w1 = 0.05 * jax.random.normal(ks[1], (64, 3, 3, 18), jnp.float32)
    b1 = 0.05 * jax.random.normal(ks[2], (64,), jnp.float32)
    g1 = 1.0 + 0.1 * jax.random.normal(ks[3], (64,), jnp.float32)
    be1 = 0.1 * jax.random.normal(ks[4], (64,), jnp.float32)

    w2 = 0.05 * jax.random.normal(ks[5], (128, 64, 5, 1), jnp.float32)
    b2 = 0.05 * jax.random.normal(ks[6], (128,), jnp.float32)
    g2 = 1.0 + 0.1 * jax.random.normal(ks[7], (128,), jnp.float32)
    be2 = 0.1 * jax.random.normal(ks[8], (128,), jnp.float32)

    params = (w1, b1, g1, be1, w2, b2, g2, be2)

    # One-time parameter packing, hoisted out of the jitted forward.
    prepped = prepare_params(params, jnp.bfloat16)
    out = jax.block_until_ready(model_forward(x, prepped))

    # Tight check: reference with the SAME bf16 operand rounding as the kernel.
    # Differences are only accumulation order / one-pass BN variance (~1e-5),
    # so this catches indexing, tap/channel and BN-divisor bugs.
    ref_bf16 = jax.block_until_ready(
        reference_forward(x, params, conv_dtype=jnp.bfloat16))
    np.testing.assert_allclose(np.asarray(out), np.asarray(ref_bf16),
                               rtol=2e-3, atol=2e-3)

    # Semantic check against the full-f32 reference (bf16 MXU noise allowance).
    ref = jax.block_until_ready(reference_forward(x, params))
    np.testing.assert_allclose(np.asarray(out), np.asarray(ref),
                               rtol=5e-2, atol=5e-2)

    # conv1 -> (2,64,14,15), conv2 -> (2,128,10,15), pool -> (2,128,5,7)
    assert out.shape == (B, 128 * 5 * 7), out.shape

    print("KERNEL_OK")
</pallas_src>

<mosaic_0001>
module attributes {stable_mosaic.version = 11 : i64} {
  func.func @kernel(%arg0: i32, %arg1: memref<448x162xbf16, #tpu.memory_space<vmem>>, %arg2: memref<162x128xbf16, #tpu.memory_space<vmem>>, %arg3: memref<1x128xf32, #tpu.memory_space<vmem>>, %arg4: memref<1x128xf32, #tpu.memory_space<vmem>>, %arg5: memref<320x128xbf16, #tpu.memory_space<vmem>>, %arg6: memref<1x128xf32, #tpu.memory_space<vmem>>, %arg7: memref<1x128xf32, #tpu.memory_space<vmem>>, %arg8: memref<160x128xf32, #tpu.memory_space<vmem>>, %arg9: memref<448x128xbf16, #tpu.memory_space<vmem>>) attributes {dimension_semantics = [#tpu.dimension_semantics<arbitrary>], iteration_bounds = array<i64: 1>, scalar_prefetch = 0 : i64, scratch_operands = 1 : i64, tpu.core_type = #tpu.core_type<tc>, window_params = [{pipeline_mode = #tpu.pipeline_mode<synchronous>, transform_indices = @transform_0, window_bounds = array<i64: 448, 162>}, {pipeline_mode = #tpu.pipeline_mode<synchronous>, transform_indices = @transform_1, window_bounds = array<i64: 162, 128>}, {pipeline_mode = #tpu.pipeline_mode<synchronous>, transform_indices = @transform_2, window_bounds = array<i64: 1, 128>}, {pipeline_mode = #tpu.pipeline_mode<synchronous>, transform_indices = @transform_3, window_bounds = array<i64: 1, 128>}, {pipeline_mode = #tpu.pipeline_mode<synchronous>, transform_indices = @transform_4, window_bounds = array<i64: 320, 128>}, {pipeline_mode = #tpu.pipeline_mode<synchronous>, transform_indices = @transform_5, window_bounds = array<i64: 1, 128>}, {pipeline_mode = #tpu.pipeline_mode<synchronous>, transform_indices = @transform_6, window_bounds = array<i64: 1, 128>}, {pipeline_mode = #tpu.pipeline_mode<synchronous>, transform_indices = @transform_7, window_bounds = array<i64: 160, 128>}]} {
    %c0 = arith.constant 0 : index
    %c0_0 = arith.constant 0 : index
    %0 = vector.load %arg1[%c0, %c0_0] : memref<448x162xbf16, #tpu.memory_space<vmem>>, vector<448x162xbf16>
    %c0_1 = arith.constant 0 : index
    %c0_2 = arith.constant 0 : index
    %1 = vector.load %arg2[%c0_1, %c0_2] : memref<162x128xbf16, #tpu.memory_space<vmem>>, vector<162x128xbf16>
    %cst = arith.constant dense<0.000000e+00> : vector<448x128xf32>
    %2 = tpu.matmul %0, %1, %cst {dimension_numbers = #tpu.dot_dimension_numbers<[1], [0], [0], [1], [0, 0, 1, 1], [], []>} : vector<448x162xbf16>, vector<162x128xbf16>, vector<448x128xf32> -> vector<448x128xf32>
    %cst_3 = arith.constant dense<0.000000e+00> : vector<128xf32>
    %3 = vector.multi_reduction <add>, %2, %cst_3 [0] : vector<448x128xf32> to vector<128xf32>
    %4 = vector.shape_cast %3 : vector<128xf32> to vector<1x128xf32>
    %cst_4 = arith.constant 0.00238095247 : f32
    %5 = vector.broadcast %cst_4 : f32 to vector<1x128xf32>
    %6 = arith.mulf %4, %5 : vector<1x128xf32>
    %7 = arith.mulf %2, %2 : vector<448x128xf32>
    %cst_5 = arith.constant dense<0.000000e+00> : vector<128xf32>
    %8 = vector.multi_reduction <add>, %7, %cst_5 [0] : vector<448x128xf32> to vector<128xf32>
    %9 = vector.shape_cast %8 : vector<128xf32> to vector<1x128xf32>
    %cst_6 = arith.constant 0.00238095247 : f32
    %10 = vector.broadcast %cst_6 : f32 to vector<1x128xf32>
    %11 = arith.mulf %9, %10 : vector<1x128xf32>
    %12 = arith.mulf %6, %6 : vector<1x128xf32>
    %13 = arith.subf %11, %12 : vector<1x128xf32>
    %cst_7 = arith.constant 0.000000e+00 : f32
    %14 = vector.broadcast %cst_7 : f32 to vector<1x128xf32>
    %15 = arith.maximumf %13, %14 : vector<1x128xf32>
    %cst_8 = arith.constant 9.99999974E-6 : f32
    %16 = vector.broadcast %cst_8 : f32 to vector<1x128xf32>
    %17 = arith.addf %15, %16 : vector<1x128xf32>
    %18 = math.rsqrt %17 : vector<1x128xf32>
    %c0_9 = arith.constant 0 : index
    %c0_10 = arith.constant 0 : index
    %19 = vector.load %arg3[%c0_9, %c0_10] : memref<1x128xf32, #tpu.memory_space<vmem>>, vector<1x128xf32>
    %20 = arith.mulf %18, %19 : vector<1x128xf32>
    %c0_11 = arith.constant 0 : index
    %c0_12 = arith.constant 0 : index
    %21 = vector.load %arg4[%c0_11, %c0_12] : memref<1x128xf32, #tpu.memory_space<vmem>>, vector<1x128xf32>
    %22 = arith.mulf %6, %20 : vector<1x128xf32>
    %23 = arith.subf %21, %22 : vector<1x128xf32>
    %24 = vector.broadcast %20 : vector<1x128xf32> to vector<448x128xf32>
    %25 = arith.mulf %2, %24 : vector<448x128xf32>
    %26 = vector.broadcast %23 : vector<1x128xf32> to vector<448x128xf32>
    %27 = arith.addf %25, %26 : vector<448x128xf32>
    %cst_13 = arith.constant 0.000000e+00 : f32
    %28 = vector.broadcast %cst_13 : f32 to vector<448x128xf32>
    %29 = arith.maximumf %27, %28 : vector<448x128xf32>
    %30 = tpu.iota {dimensions = array<i32: 0>} : vector<448x128xi32>
    %c16_i32 = arith.constant 16 : i32
    %c0_i32 = arith.constant 0 : i32
    %31 = arith.cmpi eq, %c16_i32, %c0_i32 : i32
    %c1_i32 = arith.constant 1 : i32
    %32 = arith.select %31, %c1_i32, %c16_i32 : i32
    %33 = vector.broadcast %32 : i32 to vector<448x128xi32>
    %34 = arith.remsi %30, %33 : vector<448x128xi32>
    %c0_i32_14 = arith.constant 0 : i32
    %35 = vector.broadcast %c0_i32_14 : i32 to vector<448x128xi32>
    %36 = arith.cmpi ne, %34, %35 : vector<448x128xi32>
    %c0_i32_15 = arith.constant 0 : i32
    %37 = vector.broadcast %c0_i32_15 : i32 to vector<448x128xi32>
    %38 = arith.cmpi slt, %34, %37 : vector<448x128xi32>
    %c0_i32_16 = arith.constant 0 : i32
    %39 = arith.cmpi slt, %32, %c0_i32_16 : i32
    %40 = vector.broadcast %39 : i1 to vector<448x128xi1>
    %41 = vector.broadcast %40 : vector<448x128xi1> to vector<448x128xi1>
    %42 = arith.xori %38, %41 : vector<448x128xi1>
    %43 = arith.andi %42, %36 : vector<448x128xi1>
    %44 = vector.broadcast %32 : i32 to vector<448x128xi32>
    %45 = arith.addi %34, %44 : vector<448x128xi32>
    %46 = arith.select %43, %45, %34 : vector<448x128xi1>, vector<448x128xi32>
    %c15_i32 = arith.constant 15 : i32
    %47 = vector.broadcast %c15_i32 : i32 to vector<448x128xi32>
    %48 = arith.cmpi slt, %46, %47 : vector<448x128xi32>
    %cst_17 = arith.constant 0.000000e+00 : f32
    %49 = vector.broadcast %cst_17 : f32 to vector<448x128xf32>
    %50 = arith.select %48, %29, %49 : vector<448x128xi1>, vector<448x128xf32>
    %51 = arith.truncf %50 : vector<448x128xf32> to vector<448x128xbf16>
    %c0_18 = arith.constant 0 : index
    %c0_19 = arith.constant 0 : index
    %52 = vector.load %arg9[%c0_18, %c0_19] : memref<448x128xbf16, #tpu.memory_space<vmem>>, vector<448x128xbf16>
    tpu.vector_store %arg9[%c0_18, %c0_19], %51 {strides = array<i32>} : memref<448x128xbf16, #tpu.memory_space<vmem>>, vector<448x128xbf16>,
    %c0_20 = arith.constant 0 : index
    %c0_21 = arith.constant 0 : index
    %53 = vector.load %arg9[%c0_20, %c0_21] : memref<448x128xbf16, #tpu.memory_space<vmem>>, vector<160x64xbf16>
    %c16 = arith.constant 16 : index
    %c0_22 = arith.constant 0 : index
    %54 = vector.load %arg9[%c16, %c0_22] : memref<448x128xbf16, #tpu.memory_space<vmem>>, vector<160x64xbf16>
    %c32 = arith.constant 32 : index
    %c0_23 = arith.constant 0 : index
    %55 = vector.load %arg9[%c32, %c0_23] : memref<448x128xbf16, #tpu.memory_space<vmem>>, vector<160x64xbf16>
    %c48 = arith.constant 48 : index
    %c0_24 = arith.constant 0 : index
    %56 = vector.load %arg9[%c48, %c0_24] : memref<448x128xbf16, #tpu.memory_space<vmem>>, vector<160x64xbf16>
    %c64 = arith.constant 64 : index
    %c0_25 = arith.constant 0 : index
    %57 = vector.load %arg9[%c64, %c0_25] : memref<448x128xbf16, #tpu.memory_space<vmem>>, vector<160x64xbf16>
    %58 = tpu.concatenate %53, %54, %55, %56, %57 in 1 : vector<160x64xbf16>, vector<160x64xbf16>, vector<160x64xbf16>, vector<160x64xbf16>, vector<160x64xbf16> -> vector<160x320xbf16>
    %c224 = arith.constant 224 : index
    %c0_26 = arith.constant 0 : index
    %59 = vector.load %arg9[%c224, %c0_26] : memref<448x128xbf16, #tpu.memory_space<vmem>>, vector<160x64xbf16>
    %c240 = arith.constant 240 : index
    %c0_27 = arith.constant 0 : index
    %60 = vector.load %arg9[%c240, %c0_27] : memref<448x128xbf16, #tpu.memory_space<vmem>>, vector<160x64xbf16>
    %c256 = arith.constant 256 : index
    %c0_28 = arith.constant 0 : index
    %61 = vector.load %arg9[%c256, %c0_28] : memref<448x128xbf16, #tpu.memory_space<vmem>>, vector<160x64xbf16>
    %c272 = arith.constant 272 : index
    %c0_29 = arith.constant 0 : index
    %62 = vector.load %arg9[%c272, %c0_29] : memref<448x128xbf16, #tpu.memory_space<vmem>>, vector<160x64xbf16>
    %c288 = arith.constant 288 : index
    %c0_30 = arith.constant 0 : index
    %63 = vector.load %arg9[%c288, %c0_30] : memref<448x128xbf16, #tpu.memory_space<vmem>>, vector<160x64xbf16>
    %64 = tpu.concatenate %59, %60, %61, %62, %63 in 1 : vector<160x64xbf16>, vector<160x64xbf16>, vector<160x64xbf16>, vector<160x64xbf16>, vector<160x64xbf16> -> vector<160x320xbf16>
    %65 = tpu.concatenate %58, %64 in 0 : vector<160x320xbf16>, vector<160x320xbf16> -> vector<320x320xbf16>
    %c0_31 = arith.constant 0 : index
    %c0_32 = arith.constant 0 : index
    %66 = vector.load %arg5[%c0_31, %c0_32] : memref<320x128xbf16, #tpu.memory_space<vmem>>, vector<320x128xbf16>
    %cst_33 = arith.constant dense<0.000000e+00> : vector<320x128xf32>
    %67 = tpu.matmul %65, %66, %cst_33 {dimension_numbers = #tpu.dot_dimension_numbers<[1], [0], [0], [1], [0, 0, 1, 1], [], []>} : vector<320x320xbf16>, vector<320x128xbf16>, vector<320x128xf32> -> vector<320x128xf32>
    %cst_34 = arith.constant dense<0.000000e+00> : vector<128xf32>
    %68 = vector.multi_reduction <add>, %67, %cst_34 [0] : vector<320x128xf32> to vector<128xf32>
    %69 = vector.shape_cast %68 : vector<128xf32> to vector<1x128xf32>
    %cst_35 = arith.constant 0.00333333341 : f32
    %70 = vector.broadcast %cst_35 : f32 to vector<1x128xf32>
    %71 = arith.mulf %69, %70 : vector<1x128xf32>
    %72 = arith.mulf %67, %67 : vector<320x128xf32>
    %cst_36 = arith.constant dense<0.000000e+00> : vector<128xf32>
    %73 = vector.multi_reduction <add>, %72, %cst_36 [0] : vector<320x128xf32> to vector<128xf32>
    %74 = vector.shape_cast %73 : vector<128xf32> to vector<1x128xf32>
    %cst_37 = arith.constant 0.00333333341 : f32
    %75 = vector.broadcast %cst_37 : f32 to vector<1x128xf32>
    %76 = arith.mulf %74, %75 : vector<1x128xf32>
    %77 = arith.mulf %71, %71 : vector<1x128xf32>
    %78 = arith.subf %76, %77 : vector<1x128xf32>
    %cst_38 = arith.constant 0.000000e+00 : f32
    %79 = vector.broadcast %cst_38 : f32 to vector<1x128xf32>
    %80 = arith.maximumf %78, %79 : vector<1x128xf32>
    %cst_39 = arith.constant 9.99999974E-6 : f32
    %81 = vector.broadcast %cst_39 : f32 to vector<1x128xf32>
    %82 = arith.addf %80, %81 : vector<1x128xf32>
    %83 = math.rsqrt %82 : vector<1x128xf32>
    %c0_40 = arith.constant 0 : index
    %c0_41 = arith.constant 0 : index
    %84 = vector.load %arg6[%c0_40, %c0_41] : memref<1x128xf32, #tpu.memory_space<vmem>>, vector<1x128xf32>
    %85 = arith.mulf %83, %84 : vector<1x128xf32>
    %c0_42 = arith.constant 0 : index
    %c0_43 = arith.constant 0 : index
    %86 = vector.load %arg7[%c0_42, %c0_43] : memref<1x128xf32, #tpu.memory_space<vmem>>, vector<1x128xf32>
    %87 = arith.mulf %71, %85 : vector<1x128xf32>
    %88 = arith.subf %86, %87 : vector<1x128xf32>
    %89 = vector.broadcast %85 : vector<1x128xf32> to vector<320x128xf32>
    %90 = arith.mulf %67, %89 : vector<320x128xf32>
    %91 = vector.broadcast %88 : vector<1x128xf32> to vector<320x128xf32>
    %92 = arith.addf %90, %91 : vector<320x128xf32>
    %cst_44 = arith.constant 0.000000e+00 : f32
    %93 = vector.broadcast %cst_44 : f32 to vector<320x128xf32>
    %94 = arith.maximumf %92, %93 : vector<320x128xf32>
    %95 = vector.shape_cast %94 : vector<320x128xf32> to vector<10x32x128xf32>
    %96 = vector.extract_strided_slice %95 {offsets = [0, 0, 0], sizes = [10, 16, 128], strides = [1, 1, 1]} : vector<10x32x128xf32> to vector<10x16x128xf32>
    %97 = vector.extract_strided_slice %95 {offsets = [0, 16, 0], sizes = [10, 16, 128], strides = [1, 1, 1]} : vector<10x32x128xf32> to vector<10x16x128xf32>
    %98 = arith.maximumf %96, %97 : vector<10x16x128xf32>
    %99 = vector.shape_cast %98 : vector<10x16x128xf32> to vector<160x128xf32>
    %c0_45 = arith.constant 0 : index
    %c0_46 = arith.constant 0 : index
    %100 = vector.load %arg8[%c0_45, %c0_46] : memref<160x128xf32, #tpu.memory_space<vmem>>, vector<160x128xf32>
    tpu.vector_store %arg8[%c0_45, %c0_46], %99 {strides = array<i32>} : memref<160x128xf32, #tpu.memory_space<vmem>>, vector<160x128xf32>,
    return
  }
  func.func @transform_0(%arg0: i32) -> (i32, i32) {
    %c0_i32 = arith.constant 0 : i32
    %c0_i32_0 = arith.constant 0 : i32
    %c0_i32_1 = arith.constant 0 : i32
    return %c0_i32, %c0_i32_0 : i32, i32
  }
  func.func @transform_1(%arg0: i32) -> (i32, i32) {
    %c0_i32 = arith.constant 0 : i32
    %c0_i32_0 = arith.constant 0 : i32
    %c0_i32_1 = arith.constant 0 : i32
    return %c0_i32, %c0_i32_0 : i32, i32
  }
  func.func @transform_2(%arg0: i32) -> (i32, i32) {
    %c0_i32 = arith.constant 0 : i32
    %c0_i32_0 = arith.constant 0 : i32
    %c0_i32_1 = arith.constant 0 : i32
    return %c0_i32, %c0_i32_0 : i32, i32
  }
  func.func @transform_3(%arg0: i32) -> (i32, i32) {
    %c0_i32 = arith.constant 0 : i32
    %c0_i32_0 = arith.constant 0 : i32
    %c0_i32_1 = arith.constant 0 : i32
    return %c0_i32, %c0_i32_0 : i32, i32
  }
  func.func @transform_4(%arg0: i32) -> (i32, i32) {
    %c0_i32 = arith.constant 0 : i32
    %c0_i32_0 = arith.constant 0 : i32
    %c0_i32_1 = arith.constant 0 : i32
    return %c0_i32, %c0_i32_0 : i32, i32
  }
  func.func @transform_5(%arg0: i32) -> (i32, i32) {
    %c0_i32 = arith.constant 0 : i32
    %c0_i32_0 = arith.constant 0 : i32
    %c0_i32_1 = arith.constant 0 : i32
    return %c0_i32, %c0_i32_0 : i32, i32
  }
  func.func @transform_6(%arg0: i32) -> (i32, i32) {
    %c0_i32 = arith.constant 0 : i32
    %c0_i32_0 = arith.constant 0 : i32
    %c0_i32_1 = arith.constant 0 : i32
    return %c0_i32, %c0_i32_0 : i32, i32
  }
  func.func @transform_7(%arg0: i32) -> (i32, i32) {
    %c0_i32 = arith.constant 0 : i32
    %c0_i32_0 = arith.constant 0 : i32
    %c0_i32_1 = arith.constant 0 : i32
    return %c0_i32, %c0_i32_0 : i32, i32
  }
}

</mosaic_0001>

<llo_original>
// kernel: model_forward.1
$region0: #{model_forward.1}
  #allocation0 [shape = 'u32[]', space=smem, size = 0x4, offset = 0x4, fixed_abs, tag = 'smem constant byte address 0x4 - core index']
  #allocation1 [shape = 'u32[144,128]{1,0:T(1,128)}', space=vmem, size = 0x12000, scoped, tag = 'internal scratch']
  #allocation2 [shape = 'bf16[448,128]{1,0:T(8,128)(2,1)}', space=vmem, size = 0x1c000, scoped, tag = 'scratch operand']
  %s0 = inlined_call_operand.vmem [shape: bf16[448,162], index: 0, kind: input, shape index: {}]
  %s1 = inlined_call_operand.vmem [shape: bf16[162,128], index: 1, kind: input, shape index: {}]
  %s2 = inlined_call_operand.vmem [shape: f32[1,128], index: 2, kind: input, shape index: {}]
  %s3 = inlined_call_operand.vmem [shape: f32[1,128], index: 3, kind: input, shape index: {}]
  %s4 = inlined_call_operand.vmem [shape: bf16[320,128], index: 4, kind: input, shape index: {}]
  %s5 = inlined_call_operand.vmem [shape: f32[1,128], index: 5, kind: input, shape index: {}]
  %s6 = inlined_call_operand.vmem [shape: f32[1,128], index: 6, kind: input, shape index: {}]
  %s7 = inlined_call_operand.vmem [shape: f32[160,128], index: 7, kind: output, shape index: {}]
  %s8 = sld [smem:[#allocation0]]
  $region38: #{model_forward.1} parent=0
    _
  %s10 = ssub.s32 1, %s8
  %s11 = scalar_select 0, %s10, %s8
  // Predicated region
  $region2: #{model_forward.1} parent=0 // pred_check
    _
  $region3: #{model_forward.1} parent=0 // pred_check_branch
    %13 = sbr.rel (0) target = $region5
  $region4: #{model_forward.1} parent=0 // pred_region
    _
  $region5: #{model_forward.1} parent=0 // pred_fallthru
    _
  // Predicated region
  $region6: #{model_forward.1} parent=0 // pred_check
    _
  $region7: #{model_forward.1} parent=0 // pred_check_branch
    %15 = sbr.rel (0) target = $region9
  $region8: #{model_forward.1} parent=0 // pred_region
    _
  $region9: #{model_forward.1} parent=0 // pred_fallthru
    _
  // Predicated region
  $region10: #{model_forward.1} parent=0 // pred_check
    _
  $region11: #{model_forward.1} parent=0 // pred_check_branch
    %17 = sbr.rel (0) target = $region13
  $region12: #{model_forward.1} parent=0 // pred_region
    _
  $region13: #{model_forward.1} parent=0 // pred_fallthru
    _
  // Predicated region
  $region14: #{model_forward.1} parent=0 // pred_check
    _
  $region15: #{model_forward.1} parent=0 // pred_check_branch
    %19 = sbr.rel (0) target = $region17
  $region16: #{model_forward.1} parent=0 // pred_region
    _
  $region17: #{model_forward.1} parent=0 // pred_fallthru
    _
  // Predicated region
  $region18: #{model_forward.1} parent=0 // pred_check
    _
  $region19: #{model_forward.1} parent=0 // pred_check_branch
    %21 = sbr.rel (0) target = $region21
  $region20: #{model_forward.1} parent=0 // pred_region
    _
  $region21: #{model_forward.1} parent=0 // pred_fallthru
    _
  // Predicated region
  $region22: #{model_forward.1} parent=0 // pred_check
    _
  $region23: #{model_forward.1} parent=0 // pred_check_branch
    %23 = sbr.rel (0) target = $region25
  $region24: #{model_forward.1} parent=0 // pred_region
    _
  $region25: #{model_forward.1} parent=0 // pred_fallthru
    _
  // Predicated region
  $region26: #{model_forward.1} parent=0 // pred_check
    _
  $region27: #{model_forward.1} parent=0 // pred_check_branch
    %25 = sbr.rel (0) target = $region29
  $region28: #{model_forward.1} parent=0 // pred_region
    _
  $region29: #{model_forward.1} parent=0 // pred_fallthru
    _
  %v27 = vld [vmem:[%s0] sm:$0xff]
  %v28 = vld [vmem:[%s0 + $0x8] sm:$0xff]
  %v29 = vld [vmem:[%s0 + $0x10] sm:$0xff]
  %v30 = vld [vmem:[%s0 + $0x18] sm:$0xff]
  %v31 = vld [vmem:[%s0 + $0x20] sm:$0xff]
  %v32 = vld [vmem:[%s0 + $0x28] sm:$0xff]
  %v33 = vld [vmem:[%s0 + $0x30] sm:$0xff]
  %v34 = vld [vmem:[%s0 + $0x38] sm:$0xff]
  %v35 = vld [vmem:[%s0 + $0x40] sm:$0xff]
  %v36 = vld [vmem:[%s0 + $0x48] sm:$0xff]
  %v37 = vld [vmem:[%s0 + $0x50] sm:$0xff]
  %v38 = vld [vmem:[%s0 + $0x58] sm:$0xff]
  %v39 = vld [vmem:[%s0 + $0x60] sm:$0xff]
  %v40 = vld [vmem:[%s0 + $0x68] sm:$0xff]
  %v41 = vld [vmem:[%s0 + $0x70] sm:$0xff]
  %v42 = vld [vmem:[%s0 + $0x78] sm:$0xff]
  %v43 = vld [vmem:[%s0 + $0x80] sm:$0xff]
  %v44 = vld [vmem:[%s0 + $0x88] sm:$0xff]
  %v45 = vld [vmem:[%s0 + $0x90] sm:$0xff]
  %v46 = vld [vmem:[%s0 + $0x98] sm:$0xff]
  %v47 = vld [vmem:[%s0 + $0xa0] sm:$0xff]
  %v48 = vld [vmem:[%s0 + $0xa8] sm:$0xff]
  %v49 = vld [vmem:[%s0 + $0xb0] sm:$0xff]
  %v50 = vld [vmem:[%s0 + $0xb8] sm:$0xff]
  %v51 = vld [vmem:[%s0 + $0xc0] sm:$0xff]
  %v52 = vld [vmem:[%s0 + $0xc8] sm:$0xff]
  %v53 = vld [vmem:[%s0 + $0xd0] sm:$0xff]
  %v54 = vld [vmem:[%s0 + $0xd8] sm:$0xff]
  %v55 = vld [vmem:[%s0 + $0xe0] sm:$0xff]
  %v56 = vld [vmem:[%s0 + $0xe8] sm:$0xff]
  %v57 = vld [vmem:[%s0 + $0xf0] sm:$0xff]
  %v58 = vld [vmem:[%s0 + $0xf8] sm:$0xff]
  %v59 = vld [vmem:[%s0 + $0x100] sm:$0xff]
  %v60 = vld [vmem:[%s0 + $0x108] sm:$0xff]
  %v61 = vld [vmem:[%s0 + $0x110] sm:$0xff]
  %v62 = vld [vmem:[%s0 + $0x118] sm:$0xff]
  %v63 = vld [vmem:[%s0 + $0x120] sm:$0xff]
  %v64 = vld [vmem:[%s0 + $0x128] sm:$0xff]
  %v65 = vld [vmem:[%s0 + $0x130] sm:$0xff]
  %v66 = vld [vmem:[%s0 + $0x138] sm:$0xff]
  %v67 = vld [vmem:[%s0 + $0x140] sm:$0xff]
  %v68 = vld [vmem:[%s0 + $0x148] sm:$0xff]
  %v69 = vld [vmem:[%s0 + $0x150] sm:$0xff]
  %v70 = vld [vmem:[%s0 + $0x158] sm:$0xff]
  %v71 = vld [vmem:[%s0 + $0x160] sm:$0xff]
  %v72 = vld [vmem:[%s0 + $0x168] sm:$0xff]
  %v73 = vld [vmem:[%s0 + $0x170] sm:$0xff]
  %v74 = vld [vmem:[%s0 + $0x178] sm:$0xff]
  %v75 = vld [vmem:[%s0 + $0x180] sm:$0xff]
  %v76 = vld [vmem:[%s0 + $0x188] sm:$0xff]
  %v77 = vld [vmem:[%s0 + $0x190] sm:$0xff]
  %v78 = vld [vmem:[%s0 + $0x198] sm:$0xff]
  %v79 = vld [vmem:[%s0 + $0x1a0] sm:$0xff]
  %v80 = vld [vmem:[%s0 + $0x1a8] sm:$0xff]
  %v81 = vld [vmem:[%s0 + $0x1b0] sm:$0xff]
  %v82 = vld [vmem:[%s0 + $0x1b8] sm:$0xff]
  %v83 = vld [vmem:[%s1] sm:$0xf]
  %v84 = vld [vmem:[%s1 + $0x4] sm:$0xf]
  %v85 = vld [vmem:[%s1 + $0x8] sm:$0xf]
  %v86 = vld [vmem:[%s1 + $0xc] sm:$0xf]
  %v87 = vld [vmem:[%s1 + $0x10] sm:$0xf]
  %v88 = vld [vmem:[%s1 + $0x14] sm:$0xf]
  %v89 = vld [vmem:[%s1 + $0x18] sm:$0xf]
  %v90 = vld [vmem:[%s1 + $0x1c] sm:$0xf]
  %v91 = vld [vmem:[%s1 + $0x20] sm:$0xf]
  %v92 = vld [vmem:[%s1 + $0x24] sm:$0xf]
  %v93 = vld [vmem:[%s1 + $0x28] sm:$0xf]
  %v94 = vld [vmem:[%s1 + $0x2c] sm:$0xf]
  %v95 = vld [vmem:[%s1 + $0x30] sm:$0xf]
  %v96 = vld [vmem:[%s1 + $0x34] sm:$0xf]
  %v97 = vld [vmem:[%s1 + $0x38] sm:$0xf]
  %v98 = vld [vmem:[%s1 + $0x3c] sm:$0xf]
  %v99 = vld [vmem:[%s1 + $0x40] sm:$0xf]
  %v100 = vld [vmem:[%s1 + $0x44] sm:$0xf]
  %v101 = vld [vmem:[%s1 + $0x48] sm:$0xf]
  %v102 = vld [vmem:[%s1 + $0x4c] sm:$0xf]
  %v103 = vld [vmem:[%s1 + $0x50] sm:$0x1]
  %v160 = vunpack.c.l.b16 %v27
  %v161 = vunpack.c.h.b16 %v27
  %v162 = vunpack.c.l.b16 %v28
  %v163 = vunpack.c.h.b16 %v28
  %v164 = vunpack.c.l.b16 %v29
  %v165 = vunpack.c.h.b16 %v29
  %v166 = vunpack.c.l.b16 %v30
  %v167 = vunpack.c.h.b16 %v30
  %v168 = vunpack.c.l.b16 %v31
  %v169 = vunpack.c.h.b16 %v31
  %v170 = vunpack.c.l.b16 %v32
  %v171 = vunpack.c.h.b16 %v32
  %v172 = vunpack.c.l.b16 %v33
  %v173 = vunpack.c.h.b16 %v33
  %v174 = vunpack.c.l.b16 %v34
  %v175 = vunpack.c.h.b16 %v34
  %v176 = vunpack.c.l.b16 %v35
  %v177 = vunpack.c.h.b16 %v35
  %v178 = vunpack.c.l.b16 %v36
  %v179 = vunpack.c.h.b16 %v36
  %v180 = vunpack.c.l.b16 %v37
  %v181 = vunpack.c.h.b16 %v37
  %v182 = vunpack.c.l.b16 %v38
  %v183 = vunpack.c.h.b16 %v38
  %v184 = vunpack.c.l.b16 %v39
  %v185 = vunpack.c.h.b16 %v39
  %v186 = vunpack.c.l.b16 %v40
  %v187 = vunpack.c.h.b16 %v40
  %v188 = vunpack.c.l.b16 %v41
  %v189 = vunpack.c.h.b16 %v41
  %v190 = vunpack.c.l.b16 %v42
  %v191 = vunpack.c.h.b16 %v42
  %v192 = vunpack.c.l.b16 %v43
  %v193 = vunpack.c.h.b16 %v43
  %v194 = vunpack.c.l.b16 %v44
  %v195 = vunpack.c.h.b16 %v44
  %v196 = vunpack.c.l.b16 %v45
  %v197 = vunpack.c.h.b16 %v45
  %v198 = vunpack.c.l.b16 %v46
  %v199 = vunpack.c.h.b16 %v46
  %v200 = vunpack.c.l.b16 %v47
  %v201 = vunpack.c.h.b16 %v47
  %v202 = vunpack.c.l.b16 %v48
  %v203 = vunpack.c.h.b16 %v48
  %v204 = vunpack.c.l.b16 %v49
  %v205 = vunpack.c.h.b16 %v49
  %v206 = vunpack.c.l.b16 %v50
  %v207 = vunpack.c.h.b16 %v50
  %v208 = vunpack.c.l.b16 %v51
  %v209 = vunpack.c.h.b16 %v51
  %v210 = vunpack.c.l.b16 %v52
  %v211 = vunpack.c.h.b16 %v52
  %v212 = vunpack.c.l.b16 %v53
  %v213 = vunpack.c.h.b16 %v53
  %v214 = vunpack.c.l.b16 %v54
  %v215 = vunpack.c.h.b16 %v54
  %v216 = vunpack.c.l.b16 %v55
  %v217 = vunpack.c.h.b16 %v55
  %v218 = vunpack.c.l.b16 %v56
  %v219 = vunpack.c.h.b16 %v56
  %v220 = vunpack.c.l.b16 %v57
  %v221 = vunpack.c.h.b16 %v57
  %v222 = vunpack.c.l.b16 %v58
  %v223 = vunpack.c.h.b16 %v58
  %v224 = vunpack.c.l.b16 %v59
  %v225 = vunpack.c.h.b16 %v59
  %v226 = vunpack.c.l.b16 %v60
  %v227 = vunpack.c.h.b16 %v60
  %v228 = vunpack.c.l.b16 %v61
  %v229 = vunpack.c.h.b16 %v61
  %v230 = vunpack.c.l.b16 %v62
  %v231 = vunpack.c.h.b16 %v62
  %v232 = vunpack.c.l.b16 %v63
  %v233 = vunpack.c.h.b16 %v63
  %v234 = vunpack.c.l.b16 %v64
  %v235 = vunpack.c.h.b16 %v64
  %v236 = vunpack.c.l.b16 %v65
  %v237 = vunpack.c.h.b16 %v65
  %v238 = vunpack.c.l.b16 %v66
  %v239 = vunpack.c.h.b16 %v66
  %v240 = vunpack.c.l.b16 %v67
  %v241 = vunpack.c.h.b16 %v67
  %v242 = vunpack.c.l.b16 %v68
  %v243 = vunpack.c.h.b16 %v68
  %v244 = vunpack.c.l.b16 %v69
  %v245 = vunpack.c.h.b16 %v69
  %v246 = vunpack.c.l.b16 %v70
  %v247 = vunpack.c.h.b16 %v70
  %v248 = vunpack.c.l.b16 %v71
  %v249 = vunpack.c.h.b16 %v71
  %v250 = vunpack.c.l.b16 %v72
  %v251 = vunpack.c.h.b16 %v72
  %v252 = vunpack.c.l.b16 %v73
  %v253 = vunpack.c.h.b16 %v73
  %v254 = vunpack.c.l.b16 %v74
  %v255 = vunpack.c.h.b16 %v74
  %v256 = vunpack.c.l.b16 %v75
  %v257 = vunpack.c.h.b16 %v75
  %v258 = vunpack.c.l.b16 %v76
  %v259 = vunpack.c.h.b16 %v76
  %v260 = vunpack.c.l.b16 %v77
  %v261 = vunpack.c.h.b16 %v77
  %v262 = vunpack.c.l.b16 %v78
  %v263 = vunpack.c.h.b16 %v78
  %v264 = vunpack.c.l.b16 %v79
  %v265 = vunpack.c.h.b16 %v79
  %v266 = vunpack.c.l.b16 %v80
  %v267 = vunpack.c.h.b16 %v80
  %v268 = vunpack.c.l.b16 %v81
  %v269 = vunpack.c.h.b16 %v81
  %v270 = vunpack.c.l.b16 %v82
  %v271 = vunpack.c.h.b16 %v82
  %v272 = vpack.c.b16 %v162, %v160
  %v273 = vpack.c.b16 %v163, %v161
  %v274 = vpack.c.b16 %v166, %v164
  %v275 = vpack.c.b16 %v167, %v165
  %v276 = vpack.c.b16 %v170, %v168
  %v277 = vpack.c.b16 %v171, %v169
  %v278 = vpack.c.b16 %v174, %v172
  %v279 = vpack.c.b16 %v175, %v173
  %v280 = vpack.c.b16 %v178, %v176
  %v281 = vpack.c.b16 %v179, %v177
  %v282 = vpack.c.b16 %v182, %v180
  %v283 = vpack.c.b16 %v183, %v181
  %v284 = vpack.c.b16 %v186, %v184
  %v285 = vpack.c.b16 %v187, %v185
  %v286 = vpack.c.b16 %v190, %v188
  %v287 = vpack.c.b16 %v191, %v189
  %v288 = vpack.c.b16 %v194, %v192
  %v289 = vpack.c.b16 %v195, %v193
  %v290 = vpack.c.b16 %v198, %v196
  %v291 = vpack.c.b16 %v199, %v197
  %v292 = vpack.c.b16 %v202, %v200
  %v293 = vpack.c.b16 %v203, %v201
  %v294 = vpack.c.b16 %v206, %v204
  %v295 = vpack.c.b16 %v207, %v205
  %v296 = vpack.c.b16 %v210, %v208
  %v297 = vpack.c.b16 %v211, %v209
  %v298 = vpack.c.b16 %v214, %v212
  %v299 = vpack.c.b16 %v215, %v213
  %v300 = vpack.c.b16 %v218, %v216
  %v301 = vpack.c.b16 %v219, %v217
  %v302 = vpack.c.b16 %v222, %v220
  %v303 = vpack.c.b16 %v223, %v221
  %v304 = vpack.c.b16 %v226, %v224
  %v305 = vpack.c.b16 %v227, %v225
  %v306 = vpack.c.b16 %v230, %v228
  %v307 = vpack.c.b16 %v231, %v229
  %v308 = vpack.c.b16 %v234, %v232
  %v309 = vpack.c.b16 %v235, %v233
  %v310 = vpack.c.b16 %v238, %v236
  %v311 = vpack.c.b16 %v239, %v237
  %v312 = vpack.c.b16 %v242, %v240
  %v313 = vpack.c.b16 %v243, %v241
  %v314 = vpack.c.b16 %v246, %v244
  %v315 = vpack.c.b16 %v247, %v245
  %v316 = vpack.c.b16 %v250, %v248
  %v317 = vpack.c.b16 %v251, %v249
  %v318 = vpack.c.b16 %v254, %v252
  %v319 = vpack.c.b16 %v255, %v253
  %v320 = vpack.c.b16 %v258, %v256
  %v321 = vpack.c.b16 %v259, %v257
  %v322 = vpack.c.b16 %v262, %v260
  %v323 = vpack.c.b16 %v263, %v261
  %v324 = vpack.c.b16 %v266, %v264
  %v325 = vpack.c.b16 %v267, %v265
  %v326 = vpack.c.b16 %v270, %v268
  %v327 = vpack.c.b16 %v271, %v269
  %v377 = vunpack.c.l.b16 %v83
  %v378 = vunpack.c.l.b16 %v84
  %v379 = vunpack.c.l.b16 %v85
  %v380 = vunpack.c.l.b16 %v86
  %v381 = vunpack.c.l.b16 %v87
  %v382 = vunpack.c.l.b16 %v88
  %v383 = vunpack.c.l.b16 %v89
  %v384 = vunpack.c.l.b16 %v90
  %v385 = vunpack.c.l.b16 %v91
  %v386 = vunpack.c.l.b16 %v92
  %v387 = vunpack.c.l.b16 %v93
  %v388 = vunpack.c.l.b16 %v94
  %v389 = vunpack.c.l.b16 %v95
  %v390 = vunpack.c.l.b16 %v96
  %v391 = vunpack.c.l.b16 %v97
  %v392 = vunpack.c.l.b16 %v98
  %v393 = vunpack.c.l.b16 %v99
  %v394 = vunpack.c.l.b16 %v100
  %v395 = vunpack.c.l.b16 %v101
  %v396 = vunpack.c.l.b16 %v102
  %v397 = vunpack.c.l.b16 %v103
  %v398 = vpack.c.b16 %v378, %v377
  %v399 = vpack.c.b16 %v380, %v379
  %v400 = vpack.c.b16 %v382, %v381
  %v401 = vpack.c.b16 %v384, %v383
  %v402 = vpack.c.b16 %v386, %v385
  %v403 = vpack.c.b16 %v388, %v387
  %v404 = vpack.c.b16 %v390, %v389
  %v405 = vpack.c.b16 %v392, %v391
  %v406 = vpack.c.b16 %v394, %v393
  %v407 = vpack.c.b16 %v396, %v395
  %v408 = vpack.c.b16 %v397, %v397
  %vm419 = vcmask 277504
  %v421 = vsel %vm419, %v273, 0
  %v424 = vsel %vm419, %v275, 0
  %v427 = vsel %vm419, %v277, 0
  %v430 = vsel %vm419, %v279, 0
  %v433 = vsel %vm419, %v281, 0
  %v436 = vsel %vm419, %v283, 0
  %v439 = vsel %vm419, %v285, 0
  %v442 = vsel %vm419, %v287, 0
  %v445 = vsel %vm419, %v289, 0
  %v448 = vsel %vm419, %v291, 0
  %v451 = vsel %vm419, %v293, 0
  %v454 = vsel %vm419, %v295, 0
  %v457 = vsel %vm419, %v297, 0
  %v460 = vsel %vm419, %v299, 0
  %v463 = vsel %vm419, %v301, 0
  %v466 = vsel %vm419, %v303, 0
  %v469 = vsel %vm419, %v305, 0
  %v472 = vsel %vm419, %v307, 0
  %v475 = vsel %vm419, %v309, 0
  %v478 = vsel %vm419, %v311, 0
  %v481 = vsel %vm419, %v313, 0
  %v484 = vsel %vm419, %v315, 0
  %v487 = vsel %vm419, %v317, 0
  %v490 = vsel %vm419, %v319, 0
  %v493 = vsel %vm419, %v321, 0
  %v496 = vsel %vm419, %v323, 0
  %v499 = vsel %vm419, %v325, 0
  %v502 = vsel %vm419, %v327, 0
  %vm504 = vcmask 1040384
  %v506 = vsel %vm504, %v408, 0
  %508 = vmatprep.subr.bf16.mxu0 0
  %509 = vmatpush1.bf16.msra.mxu0 %v405
  %510 = vmatprep.subr.bf16.mxu0 0
  %511 = vmatpush1.bf16.msra.mxu0 %v404
  %512 = vmatprep.subr.bf16.mxu0 0
  %513 = vmatpush1.bf16.msra.mxu0 %v403
  %514 = vmatprep.subr.bf16.mxu0 0
  %515 = vmatpush1.bf16.msra.mxu0 %v402
  %516 = vmatprep.subr.bf16.mxu0 0
  %517 = vmatpush1.bf16.msra.mxu0 %v401
  %518 = vmatprep.subr.bf16.mxu0 0
  %519 = vmatpush1.bf16.msra.mxu0 %v400
  %520 = vmatprep.subr.bf16.mxu0 0
  %521 = vmatpush1.bf16.msra.mxu0 %v399
  %522 = vmatprep.subr.bf16.mxu0 0
  %523 = vmatpush1.bf16.msra.mxu0 %v398
  %524 = vmatprep.subr.bf16.mxu0 0
  %525 = vmatpush2.bf16.msra.mxu0 0
  %526 = vmatprep.subr.bf16.mxu0 0
  %527 = vmatpush2.bf16.msra.mxu0 0
  %528 = vmatprep.subr.bf16.mxu0 0
  %529 = vmatpush2.bf16.msra.mxu0 0
  %530 = vmatprep.subr.bf16.mxu0 0
  %531 = vmatpush2.bf16.msra.mxu0 0
  %532 = vmatprep.subr.bf16.mxu0 0
  %533 = vmatpush2.bf16.msra.mxu0 0
  %534 = vmatprep.subr.bf16.mxu0 0
  %535 = vmatpush2.bf16.msra.mxu0 %v506
  %536 = vmatprep.subr.bf16.mxu0 0
  %537 = vmatpush2.bf16.msra.mxu0 %v407
  %538 = vmatprep.subr.bf16.mxu0 0
  %539 = vmatpush2.bf16.msra.mxu0 %v406
  %540 = vmatprep.mubr.bf16.mxu0 %v421
  %541 = vmatmul.mubr.bf16.gmra.mxu0 %v272
  %v542 = vpop.f32.mrf.mxu0
  %v543 = vadd.f32 0.0, %v542
  %v544 = vpop.f32.mrf.mxu0
  %v545 = vpop.f32.mrf.mxu0
  %v546 = vadd.f32 0.0, %v545
  %v547 = vpop.f32.mrf.mxu0
  %548 = vmatprep.mubr.bf16.mxu0 %v424
  %549 = vmatmul.mubr.bf16.gmra.mxu0 %v274
  %v550 = vpop.f32.mrf.mxu0
  %v551 = vadd.f32 0.0, %v550
  %v552 = vpop.f32.mrf.mxu0
  %v553 = vpop.f32.mrf.mxu0
  %v554 = vadd.f32 0.0, %v553
  %v555 = vpop.f32.mrf.mxu0
  %556 = vmatprep.mubr.bf16.mxu0 %v427
  %557 = vmatmul.mubr.bf16.gmra.mxu0 %v276
  %v558 = vpop.f32.mrf.mxu0
  %v559 = vadd.f32 0.0, %v558
  %v560 = vpop.f32.mrf.mxu0
  %v561 = vpop.f32.mrf.mxu0
  %v562 = vadd.f32 0.0, %v561
  %v563 = vpop.f32.mrf.mxu0
  %564 = vmatprep.mubr.bf16.mxu0 %v430
  %565 = vmatmul.mubr.bf16.gmra.mxu0 %v278
  %v566 = vpop.f32.mrf.mxu0
  %v567 = vadd.f32 0.0, %v566
  %v568 = vpop.f32.mrf.mxu0
  %v569 = vpop.f32.mrf.mxu0
  %v570 = vadd.f32 0.0, %v569
  %v571 = vpop.f32.mrf.mxu0
  %572 = vmatprep.mubr.bf16.mxu0 %v433
  %573 = vmatmul.mubr.bf16.gmra.mxu0 %v280
  %v574 = vpop.f32.mrf.mxu0
  %v575 = vadd.f32 0.0, %v574
  %v576 = vpop.f32.mrf.mxu0
  %v577 = vpop.f32.mrf.mxu0
  %v578 = vadd.f32 0.0, %v577
  %v579 = vpop.f32.mrf.mxu0
  %580 = vmatprep.mubr.bf16.mxu0 %v436
  %581 = vmatmul.mubr.bf16.gmra.mxu0 %v282
  %v582 = vpop.f32.mrf.mxu0
  %v583 = vadd.f32 0.0, %v582
  %v584 = vpop.f32.mrf.mxu0
  %v585 = vpop.f32.mrf.mxu0
  %v586 = vadd.f32 0.0, %v585
  %v587 = vpop.f32.mrf.mxu0
  %588 = vmatprep.mubr.bf16.mxu0 %v439
  %589 = vmatmul.mubr.bf16.gmra.mxu0 %v284
  %v590 = vpop.f32.mrf.mxu0
  %v591 = vadd.f32 0.0, %v590
  %v592 = vpop.f32.mrf.mxu0
  %v593 = vpop.f32.mrf.mxu0
  %v594 = vadd.f32 0.0, %v593
  %v595 = vpop.f32.mrf.mxu0
  %596 = vmatprep.mubr.bf16.mxu0 %v442
  %597 = vmatmul.mubr.bf16.gmra.mxu0 %v286
  %v598 = vpop.f32.mrf.mxu0
  %v599 = vadd.f32 0.0, %v598
  %v600 = vpop.f32.mrf.mxu0
  %v601 = vpop.f32.mrf.mxu0
  %v602 = vadd.f32 0.0, %v601
  %v603 = vpop.f32.mrf.mxu0
  %604 = vmatprep.mubr.bf16.mxu0 %v445
  %605 = vmatmul.mubr.bf16.gmra.mxu0 %v288
  %v606 = vpop.f32.mrf.mxu0
  %v607 = vadd.f32 0.0, %v606
  %v608 = vpop.f32.mrf.mxu0
  %v609 = vpop.f32.mrf.mxu0
  %v610 = vadd.f32 0.0, %v609
  %v611 = vpop.f32.mrf.mxu0
  %612 = vmatprep.mubr.bf16.mxu0 %v448
  %613 = vmatmul.mubr.bf16.gmra.mxu0 %v290
  %v614 = vpop.f32.mrf.mxu0
  %v615 = vadd.f32 0.0, %v614
  %v616 = vpop.f32.mrf.mxu0
  %v617 = vpop.f32.mrf.mxu0
  %v618 = vadd.f32 0.0, %v617
  %v619 = vpop.f32.mrf.mxu0
  %620 = vmatprep.mubr.bf16.mxu0 %v451
  %621 = vmatmul.mubr.bf16.gmra.mxu0 %v292
  %v622 = vpop.f32.mrf.mxu0
  %v623 = vadd.f32 0.0, %v622
  %v624 = vpop.f32.mrf.mxu0
  %v625 = vpop.f32.mrf.mxu0
  %v626 = vadd.f32 0.0, %v625
  %v627 = vpop.f32.mrf.mxu0
  %628 = vmatprep.mubr.bf16.mxu0 %v454
  %629 = vmatmul.mubr.bf16.gmra.mxu0 %v294
  %v630 = vpop.f32.mrf.mxu0
  %v631 = vadd.f32 0.0, %v630
  %v632 = vpop.f32.mrf.mxu0
  %v633 = vpop.f32.mrf.mxu0
  %v634 = vadd.f32 0.0, %v633
  %v635 = vpop.f32.mrf.mxu0
  %636 = vmatprep.mubr.bf16.mxu0 %v457
  %637 = vmatmul.mubr.bf16.gmra.mxu0 %v296
  %v638 = vpop.f32.mrf.mxu0
  %v639 = vadd.f32 0.0, %v638
  %v640 = vpop.f32.mrf.mxu0
  %v641 = vpop.f32.mrf.mxu0
  %v642 = vadd.f32 0.0, %v641
  %v643 = vpop.f32.mrf.mxu0
  %644 = vmatprep.mubr.bf16.mxu0 %v460
  %645 = vmatmul.mubr.bf16.gmra.mxu0 %v298
  %v646 = vpop.f32.mrf.mxu0
  %v647 = vadd.f32 0.0, %v646
  %v648 = vpop.f32.mrf.mxu0
  %v649 = vpop.f32.mrf.mxu0
  %v650 = vadd.f32 0.0, %v649
  %v651 = vpop.f32.mrf.mxu0
  %652 = vmatprep.mubr.bf16.mxu0 %v463
  %653 = vmatmul.mubr.bf16.gmra.mxu0 %v300
  %v654 = vpop.f32.mrf.mxu0
  %v655 = vadd.f32 0.0, %v654
  %v656 = vpop.f32.mrf.mxu0
  %v657 = vpop.f32.mrf.mxu0
  %v658 = vadd.f32 0.0, %v657
  %v659 = vpop.f32.mrf.mxu0
  %660 = vmatprep.mubr.bf16.mxu0 %v466
  %661 = vmatmul.mubr.bf16.gmra.mxu0 %v302
  %v662 = vpop.f32.mrf.mxu0
  %v663 = vadd.f32 0.0, %v662
  %v664 = vpop.f32.mrf.mxu0
  %v665 = vpop.f32.mrf.mxu0
  %v666 = vadd.f32 0.0, %v665
  %v667 = vpop.f32.mrf.mxu0
  %668 = vmatprep.mubr.bf16.mxu0 %v469
  %669 = vmatmul.mubr.bf16.gmra.mxu0 %v304
  %v670 = vpop.f32.mrf.mxu0
  %v671 = vadd.f32 0.0, %v670
  %v672 = vpop.f32.mrf.mxu0
  %v673 = vpop.f32.mrf.mxu0
  %v674 = vadd.f32 0.0, %v673
  %v675 = vpop.f32.mrf.mxu0
  %676 = vmatprep.mubr.bf16.mxu0 %v472
  %677 = vmatmul.mubr.bf16.gmra.mxu0 %v306
  %v678 = vpop.f32.mrf.mxu0
  %v679 = vadd.f32 0.0, %v678
  %v680 = vpop.f32.mrf.mxu0
  %v681 = vpop.f32.mrf.mxu0
  %v682 = vadd.f32 0.0, %v681
  %v683 = vpop.f32.mrf.mxu0
  %684 = vmatprep.mubr.bf16.mxu0 %v475
  %685 = vmatmul.mubr.bf16.gmra.mxu0 %v308
  %v686 = vpop.f32.mrf.mxu0
  %v687 = vadd.f32 0.0, %v686
  %v688 = vpop.f32.mrf.mxu0
  %v689 = vpop.f32.mrf.mxu0
  %v690 = vadd.f32 0.0, %v689
  %v691 = vpop.f32.mrf.mxu0
  %692 = vmatprep.mubr.bf16.mxu0 %v478
  %693 = vmatmul.mubr.bf16.gmra.mxu0 %v310
  %v694 = vpop.f32.mrf.mxu0
  %v695 = vadd.f32 0.0, %v694
  %v696 = vpop.f32.mrf.mxu0
  %v697 = vpop.f32.mrf.mxu0
  %v698 = vadd.f32 0.0, %v697
  %v699 = vpop.f32.mrf.mxu0
  %700 = vmatprep.mubr.bf16.mxu0 %v481
  %701 = vmatmul.mubr.bf16.gmra.mxu0 %v312
  %v702 = vpop.f32.mrf.mxu0
  %v703 = vadd.f32 0.0, %v702
  %v704 = vpop.f32.mrf.mxu0
  %v705 = vpop.f32.mrf.mxu0
  %v706 = vadd.f32 0.0, %v705
  %v707 = vpop.f32.mrf.mxu0
  %708 = vmatprep.mubr.bf16.mxu0 %v484
  %709 = vmatmul.mubr.bf16.gmra.mxu0 %v314
  %v710 = vpop.f32.mrf.mxu0
  %v711 = vadd.f32 0.0, %v710
  %v712 = vpop.f32.mrf.mxu0
  %v713 = vpop.f32.mrf.mxu0
  %v714 = vadd.f32 0.0, %v713
  %v715 = vpop.f32.mrf.mxu0
  %716 = vmatprep.mubr.bf16.mxu0 %v487
  %717 = vmatmul.mubr.bf16.gmra.mxu0 %v316
  %v718 = vpop.f32.mrf.mxu0
  %v719 = vadd.f32 0.0, %v718
  %v720 = vpop.f32.mrf.mxu0
  %v721 = vpop.f32.mrf.mxu0
  %v722 = vadd.f32 0.0, %v721
  %v723 = vpop.f32.mrf.mxu0
  %724 = vmatprep.mubr.bf16.mxu0 %v490
  %725 = vmatmul.mubr.bf16.gmra.mxu0 %v318
  %v726 = vpop.f32.mrf.mxu0
  %v727 = vadd.f32 0.0, %v726
  %v728 = vpop.f32.mrf.mxu0
  %v729 = vpop.f32.mrf.mxu0
  %v730 = vadd.f32 0.0, %v729
  %v731 = vpop.f32.mrf.mxu0
  %732 = vmatprep.mubr.bf16.mxu0 %v493
  %733 = vmatmul.mubr.bf16.gmra.mxu0 %v320
  %v734 = vpop.f32.mrf.mxu0
  %v735 = vadd.f32 0.0, %v734
  %v736 = vpop.f32.mrf.mxu0
  %v737 = vpop.f32.mrf.mxu0
  %v738 = vadd.f32 0.0, %v737
  %v739 = vpop.f32.mrf.mxu0
  %740 = vmatprep.mubr.bf16.mxu0 %v496
  %741 = vmatmul.mubr.bf16.gmra.mxu0 %v322
  %v742 = vpop.f32.mrf.mxu0
  %v743 = vadd.f32 0.0, %v742
  %v744 = vpop.f32.mrf.mxu0
  %v745 = vpop.f32.mrf.mxu0
  %v746 = vadd.f32 0.0, %v745
  %v747 = vpop.f32.mrf.mxu0
  %748 = vmatprep.mubr.bf16.mxu0 %v499
  %749 = vmatmul.mubr.bf16.gmra.mxu0 %v324
  %v750 = vpop.f32.mrf.mxu0
  %v751 = vadd.f32 0.0, %v750
  %v752 = vpop.f32.mrf.mxu0
  %v753 = vpop.f32.mrf.mxu0
  %v754 = vadd.f32 0.0, %v753
  %v755 = vpop.f32.mrf.mxu0
  %756 = vmatprep.mubr.bf16.mxu0 %v502
  %757 = vmatmul.mubr.bf16.gmra.mxu0 %v326
  %v758 = vpop.f32.mrf.mxu0
  %v759 = vadd.f32 0.0, %v758
  %v760 = vpop.f32.mrf.mxu0
  %v761 = vpop.f32.mrf.mxu0
  %v762 = vadd.f32 0.0, %v761
  %v763 = vpop.f32.mrf.mxu0
  %764 = vdwg.mxu0
  %v765 = vadd.f32 %v543, %v546
  %v766 = vadd.f32 %v765, %v551
  %v767 = vadd.f32 %v766, %v554
  %v768 = vadd.f32 %v767, %v559
  %v769 = vadd.f32 %v768, %v562
  %v770 = vadd.f32 %v769, %v567
  %v771 = vadd.f32 %v770, %v570
  %v772 = vadd.f32 %v771, %v575
  %v773 = vadd.f32 %v772, %v578
  %v774 = vadd.f32 %v773, %v583
  %v775 = vadd.f32 %v774, %v586
  %v776 = vadd.f32 %v775, %v591
  %v777 = vadd.f32 %v776, %v594
  %v778 = vadd.f32 %v777, %v599
  %v779 = vadd.f32 %v778, %v602
  %v780 = vadd.f32 %v779, %v607
  %v781 = vadd.f32 %v780, %v610
  %v782 = vadd.f32 %v781, %v615
  %v783 = vadd.f32 %v782, %v618
  %v784 = vadd.f32 %v783, %v623
  %v785 = vadd.f32 %v784, %v626
  %v786 = vadd.f32 %v785, %v631
  %v787 = vadd.f32 %v786, %v634
  %v788 = vadd.f32 %v787, %v639
  %v789 = vadd.f32 %v788, %v642
  %v790 = vadd.f32 %v789, %v647
  %v791 = vadd.f32 %v790, %v650
  %v792 = vadd.f32 %v791, %v655
  %v793 = vadd.f32 %v792, %v658
  %v794 = vadd.f32 %v793, %v663
  %v795 = vadd.f32 %v794, %v666
  %v796 = vadd.f32 %v795, %v671
  %v797 = vadd.f32 %v796, %v674
  %v798 = vadd.f32 %v797, %v679
  %v799 = vadd.f32 %v798, %v682
  %v800 = vadd.f32 %v799, %v687
  %v801 = vadd.f32 %v800, %v690
  %v802 = vadd.f32 %v801, %v695
  %v803 = vadd.f32 %v802, %v698
  %v804 = vadd.f32 %v803, %v703
  %v805 = vadd.f32 %v804, %v706
  %v806 = vadd.f32 %v805, %v711
  %v807 = vadd.f32 %v806, %v714
  %v808 = vadd.f32 %v807, %v719
  %v809 = vadd.f32 %v808, %v722
  %v810 = vadd.f32 %v809, %v727
  %v811 = vadd.f32 %v810, %v730
  %v812 = vadd.f32 %v811, %v735
  %v813 = vadd.f32 %v812, %v738
  %v814 = vadd.f32 %v813, %v743
  %v815 = vadd.f32 %v814, %v746
  %v816 = vadd.f32 %v815, %v751
  %v817 = vadd.f32 %v816, %v754
  %v818 = vadd.f32 %v817, %v759
  %v819 = vadd.f32 %v818, %v762
  %v820 = vrot.slane %v819, 4
  %v821 = vadd.f32 %v819, %v820
  %v822 = vrot.slane %v821, 2
  %v823 = vadd.f32 %v821, %v822
  %v824 = vrot.slane %v823, 1
  %v825 = vadd.f32 %v823, %v824
  %v826 = vmul.f32 %v825, 0.0023809525
  %v827 = vmul.f32 %v543, %v543
  %v828 = vmul.f32 %v546, %v546
  %v829 = vmul.f32 %v551, %v551
  %v830 = vmul.f32 %v554, %v554
  %v831 = vmul.f32 %v559, %v559
  %v832 = vmul.f32 %v562, %v562
  %v833 = vmul.f32 %v567, %v567
  %v834 = vmul.f32 %v570, %v570
  %v835 = vmul.f32 %v575, %v575
  %v836 = vmul.f32 %v578, %v578
  %v837 = vmul.f32 %v583, %v583
  %v838 = vmul.f32 %v586, %v586
  %v839 = vmul.f32 %v591, %v591
  %v840 = vmul.f32 %v594, %v594
  %v841 = vmul.f32 %v599, %v599
  %v842 = vmul.f32 %v602, %v602
  %v843 = vmul.f32 %v607, %v607
  %v844 = vmul.f32 %v610, %v610
  %v845 = vmul.f32 %v615, %v615
  %v846 = vmul.f32 %v618, %v618
  %v847 = vmul.f32 %v623, %v623
  %v848 = vmul.f32 %v626, %v626
  %v849 = vmul.f32 %v631, %v631
  %v850 = vmul.f32 %v634, %v634
  %v851 = vmul.f32 %v639, %v639
  %v852 = vmul.f32 %v642, %v642
  %v853 = vmul.f32 %v647, %v647
  %v854 = vmul.f32 %v650, %v650
  %v855 = vmul.f32 %v655, %v655
  %v856 = vmul.f32 %v658, %v658
  %v857 = vmul.f32 %v663, %v663
  %v858 = vmul.f32 %v666, %v666
  %v859 = vmul.f32 %v671, %v671
  %v860 = vmul.f32 %v674, %v674
  %v861 = vmul.f32 %v679, %v679
  %v862 = vmul.f32 %v682, %v682
  %v863 = vmul.f32 %v687, %v687
  %v864 = vmul.f32 %v690, %v690
  %v865 = vmul.f32 %v695, %v695
  %v866 = vmul.f32 %v698, %v698
  %v867 = vmul.f32 %v703, %v703
  %v868 = vmul.f32 %v706, %v706
  %v869 = vmul.f32 %v711, %v711
  %v870 = vmul.f32 %v714, %v714
  %v871 = vmul.f32 %v719, %v719
  %v872 = vmul.f32 %v722, %v722
  %v873 = vmul.f32 %v727, %v727
  %v874 = vmul.f32 %v730, %v730
  %v875 = vmul.f32 %v735, %v735
  %v876 = vmul.f32 %v738, %v738
  %v877 = vmul.f32 %v743, %v743
  %v878 = vmul.f32 %v746, %v746
  %v879 = vmul.f32 %v751, %v751
  %v880 = vmul.f32 %v754, %v754
  %v881 = vmul.f32 %v759, %v759
  %v882 = vmul.f32 %v762, %v762
  %v883 = vadd.f32 %v827, %v828
  %v884 = vadd.f32 %v883, %v829
  %v885 = vadd.f32 %v884, %v830
  %v886 = vadd.f32 %v885, %v831
  %v887 = vadd.f32 %v886, %v832
  %v888 = vadd.f32 %v887, %v833
  %v889 = vadd.f32 %v888, %v834
  %v890 = vadd.f32 %v889, %v835
  %v891 = vadd.f32 %v890, %v836
  %v892 = vadd.f32 %v891, %v837
  %v893 = vadd.f32 %v892, %v838
  %v894 = vadd.f32 %v893, %v839
  %v895 = vadd.f32 %v894, %v840
  %v896 = vadd.f32 %v895, %v841
  %v897 = vadd.f32 %v896, %v842
  %v898 = vadd.f32 %v897, %v843
  %v899 = vadd.f32 %v898, %v844
  %v900 = vadd.f32 %v899, %v845
  %v901 = vadd.f32 %v900, %v846
  %v902 = vadd.f32 %v901, %v847
  %v903 = vadd.f32 %v902, %v848
  %v904 = vadd.f32 %v903, %v849
  %v905 = vadd.f32 %v904, %v850
  %v906 = vadd.f32 %v905, %v851
  %v907 = vadd.f32 %v906, %v852
  %v908 = vadd.f32 %v907, %v853
  %v909 = vadd.f32 %v908, %v854
  %v910 = vadd.f32 %v909, %v855
  %v911 = vadd.f32 %v910, %v856
  %v912 = vadd.f32 %v911, %v857
  %v913 = vadd.f32 %v912, %v858
  %v914 = vadd.f32 %v913, %v859
  %v915 = vadd.f32 %v914, %v860
  %v916 = vadd.f32 %v915, %v861
  %v917 = vadd.f32 %v916, %v862
  %v918 = vadd.f32 %v917, %v863
  %v919 = vadd.f32 %v918, %v864
  %v920 = vadd.f32 %v919, %v865
  %v921 = vadd.f32 %v920, %v866
  %v922 = vadd.f32 %v921, %v867
  %v923 = vadd.f32 %v922, %v868
  %v924 = vadd.f32 %v923, %v869
  %v925 = vadd.f32 %v924, %v870
  %v926 = vadd.f32 %v925, %v871
  %v927 = vadd.f32 %v926, %v872
  %v928 = vadd.f32 %v927, %v873
  %v929 = vadd.f32 %v928, %v874
  %v930 = vadd.f32 %v929, %v875
  %v931 = vadd.f32 %v930, %v876
  %v932 = vadd.f32 %v931, %v877
  %v933 = vadd.f32 %v932, %v878
  %v934 = vadd.f32 %v933, %v879
  %v935 = vadd.f32 %v934, %v880
  %v936 = vadd.f32 %v935, %v881
  %v937 = vadd.f32 %v936, %v882
  %v938 = vrot.slane %v937, 4
  %v939 = vadd.f32 %v937, %v938
  %v940 = vrot.slane %v939, 2
  %v941 = vadd.f32 %v939, %v940
  %v942 = vrot.slane %v941, 1
  %v943 = vadd.f32 %v941, %v942
  %v944 = vmul.f32 %v943, 0.0023809525
  %v945 = vmul.f32 %v826, %v826
  %v946 = vsub.f32 %v944, %v945
  %v947 = vmax.f32 %v946, 0.0
  %v948 = vadd.f32 %v947, 1e-05
  %v949 = vrsqrt.pop %v948
  %v950 = vld [vmem:[%s2] sm:$0x1]
  %v951 = vmul.f32 %v949, %v950
  %v952 = vld [vmem:[%s3] sm:$0x1]
  %v953 = vmul.f32 %v826, %v951
  %v954 = vsub.f32 %v952, %v953
  %v955 = vlaneseq
  %v956 = vshrl.u32 %v955, 7
  %v957 = vsub.s32 0, %v956
  %v958 = vrot.slane %v951, %v957
  %v959 = vmul.f32 %v543, %v958
  %v960 = vmul.f32 %v546, %v958
  %v961 = vmul.f32 %v551, %v958
  %v962 = vmul.f32 %v554, %v958
  %v963 = vmul.f32 %v559, %v958
  %v964 = vmul.f32 %v562, %v958
  %v965 = vmul.f32 %v567, %v958
  %v966 = vmul.f32 %v570, %v958
  %v967 = vmul.f32 %v575, %v958
  %v968 = vmul.f32 %v578, %v958
  %v969 = vmul.f32 %v583, %v958
  %v970 = vmul.f32 %v586, %v958
  %v971 = vmul.f32 %v591, %v958
  %v972 = vmul.f32 %v594, %v958
  %v973 = vmul.f32 %v599, %v958
  %v974 = vmul.f32 %v602, %v958
  %v975 = vmul.f32 %v607, %v958
  %v976 = vmul.f32 %v610, %v958
  %v977 = vmul.f32 %v615, %v958
  %v978 = vmul.f32 %v618, %v958
  %v979 = vmul.f32 %v623, %v958
  %v980 = vmul.f32 %v626, %v958
  %v981 = vmul.f32 %v631, %v958
  %v982 = vmul.f32 %v634, %v958
  %v983 = vmul.f32 %v639, %v958
  %v984 = vmul.f32 %v642, %v958
  %v985 = vmul.f32 %v647, %v958
  %v986 = vmul.f32 %v650, %v958
  %v987 = vmul.f32 %v655, %v958
  %v988 = vmul.f32 %v658, %v958
  %v989 = vmul.f32 %v663, %v958
  %v990 = vmul.f32 %v666, %v958
  %v991 = vmul.f32 %v671, %v958
  %v992 = vmul.f32 %v674, %v958
  %v993 = vmul.f32 %v679, %v958
  %v994 = vmul.f32 %v682, %v958
  %v995 = vmul.f32 %v687, %v958
  %v996 = vmul.f32 %v690, %v958
  %v997 = vmul.f32 %v695, %v958
  %v998 = vmul.f32 %v698, %v958
  %v999 = vmul.f32 %v703, %v958
  %v1000 = vmul.f32 %v706, %v958
  %v1001 = vmul.f32 %v711, %v958
  %v1002 = vmul.f32 %v714, %v958
  %v1003 = vmul.f32 %v719, %v958
  %v1004 = vmul.f32 %v722, %v958
  %v1005 = vmul.f32 %v727, %v958
  %v1006 = vmul.f32 %v730, %v958
  %v1007 = vmul.f32 %v735, %v958
  %v1008 = vmul.f32 %v738, %v958
  %v1009 = vmul.f32 %v743, %v958
  %v1010 = vmul.f32 %v746, %v958
  %v1011 = vmul.f32 %v751, %v958
  %v1012 = vmul.f32 %v754, %v958
  %v1013 = vmul.f32 %v759, %v958
  %v1014 = vmul.f32 %v762, %v958
  %v1016 = vlaneseq
  %v1017 = vshrl.u32 %v1016, 7
  %v1018 = vsub.s32 0, %v1017
  %v1019 = vrot.slane %v954, %v1018
  %v1021 = vadd.f32 %v959, %v1019
  %v1022 = vadd.f32 %v960, %v1019
  %v1023 = vadd.f32 %v961, %v1019
  %v1024 = vadd.f32 %v962, %v1019
  %v1025 = vadd.f32 %v963, %v1019
  %v1026 = vadd.f32 %v964, %v1019
  %v1027 = vadd.f32 %v965, %v1019
  %v1028 = vadd.f32 %v966, %v1019
  %v1029 = vadd.f32 %v967, %v1019
  %v1030 = vadd.f32 %v968, %v1019
  %v1031 = vadd.f32 %v969, %v1019
  %v1032 = vadd.f32 %v970, %v1019
  %v1033 = vadd.f32 %v971, %v1019
  %v1034 = vadd.f32 %v972, %v1019
  %v1035 = vadd.f32 %v973, %v1019
  %v1036 = vadd.f32 %v974, %v1019
  %v1037 = vadd.f32 %v975, %v1019
  %v1038 = vadd.f32 %v976, %v1019
  %v1039 = vadd.f32 %v977, %v1019
  %v1040 = vadd.f32 %v978, %v1019
  %v1041 = vadd.f32 %v979, %v1019
  %v1042 = vadd.f32 %v980, %v1019
  %v1043 = vadd.f32 %v981, %v1019
  %v1044 = vadd.f32 %v982, %v1019
  %v1045 = vadd.f32 %v983, %v1019
  %v1046 = vadd.f32 %v984, %v1019
  %v1047 = vadd.f32 %v985, %v1019
  %v1048 = vadd.f32 %v986, %v1019
  %v1049 = vadd.f32 %v987, %v1019
  %v1050 = vadd.f32 %v988, %v1019
  %v1051 = vadd.f32 %v989, %v1019
  %v1052 = vadd.f32 %v990, %v1019
  %v1053 = vadd.f32 %v991, %v1019
  %v1054 = vadd.f32 %v992, %v1019
  %v1055 = vadd.f32 %v993, %v1019
  %v1056 = vadd.f32 %v994, %v1019
  %v1057 = vadd.f32 %v995, %v1019
  %v1058 = vadd.f32 %v996, %v1019
  %v1059 = vadd.f32 %v997, %v1019
  %v1060 = vadd.f32 %v998, %v1019
  %v1061 = vadd.f32 %v999, %v1019
  %v1062 = vadd.f32 %v1000, %v1019
  %v1063 = vadd.f32 %v1001, %v1019
  %v1064 = vadd.f32 %v1002, %v1019
  %v1065 = vadd.f32 %v1003, %v1019
  %v1066 = vadd.f32 %v1004, %v1019
  %v1067 = vadd.f32 %v1005, %v1019
  %v1068 = vadd.f32 %v1006, %v1019
  %v1069 = vadd.f32 %v1007, %v1019
  %v1070 = vadd.f32 %v1008, %v1019
  %v1071 = vadd.f32 %v1009, %v1019
  %v1072 = vadd.f32 %v1010, %v1019
  %v1073 = vadd.f32 %v1011, %v1019
  %v1074 = vadd.f32 %v1012, %v1019
  %v1075 = vadd.f32 %v1013, %v1019
  %v1076 = vadd.f32 %v1014, %v1019
  %v1077 = vmax.f32 %v1021, 0.0
  %v1078 = vmax.f32 %v1022, 0.0
  %v1079 = vmax.f32 %v1023, 0.0
  %v1080 = vmax.f32 %v1024, 0.0
  %v1081 = vmax.f32 %v1025, 0.0
  %v1082 = vmax.f32 %v1026, 0.0
  %v1083 = vmax.f32 %v1027, 0.0
  %v1084 = vmax.f32 %v1028, 0.0
  %v1085 = vmax.f32 %v1029, 0.0
  %v1086 = vmax.f32 %v1030, 0.0
  %v1087 = vmax.f32 %v1031, 0.0
  %v1088 = vmax.f32 %v1032, 0.0
  %v1089 = vmax.f32 %v1033, 0.0
  %v1090 = vmax.f32 %v1034, 0.0
  %v1091 = vmax.f32 %v1035, 0.0
  %v1092 = vmax.f32 %v1036, 0.0
  %v1093 = vmax.f32 %v1037, 0.0
  %v1094 = vmax.f32 %v1038, 0.0
  %v1095 = vmax.f32 %v1039, 0.0
  %v1096 = vmax.f32 %v1040, 0.0
  %v1097 = vmax.f32 %v1041, 0.0
  %v1098 = vmax.f32 %v1042, 0.0
  %v1099 = vmax.f32 %v1043, 0.0
  %v1100 = vmax.f32 %v1044, 0.0
  %v1101 = vmax.f32 %v1045, 0.0
  %v1102 = vmax.f32 %v1046, 0.0
  %v1103 = vmax.f32 %v1047, 0.0
  %v1104 = vmax.f32 %v1048, 0.0
  %v1105 = vmax.f32 %v1049, 0.0
  %v1106 = vmax.f32 %v1050, 0.0
  %v1107 = vmax.f32 %v1051, 0.0
  %v1108 = vmax.f32 %v1052, 0.0
  %v1109 = vmax.f32 %v1053, 0.0
  %v1110 = vmax.f32 %v1054, 0.0
  %v1111 = vmax.f32 %v1055, 0.0
  %v1112 = vmax.f32 %v1056, 0.0
  %v1113 = vmax.f32 %v1057, 0.0
  %v1114 = vmax.f32 %v1058, 0.0
  %v1115 = vmax.f32 %v1059, 0.0
  %v1116 = vmax.f32 %v1060, 0.0
  %v1117 = vmax.f32 %v1061, 0.0
  %v1118 = vmax.f32 %v1062, 0.0
  %v1119 = vmax.f32 %v1063, 0.0
  %v1120 = vmax.f32 %v1064, 0.0
  %v1121 = vmax.f32 %v1065, 0.0
  %v1122 = vmax.f32 %v1066, 0.0
  %v1123 = vmax.f32 %v1067, 0.0
  %v1124 = vmax.f32 %v1068, 0.0
  %v1125 = vmax.f32 %v1069, 0.0
  %v1126 = vmax.f32 %v1070, 0.0
  %v1127 = vmax.f32 %v1071, 0.0
  %v1128 = vmax.f32 %v1072, 0.0
  %v1129 = vmax.f32 %v1073, 0.0
  %v1130 = vmax.f32 %v1074, 0.0
  %v1131 = vmax.f32 %v1075, 0.0
  %v1132 = vmax.f32 %v1076, 0.0
  %v1133 = vlaneseq
  %v1134 = vshrl.u32 %v1133, 7
  %v1135 = vadd.s32 %v1134, 8
  %v1136 = vadd.s32 %v1134, 16
  %v1137 = vadd.s32 %v1134, 24
  %v1138 = vadd.s32 %v1134, 32
  %v1139 = vadd.s32 %v1134, 40
  %v1140 = vadd.s32 %v1134, 48
  %v1141 = vadd.s32 %v1134, 56
  %v1142 = vadd.s32 %v1134, 64
  %v1143 = vadd.s32 %v1134, 72
  %v1144 = vadd.s32 %v1134, 80
  %v1145 = vadd.s32 %v1134, 88
  %v1146 = vadd.s32 %v1134, 96
  %v1147 = vadd.s32 %v1134, 104
  %v1148 = vadd.s32 %v1134, 112
  %v1149 = vadd.s32 %v1134, 120
  %v1150 = vadd.s32 %v1134, 128
  %v1151 = vadd.s32 %v1134, 136
  %v1152 = vadd.s32 %v1134, 144
  %v1153 = vadd.s32 %v1134, 152
  %v1154 = vadd.s32 %v1134, 160
  %v1155 = vadd.s32 %v1134, 168
  %v1156 = vadd.s32 %v1134, 176
  %v1157 = vadd.s32 %v1134, 184
  %v1158 = vadd.s32 %v1134, 192
  %v1159 = vadd.s32 %v1134, 200
  %v1160 = vadd.s32 %v1134, 208
  %v1161 = vadd.s32 %v1134, 216
  %v1162 = vadd.s32 %v1134, 224
  %v1163 = vadd.s32 %v1134, 232
  %v1164 = vadd.s32 %v1134, 240
  %v1165 = vadd.s32 %v1134, 248
  %v1166 = vadd.s32 %v1134, 256
  %v1167 = vadd.s32 %v1134, 264
  %v1168 = vadd.s32 %v1134, 272
  %v1169 = vadd.s32 %v1134, 280
  %v1170 = vadd.s32 %v1134, 288
  %v1171 = vadd.s32 %v1134, 296
  %v1172 = vadd.s32 %v1134, 304
  %v1173 = vadd.s32 %v1134, 312
  %v1174 = vadd.s32 %v1134, 320
  %v1175 = vadd.s32 %v1134, 328
  %v1176 = vadd.s32 %v1134, 336
  %v1177 = vadd.s32 %v1134, 344
  %v1178 = vadd.s32 %v1134, 352
  %v1179 = vadd.s32 %v1134, 360
  %v1180 = vadd.s32 %v1134, 368
  %v1181 = vadd.s32 %v1134, 376
  %v1182 = vadd.s32 %v1134, 384
  %v1183 = vadd.s32 %v1134, 392
  %v1184 = vadd.s32 %v1134, 400
  %v1185 = vadd.s32 %v1134, 408
  %v1186 = vadd.s32 %v1134, 416
  %v1187 = vadd.s32 %v1134, 424
  %v1188 = vadd.s32 %v1134, 432
  %v1189 = vadd.s32 %v1134, 440
  %vm1190 = vcmp.lt.s32.totalorder %v1134, 0
  %v1191 = vsub.s32 0, %v1134
  %v1192 = vsel %vm1190, %v1191, %v1134
  %v1193 = vshrl.u32 %v1192, 4
  %v1194 = vand.u32 %v1192, 15
  %v1195 = vsub.s32 0, %v1194
  %v1196 = vsel %vm1190, %v1195, %v1194
  %vm1197 = vcmp.lt.s32.totalorder %v1135, 0
  %v1198 = vsub.s32 0, %v1135
  %v1199 = vsel %vm1197, %v1198, %v1135
  %v1200 = vshrl.u32 %v1199, 4
  %v1201 = vand.u32 %v1199, 15
  %v1202 = vsub.s32 0, %v1201
  %v1203 = vsel %vm1197, %v1202, %v1201
  %vm1204 = vcmp.lt.s32.totalorder %v1136, 0
  %v1205 = vsub.s32 0, %v1136
  %v1206 = vsel %vm1204, %v1205, %v1136
  %v1207 = vshrl.u32 %v1206, 4
  %v1208 = vand.u32 %v1206, 15
  %v1209 = vsub.s32 0, %v1208
  %v1210 = vsel %vm1204, %v1209, %v1208
  %vm1211 = vcmp.lt.s32.totalorder %v1137, 0
  %v1212 = vsub.s32 0, %v1137
  %v1213 = vsel %vm1211, %v1212, %v1137
  %v1214 = vshrl.u32 %v1213, 4
  %v1215 = vand.u32 %v1213, 15
  %v1216 = vsub.s32 0, %v1215
  %v1217 = vsel %vm1211, %v1216, %v1215
  %vm1218 = vcmp.lt.s32.totalorder %v1138, 0
  %v1219 = vsub.s32 0, %v1138
  %v1220 = vsel %vm1218, %v1219, %v1138
  %v1221 = vshrl.u32 %v1220, 4
  %v1222 = vand.u32 %v1220, 15
  %v1223 = vsub.s32 0, %v1222
  %v1224 = vsel %vm1218, %v1223, %v1222
  %vm1225 = vcmp.lt.s32.totalorder %v1139, 0
  %v1226 = vsub.s32 0, %v1139
  %v1227 = vsel %vm1225, %v1226, %v1139
  %v1228 = vshrl.u32 %v1227, 4
  %v1229 = vand.u32 %v1227, 15
  %v1230 = vsub.s32 0, %v1229
  %v1231 = vsel %vm1225, %v1230, %v1229
  %vm1232 = vcmp.lt.s32.totalorder %v1140, 0
  %v1233 = vsub.s32 0, %v1140
  %v1234 = vsel %vm1232, %v1233, %v1140
  %v1235 = vshrl.u32 %v1234, 4
  %v1236 = vand.u32 %v1234, 15
  %v1237 = vsub.s32 0, %v1236
  %v1238 = vsel %vm1232, %v1237, %v1236
  %vm1239 = vcmp.lt.s32.totalorder %v1141, 0
  %v1240 = vsub.s32 0, %v1141
  %v1241 = vsel %vm1239, %v1240, %v1141
  %v1242 = vshrl.u32 %v1241, 4
  %v1243 = vand.u32 %v1241, 15
  %v1244 = vsub.s32 0, %v1243
  %v1245 = vsel %vm1239, %v1244, %v1243
  %vm1246 = vcmp.lt.s32.totalorder %v1142, 0
  %v1247 = vsub.s32 0, %v1142
  %v1248 = vsel %vm1246, %v1247, %v1142
  %v1249 = vshrl.u32 %v1248, 4
  %v1250 = vand.u32 %v1248, 15
  %v1251 = vsub.s32 0, %v1250
  %v1252 = vsel %vm1246, %v1251, %v1250
  %vm1253 = vcmp.lt.s32.totalorder %v1143, 0
  %v1254 = vsub.s32 0, %v1143
  %v1255 = vsel %vm1253, %v1254, %v1143
  %v1256 = vshrl.u32 %v1255, 4
  %v1257 = vand.u32 %v1255, 15
  %v1258 = vsub.s32 0, %v1257
  %v1259 = vsel %vm1253, %v1258, %v1257
  %vm1260 = vcmp.lt.s32.totalorder %v1144, 0
  %v1261 = vsub.s32 0, %v1144
  %v1262 = vsel %vm1260, %v1261, %v1144
  %v1263 = vshrl.u32 %v1262, 4
  %v1264 = vand.u32 %v1262, 15
  %v1265 = vsub.s32 0, %v1264
  %v1266 = vsel %vm1260, %v1265, %v1264
  %vm1267 = vcmp.lt.s32.totalorder %v1145, 0
  %v1268 = vsub.s32 0, %v1145
  %v1269 = vsel %vm1267, %v1268, %v1145
  %v1270 = vshrl.u32 %v1269, 4
  %v1271 = vand.u32 %v1269, 15
  %v1272 = vsub.s32 0, %v1271
  %v1273 = vsel %vm1267, %v1272, %v1271
  %vm1274 = vcmp.lt.s32.totalorder %v1146, 0
  %v1275 = vsub.s32 0, %v1146
  %v1276 = vsel %vm1274, %v1275, %v1146
  %v1277 = vshrl.u32 %v1276, 4
  %v1278 = vand.u32 %v1276, 15
  %v1279 = vsub.s32 0, %v1278
  %v1280 = vsel %vm1274, %v1279, %v1278
  %vm1281 = vcmp.lt.s32.totalorder %v1147, 0
  %v1282 = vsub.s32 0, %v1147
  %v1283 = vsel %vm1281, %v1282, %v1147
  %v1284 = vshrl.u32 %v1283, 4
  %v1285 = vand.u32 %v1283, 15
  %v1286 = vsub.s32 0, %v1285
  %v1287 = vsel %vm1281, %v1286, %v1285
  %vm1288 = vcmp.lt.s32.totalorder %v1148, 0
  %v1289 = vsub.s32 0, %v1148
  %v1290 = vsel %vm1288, %v1289, %v1148
  %v1291 = vshrl.u32 %v1290, 4
  %v1292 = vand.u32 %v1290, 15
  %v1293 = vsub.s32 0, %v1292
  %v1294 = vsel %vm1288, %v1293, %v1292
  %vm1295 = vcmp.lt.s32.totalorder %v1149, 0
  %v1296 = vsub.s32 0, %v1149
  %v1297 = vsel %vm1295, %v1296, %v1149
  %v1298 = vshrl.u32 %v1297, 4
  %v1299 = vand.u32 %v1297, 15
  %v1300 = vsub.s32 0, %v1299
  %v1301 = vsel %vm1295, %v1300, %v1299
  %vm1302 = vcmp.lt.s32.totalorder %v1150, 0
  %v1303 = vsub.s32 0, %v1150
  %v1304 = vsel %vm1302, %v1303, %v1150
  %v1305 = vshrl.u32 %v1304, 4
  %v1306 = vand.u32 %v1304, 15
  %v1307 = vsub.s32 0, %v1306
  %v1308 = vsel %vm1302, %v1307, %v1306
  %vm1309 = vcmp.lt.s32.totalorder %v1151, 0
  %v1310 = vsub.s32 0, %v1151
  %v1311 = vsel %vm1309, %v1310, %v1151
  %v1312 = vshrl.u32 %v1311, 4
  %v1313 = vand.u32 %v1311, 15
  %v1314 = vsub.s32 0, %v1313
  %v1315 = vsel %vm1309, %v1314, %v1313
  %vm1316 = vcmp.lt.s32.totalorder %v1152, 0
  %v1317 = vsub.s32 0, %v1152
  %v1318 = vsel %vm1316, %v1317, %v1152
  %v1319 = vshrl.u32 %v1318, 4
  %v1320 = vand.u32 %v1318, 15
  %v1321 = vsub.s32 0, %v1320
  %v1322 = vsel %vm1316, %v1321, %v1320
  %vm1323 = vcmp.lt.s32.totalorder %v1153, 0
  %v1324 = vsub.s32 0, %v1153
  %v1325 = vsel %vm1323, %v1324, %v1153
  %v1326 = vshrl.u32 %v1325, 4
  %v1327 = vand.u32 %v1325, 15
  %v1328 = vsub.s32 0, %v1327
  %v1329 = vsel %vm1323, %v1328, %v1327
  %vm1330 = vcmp.lt.s32.totalorder %v1154, 0
  %v1331 = vsub.s32 0, %v1154
  %v1332 = vsel %vm1330, %v1331, %v1154
  %v1333 = vshrl.u32 %v1332, 4
  %v1334 = vand.u32 %v1332, 15
  %v1335 = vsub.s32 0, %v1334
  %v1336 = vsel %vm1330, %v1335, %v1334
  %vm1337 = vcmp.lt.s32.totalorder %v1155, 0
  %v1338 = vsub.s32 0, %v1155
  %v1339 = vsel %vm1337, %v1338, %v1155
  %v1340 = vshrl.u32 %v1339, 4
  %v1341 = vand.u32 %v1339, 15
  %v1342 = vsub.s32 0, %v1341
  %v1343 = vsel %vm1337, %v1342, %v1341
  %vm1344 = vcmp.lt.s32.totalorder %v1156, 0
  %v1345 = vsub.s32 0, %v1156
  %v1346 = vsel %vm1344, %v1345, %v1156
  %v1347 = vshrl.u32 %v1346, 4
  %v1348 = vand.u32 %v1346, 15
  %v1349 = vsub.s32 0, %v1348
  %v1350 = vsel %vm1344, %v1349, %v1348
  %vm1351 = vcmp.lt.s32.totalorder %v1157, 0
  %v1352 = vsub.s32 0, %v1157
  %v1353 = vsel %vm1351, %v1352, %v1157
  %v1354 = vshrl.u32 %v1353, 4
  %v1355 = vand.u32 %v1353, 15
  %v1356 = vsub.s32 0, %v1355
  %v1357 = vsel %vm1351, %v1356, %v1355
  %vm1358 = vcmp.lt.s32.totalorder %v1158, 0
  %v1359 = vsub.s32 0, %v1158
  %v1360 = vsel %vm1358, %v1359, %v1158
  %v1361 = vshrl.u32 %v1360, 4
  %v1362 = vand.u32 %v1360, 15
  %v1363 = vsub.s32 0, %v1362
  %v1364 = vsel %vm1358, %v1363, %v1362
  %vm1365 = vcmp.lt.s32.totalorder %v1159, 0
  %v1366 = vsub.s32 0, %v1159
  %v1367 = vsel %vm1365, %v1366, %v1159
  %v1368 = vshrl.u32 %v1367, 4
  %v1369 = vand.u32 %v1367, 15
  %v1370 = vsub.s32 0, %v1369
  %v1371 = vsel %vm1365, %v1370, %v1369
  %vm1372 = vcmp.lt.s32.totalorder %v1160, 0
  %v1373 = vsub.s32 0, %v1160
  %v1374 = vsel %vm1372, %v1373, %v1160
  %v1375 = vshrl.u32 %v1374, 4
  %v1376 = vand.u32 %v1374, 15
  %v1377 = vsub.s32 0, %v1376
  %v1378 = vsel %vm1372, %v1377, %v1376
  %vm1379 = vcmp.lt.s32.totalorder %v1161, 0
  %v1380 = vsub.s32 0, %v1161
  %v1381 = vsel %vm1379, %v1380, %v1161
  %v1382 = vshrl.u32 %v1381, 4
  %v1383 = vand.u32 %v1381, 15
  %v1384 = vsub.s32 0, %v1383
  %v1385 = vsel %vm1379, %v1384, %v1383
  %vm1386 = vcmp.lt.s32.totalorder %v1162, 0
  %v1387 = vsub.s32 0, %v1162
  %v1388 = vsel %vm1386, %v1387, %v1162
  %v1389 = vshrl.u32 %v1388, 4
  %v1390 = vand.u32 %v1388, 15
  %v1391 = vsub.s32 0, %v1390
  %v1392 = vsel %vm1386, %v1391, %v1390
  %vm1393 = vcmp.lt.s32.totalorder %v1163, 0
  %v1394 = vsub.s32 0, %v1163
  %v1395 = vsel %vm1393, %v1394, %v1163
  %v1396 = vshrl.u32 %v1395, 4
  %v1397 = vand.u32 %v1395, 15
  %v1398 = vsub.s32 0, %v1397
  %v1399 = vsel %vm1393, %v1398, %v1397
  %vm1400 = vcmp.lt.s32.totalorder %v1164, 0
  %v1401 = vsub.s32 0, %v1164
  %v1402 = vsel %vm1400, %v1401, %v1164
  %v1403 = vshrl.u32 %v1402, 4
  %v1404 = vand.u32 %v1402, 15
  %v1405 = vsub.s32 0, %v1404
  %v1406 = vsel %vm1400, %v1405, %v1404
  %vm1407 = vcmp.lt.s32.totalorder %v1165, 0
  %v1408 = vsub.s32 0, %v1165
  %v1409 = vsel %vm1407, %v1408, %v1165
  %v1410 = vshrl.u32 %v1409, 4
  %v1411 = vand.u32 %v1409, 15
  %v1412 = vsub.s32 0, %v1411
  %v1413 = vsel %vm1407, %v1412, %v1411
  %vm1414 = vcmp.lt.s32.totalorder %v1166, 0
  %v1415 = vsub.s32 0, %v1166
  %v1416 = vsel %vm1414, %v1415, %v1166
  %v1417 = vshrl.u32 %v1416, 4
  %v1418 = vand.u32 %v1416, 15
  %v1419 = vsub.s32 0, %v1418
  %v1420 = vsel %vm1414, %v1419, %v1418
  %vm1421 = vcmp.lt.s32.totalorder %v1167, 0
  %v1422 = vsub.s32 0, %v1167
  %v1423 = vsel %vm1421, %v1422, %v1167
  %v1424 = vshrl.u32 %v1423, 4
  %v1425 = vand.u32 %v1423, 15
  %v1426 = vsub.s32 0, %v1425
  %v1427 = vsel %vm1421, %v1426, %v1425
  %vm1428 = vcmp.lt.s32.totalorder %v1168, 0
  %v1429 = vsub.s32 0, %v1168
  %v1430 = vsel %vm1428, %v1429, %v1168
  %v1431 = vshrl.u32 %v1430, 4
  %v1432 = vand.u32 %v1430, 15
  %v1433 = vsub.s32 0, %v1432
  %v1434 = vsel %vm1428, %v1433, %v1432
  %vm1435 = vcmp.lt.s32.totalorder %v1169, 0
  %v1436 = vsub.s32 0, %v1169
  %v1437 = vsel %vm1435, %v1436, %v1169
  %v1438 = vshrl.u32 %v1437, 4
  %v1439 = vand.u32 %v1437, 15
  %v1440 = vsub.s32 0, %v1439
  %v1441 = vsel %vm1435, %v1440, %v1439
  %vm1442 = vcmp.lt.s32.totalorder %v1170, 0
  %v1443 = vsub.s32 0, %v1170
  %v1444 = vsel %vm1442, %v1443, %v1170
  %v1445 = vshrl.u32 %v1444, 4
  %v1446 = vand.u32 %v1444, 15
  %v1447 = vsub.s32 0, %v1446
  %v1448 = vsel %vm1442, %v1447, %v1446
  %vm1449 = vcmp.lt.s32.totalorder %v1171, 0
  %v1450 = vsub.s32 0, %v1171
  %v1451 = vsel %vm1449, %v1450, %v1171
  %v1452 = vshrl.u32 %v1451, 4
  %v1453 = vand.u32 %v1451, 15
  %v1454 = vsub.s32 0, %v1453
  %v1455 = vsel %vm1449, %v1454, %v1453
  %vm1456 = vcmp.lt.s32.totalorder %v1172, 0
  %v1457 = vsub.s32 0, %v1172
  %v1458 = vsel %vm1456, %v1457, %v1172
  %v1459 = vshrl.u32 %v1458, 4
  %v1460 = vand.u32 %v1458, 15
  %v1461 = vsub.s32 0, %v1460
  %v1462 = vsel %vm1456, %v1461, %v1460
  %vm1463 = vcmp.lt.s32.totalorder %v1173, 0
  %v1464 = vsub.s32 0, %v1173
  %v1465 = vsel %vm1463, %v1464, %v1173
  %v1466 = vshrl.u32 %v1465, 4
  %v1467 = vand.u32 %v1465, 15
  %v1468 = vsub.s32 0, %v1467
  %v1469 = vsel %vm1463, %v1468, %v1467
  %vm1470 = vcmp.lt.s32.totalorder %v1174, 0
  %v1471 = vsub.s32 0, %v1174
  %v1472 = vsel %vm1470, %v1471, %v1174
  %v1473 = vshrl.u32 %v1472, 4
  %v1474 = vand.u32 %v1472, 15
  %v1475 = vsub.s32 0, %v1474
  %v1476 = vsel %vm1470, %v1475, %v1474
  %vm1477 = vcmp.lt.s32.totalorder %v1175, 0
  %v1478 = vsub.s32 0, %v1175
  %v1479 = vsel %vm1477, %v1478, %v1175
  %v1480 = vshrl.u32 %v1479, 4
  %v1481 = vand.u32 %v1479, 15
  %v1482 = vsub.s32 0, %v1481
  %v1483 = vsel %vm1477, %v1482, %v1481
  %vm1484 = vcmp.lt.s32.totalorder %v1176, 0
  %v1485 = vsub.s32 0, %v1176
  %v1486 = vsel %vm1484, %v1485, %v1176
  %v1487 = vshrl.u32 %v1486, 4
  %v1488 = vand.u32 %v1486, 15
  %v1489 = vsub.s32 0, %v1488
  %v1490 = vsel %vm1484, %v1489, %v1488
  %vm1491 = vcmp.lt.s32.totalorder %v1177, 0
  %v1492 = vsub.s32 0, %v1177
  %v1493 = vsel %vm1491, %v1492, %v1177
  %v1494 = vshrl.u32 %v1493, 4
  %v1495 = vand.u32 %v1493, 15
  %v1496 = vsub.s32 0, %v1495
  %v1497 = vsel %vm1491, %v1496, %v1495
  %vm1498 = vcmp.lt.s32.totalorder %v1178, 0
  %v1499 = vsub.s32 0, %v1178
  %v1500 = vsel %vm1498, %v1499, %v1178
  %v1501 = vshrl.u32 %v1500, 4
  %v1502 = vand.u32 %v1500, 15
  %v1503 = vsub.s32 0, %v1502
  %v1504 = vsel %vm1498, %v1503, %v1502
  %vm1505 = vcmp.lt.s32.totalorder %v1179, 0
  %v1506 = vsub.s32 0, %v1179
  %v1507 = vsel %vm1505, %v1506, %v1179
  %v1508 = vshrl.u32 %v1507, 4
  %v1509 = vand.u32 %v1507, 15
  %v1510 = vsub.s32 0, %v1509
  %v1511 = vsel %vm1505, %v1510, %v1509
  %vm1512 = vcmp.lt.s32.totalorder %v1180, 0
  %v1513 = vsub.s32 0, %v1180
  %v1514 = vsel %vm1512, %v1513, %v1180
  %v1515 = vshrl.u32 %v1514, 4
  %v1516 = vand.u32 %v1514, 15
  %v1517 = vsub.s32 0, %v1516
  %v1518 = vsel %vm1512, %v1517, %v1516
  %vm1519 = vcmp.lt.s32.totalorder %v1181, 0
  %v1520 = vsub.s32 0, %v1181
  %v1521 = vsel %vm1519, %v1520, %v1181
  %v1522 = vshrl.u32 %v1521, 4
  %v1523 = vand.u32 %v1521, 15
  %v1524 = vsub.s32 0, %v1523
  %v1525 = vsel %vm1519, %v1524, %v1523
  %vm1526 = vcmp.lt.s32.totalorder %v1182, 0
  %v1527 = vsub.s32 0, %v1182
  %v1528 = vsel %vm1526, %v1527, %v1182
  %v1529 = vshrl.u32 %v1528, 4
  %v1530 = vand.u32 %v1528, 15
  %v1531 = vsub.s32 0, %v1530
  %v1532 = vsel %vm1526, %v1531, %v1530
  %vm1533 = vcmp.lt.s32.totalorder %v1183, 0
  %v1534 = vsub.s32 0, %v1183
  %v1535 = vsel %vm1533, %v1534, %v1183
  %v1536 = vshrl.u32 %v1535, 4
  %v1537 = vand.u32 %v1535, 15
  %v1538 = vsub.s32 0, %v1537
  %v1539 = vsel %vm1533, %v1538, %v1537
  %vm1540 = vcmp.lt.s32.totalorder %v1184, 0
  %v1541 = vsub.s32 0, %v1184
  %v1542 = vsel %vm1540, %v1541, %v1184
  %v1543 = vshrl.u32 %v1542, 4
  %v1544 = vand.u32 %v1542, 15
  %v1545 = vsub.s32 0, %v1544
  %v1546 = vsel %vm1540, %v1545, %v1544
  %vm1547 = vcmp.lt.s32.totalorder %v1185, 0
  %v1548 = vsub.s32 0, %v1185
  %v1549 = vsel %vm1547, %v1548, %v1185
  %v1550 = vshrl.u32 %v1549, 4
  %v1551 = vand.u32 %v1549, 15
  %v1552 = vsub.s32 0, %v1551
  %v1553 = vsel %vm1547, %v1552, %v1551
  %vm1554 = vcmp.lt.s32.totalorder %v1186, 0
  %v1555 = vsub.s32 0, %v1186
  %v1556 = vsel %vm1554, %v1555, %v1186
  %v1557 = vshrl.u32 %v1556, 4
  %v1558 = vand.u32 %v1556, 15
  %v1559 = vsub.s32 0, %v1558
  %v1560 = vsel %vm1554, %v1559, %v1558
  %vm1561 = vcmp.lt.s32.totalorder %v1187, 0
  %v1562 = vsub.s32 0, %v1187
  %v1563 = vsel %vm1561, %v1562, %v1187
  %v1564 = vshrl.u32 %v1563, 4
  %v1565 = vand.u32 %v1563, 15
  %v1566 = vsub.s32 0, %v1565
  %v1567 = vsel %vm1561, %v1566, %v1565
  %vm1568 = vcmp.lt.s32.totalorder %v1188, 0
  %v1569 = vsub.s32 0, %v1188
  %v1570 = vsel %vm1568, %v1569, %v1188
  %v1571 = vshrl.u32 %v1570, 4
  %v1572 = vand.u32 %v1570, 15
  %v1573 = vsub.s32 0, %v1572
  %v1574 = vsel %vm1568, %v1573, %v1572
  %vm1575 = vcmp.lt.s32.totalorder %v1189, 0
  %v1576 = vsub.s32 0, %v1189
  %v1577 = vsel %vm1575, %v1576, %v1189
  %v1578 = vshrl.u32 %v1577, 4
  %v1579 = vand.u32 %v1577, 15
  %v1580 = vsub.s32 0, %v1579
  %v1581 = vsel %vm1575, %v1580, %v1579
  %vm1582 = vcmp.ne.s32.totalorder %v1196, 0
  %vm1583 = vcmp.ne.s32.totalorder %v1203, 0
  %vm1584 = vcmp.ne.s32.totalorder %v1210, 0
  %vm1585 = vcmp.ne.s32.totalorder %v1217, 0
  %vm1586 = vcmp.ne.s32.totalorder %v1224, 0
  %vm1587 = vcmp.ne.s32.totalorder %v1231, 0
  %vm1588 = vcmp.ne.s32.totalorder %v1238, 0
  %vm1589 = vcmp.ne.s32.totalorder %v1245, 0
  %vm1590 = vcmp.ne.s32.totalorder %v1252, 0
  %vm1591 = vcmp.ne.s32.totalorder %v1259, 0
  %vm1592 = vcmp.ne.s32.totalorder %v1266, 0
  %vm1593 = vcmp.ne.s32.totalorder %v1273, 0
  %vm1594 = vcmp.ne.s32.totalorder %v1280, 0
  %vm1595 = vcmp.ne.s32.totalorder %v1287, 0
  %vm1596 = vcmp.ne.s32.totalorder %v1294, 0
  %vm1597 = vcmp.ne.s32.totalorder %v1301, 0
  %vm1598 = vcmp.ne.s32.totalorder %v1308, 0
  %vm1599 = vcmp.ne.s32.totalorder %v1315, 0
  %vm1600 = vcmp.ne.s32.totalorder %v1322, 0
  %vm1601 = vcmp.ne.s32.totalorder %v1329, 0
  %vm1602 = vcmp.ne.s32.totalorder %v1336, 0
  %vm1603 = vcmp.ne.s32.totalorder %v1343, 0
  %vm1604 = vcmp.ne.s32.totalorder %v1350, 0
  %vm1605 = vcmp.ne.s32.totalorder %v1357, 0
  %vm1606 = vcmp.ne.s32.totalorder %v1364, 0
  %vm1607 = vcmp.ne.s32.totalorder %v1371, 0
  %vm1608 = vcmp.ne.s32.totalorder %v1378, 0
  %vm1609 = vcmp.ne.s32.totalorder %v1385, 0
  %vm1610 = vcmp.ne.s32.totalorder %v1392, 0
  %vm1611 = vcmp.ne.s32.totalorder %v1399, 0
  %vm1612 = vcmp.ne.s32.totalorder %v1406, 0
  %vm1613 = vcmp.ne.s32.totalorder %v1413, 0
  %vm1614 = vcmp.ne.s32.totalorder %v1420, 0
  %vm1615 = vcmp.ne.s32.totalorder %v1427, 0
  %vm1616 = vcmp.ne.s32.totalorder %v1434, 0
  %vm1617 = vcmp.ne.s32.totalorder %v1441, 0
  %vm1618 = vcmp.ne.s32.totalorder %v1448, 0
  %vm1619 = vcmp.ne.s32.totalorder %v1455, 0
  %vm1620 = vcmp.ne.s32.totalorder %v1462, 0
  %vm1621 = vcmp.ne.s32.totalorder %v1469, 0
  %vm1622 = vcmp.ne.s32.totalorder %v1476, 0
  %vm1623 = vcmp.ne.s32.totalorder %v1483, 0
  %vm1624 = vcmp.ne.s32.totalorder %v1490, 0
  %vm1625 = vcmp.ne.s32.totalorder %v1497, 0
  %vm1626 = vcmp.ne.s32.totalorder %v1504, 0
  %vm1627 = vcmp.ne.s32.totalorder %v1511, 0
  %vm1628 = vcmp.ne.s32.totalorder %v1518, 0
  %vm1629 = vcmp.ne.s32.totalorder %v1525, 0
  %vm1630 = vcmp.ne.s32.totalorder %v1532, 0
  %vm1631 = vcmp.ne.s32.totalorder %v1539, 0
  %vm1632 = vcmp.ne.s32.totalorder %v1546, 0
  %vm1633 = vcmp.ne.s32.totalorder %v1553, 0
  %vm1634 = vcmp.ne.s32.totalorder %v1560, 0
  %vm1635 = vcmp.ne.s32.totalorder %v1567, 0
  %vm1636 = vcmp.ne.s32.totalorder %v1574, 0
  %vm1637 = vcmp.ne.s32.totalorder %v1581, 0
  %vm1638 = vcmp.lt.s32.totalorder %v1196, 0
  %vm1639 = vcmp.lt.s32.totalorder %v1203, 0
  %vm1640 = vcmp.lt.s32.totalorder %v1210, 0
  %vm1641 = vcmp.lt.s32.totalorder %v1217, 0
  %vm1642 = vcmp.lt.s32.totalorder %v1224, 0
  %vm1643 = vcmp.lt.s32.totalorder %v1231, 0
  %vm1644 = vcmp.lt.s32.totalorder %v1238, 0
  %vm1645 = vcmp.lt.s32.totalorder %v1245, 0
  %vm1646 = vcmp.lt.s32.totalorder %v1252, 0
  %vm1647 = vcmp.lt.s32.totalorder %v1259, 0
  %vm1648 = vcmp.lt.s32.totalorder %v1266, 0
  %vm1649 = vcmp.lt.s32.totalorder %v1273, 0
  %vm1650 = vcmp.lt.s32.totalorder %v1280, 0
  %vm1651 = vcmp.lt.s32.totalorder %v1287, 0
  %vm1652 = vcmp.lt.s32.totalorder %v1294, 0
  %vm1653 = vcmp.lt.s32.totalorder %v1301, 0
  %vm1654 = vcmp.lt.s32.totalorder %v1308, 0
  %vm1655 = vcmp.lt.s32.totalorder %v1315, 0
  %vm1656 = vcmp.lt.s32.totalorder %v1322, 0
  %vm1657 = vcmp.lt.s32.totalorder %v1329, 0
  %vm1658 = vcmp.lt.s32.totalorder %v1336, 0
  %vm1659 = vcmp.lt.s32.totalorder %v1343, 0
  %vm1660 = vcmp.lt.s32.totalorder %v1350, 0
  %vm1661 = vcmp.lt.s32.totalorder %v1357, 0
  %vm1662 = vcmp.lt.s32.totalorder %v1364, 0
  %vm1663 = vcmp.lt.s32.totalorder %v1371, 0
  %vm1664 = vcmp.lt.s32.totalorder %v1378, 0
  %vm1665 = vcmp.lt.s32.totalorder %v1385, 0
  %vm1666 = vcmp.lt.s32.totalorder %v1392, 0
  %vm1667 = vcmp.lt.s32.totalorder %v1399, 0
  %vm1668 = vcmp.lt.s32.totalorder %v1406, 0
  %vm1669 = vcmp.lt.s32.totalorder %v1413, 0
  %vm1670 = vcmp.lt.s32.totalorder %v1420, 0
  %vm1671 = vcmp.lt.s32.totalorder %v1427, 0
  %vm1672 = vcmp.lt.s32.totalorder %v1434, 0
  %vm1673 = vcmp.lt.s32.totalorder %v1441, 0
  %vm1674 = vcmp.lt.s32.totalorder %v1448, 0
  %vm1675 = vcmp.lt.s32.totalorder %v1455, 0
  %vm1676 = vcmp.lt.s32.totalorder %v1462, 0
  %vm1677 = vcmp.lt.s32.totalorder %v1469, 0
  %vm1678 = vcmp.lt.s32.totalorder %v1476, 0
  %vm1679 = vcmp.lt.s32.totalorder %v1483, 0
  %vm1680 = vcmp.lt.s32.totalorder %v1490, 0
  %vm1681 = vcmp.lt.s32.totalorder %v1497, 0
  %vm1682 = vcmp.lt.s32.totalorder %v1504, 0
  %vm1683 = vcmp.lt.s32.totalorder %v1511, 0
  %vm1684 = vcmp.lt.s32.totalorder %v1518, 0
  %vm1685 = vcmp.lt.s32.totalorder %v1525, 0
  %vm1686 = vcmp.lt.s32.totalorder %v1532, 0
  %vm1687 = vcmp.lt.s32.totalorder %v1539, 0
  %vm1688 = vcmp.lt.s32.totalorder %v1546, 0
  %vm1689 = vcmp.lt.s32.totalorder %v1553, 0
  %vm1690 = vcmp.lt.s32.totalorder %v1560, 0
  %vm1691 = vcmp.lt.s32.totalorder %v1567, 0
  %vm1692 = vcmp.lt.s32.totalorder %v1574, 0
  %vm1693 = vcmp.lt.s32.totalorder %v1581, 0
  %vm1694 = vmand %vm1638, %vm1582
  %vm1695 = vmand %vm1639, %vm1583
  %vm1696 = vmand %vm1640, %vm1584
  %vm1697 = vmand %vm1641, %vm1585
  %vm1698 = vmand %vm1642, %vm1586
  %vm1699 = vmand %vm1643, %vm1587
  %vm1700 = vmand %vm1644, %vm1588
  %vm1701 = vmand %vm1645, %vm1589
  %vm1702 = vmand %vm1646, %vm1590
  %vm1703 = vmand %vm1647, %vm1591
  %vm1704 = vmand %vm1648, %vm1592
  %vm1705 = vmand %vm1649, %vm1593
  %vm1706 = vmand %vm1650, %vm1594
  %vm1707 = vmand %vm1651, %vm1595
  %vm1708 = vmand %vm1652, %vm1596
  %vm1709 = vmand %vm1653, %vm1597
  %vm1710 = vmand %vm1654, %vm1598
  %vm1711 = vmand %vm1655, %vm1599
  %vm1712 = vmand %vm1656, %vm1600
  %vm1713 = vmand %vm1657, %vm1601
  %vm1714 = vmand %vm1658, %vm1602
  %vm1715 = vmand %vm1659, %vm1603
  %vm1716 = vmand %vm1660, %vm1604
  %vm1717 = vmand %vm1661, %vm1605
  %vm1718 = vmand %vm1662, %vm1606
  %vm1719 = vmand %vm1663, %vm1607
  %vm1720 = vmand %vm1664, %vm1608
  %vm1721 = vmand %vm1665, %vm1609
  %vm1722 = vmand %vm1666, %vm1610
  %vm1723 = vmand %vm1667, %vm1611
  %vm1724 = vmand %vm1668, %vm1612
  %vm1725 = vmand %vm1669, %vm1613
  %vm1726 = vmand %vm1670, %vm1614
  %vm1727 = vmand %vm1671, %vm1615
  %vm1728 = vmand %vm1672, %vm1616
  %vm1729 = vmand %vm1673, %vm1617
  %vm1730 = vmand %vm1674, %vm1618
  %vm1731 = vmand %vm1675, %vm1619
  %vm1732 = vmand %vm1676, %vm1620
  %vm1733 = vmand %vm1677, %vm1621
  %vm1734 = vmand %vm1678, %vm1622
  %vm1735 = vmand %vm1679, %vm1623
  %vm1736 = vmand %vm1680, %vm1624
  %vm1737 = vmand %vm1681, %vm1625
  %vm1738 = vmand %vm1682, %vm1626
  %vm1739 = vmand %vm1683, %vm1627
  %vm1740 = vmand %vm1684, %vm1628
  %vm1741 = vmand %vm1685, %vm1629
  %vm1742 = vmand %vm1686, %vm1630
  %vm1743 = vmand %vm1687, %vm1631
  %vm1744 = vmand %vm1688, %vm1632
  %vm1745 = vmand %vm1689, %vm1633
  %vm1746 = vmand %vm1690, %vm1634
  %vm1747 = vmand %vm1691, %vm1635
  %vm1748 = vmand %vm1692, %vm1636
  %vm1749 = vmand %vm1693, %vm1637
  %v1750 = vadd.s32 %v1196, 16
  %v1751 = vadd.s32 %v1203, 16
  %v1752 = vadd.s32 %v1210, 16
  %v1753 = vadd.s32 %v1217, 16
  %v1754 = vadd.s32 %v1224, 16
  %v1755 = vadd.s32 %v1231, 16
  %v1756 = vadd.s32 %v1238, 16
  %v1757 = vadd.s32 %v1245, 16
  %v1758 = vadd.s32 %v1252, 16
  %v1759 = vadd.s32 %v1259, 16
  %v1760 = vadd.s32 %v1266, 16
  %v1761 = vadd.s32 %v1273, 16
  %v1762 = vadd.s32 %v1280, 16
  %v1763 = vadd.s32 %v1287, 16
  %v1764 = vadd.s32 %v1294, 16
  %v1765 = vadd.s32 %v1301, 16
  %v1766 = vadd.s32 %v1308, 16
  %v1767 = vadd.s32 %v1315, 16
  %v1768 = vadd.s32 %v1322, 16
  %v1769 = vadd.s32 %v1329, 16
  %v1770 = vadd.s32 %v1336, 16
  %v1771 = vadd.s32 %v1343, 16
  %v1772 = vadd.s32 %v1350, 16
  %v1773 = vadd.s32 %v1357, 16
  %v1774 = vadd.s32 %v1364, 16
  %v1775 = vadd.s32 %v1371, 16
  %v1776 = vadd.s32 %v1378, 16
  %v1777 = vadd.s32 %v1385, 16
  %v1778 = vadd.s32 %v1392, 16
  %v1779 = vadd.s32 %v1399, 16
  %v1780 = vadd.s32 %v1406, 16
  %v1781 = vadd.s32 %v1413, 16
  %v1782 = vadd.s32 %v1420, 16
  %v1783 = vadd.s32 %v1427, 16
  %v1784 = vadd.s32 %v1434, 16
  %v1785 = vadd.s32 %v1441, 16
  %v1786 = vadd.s32 %v1448, 16
  %v1787 = vadd.s32 %v1455, 16
  %v1788 = vadd.s32 %v1462, 16
  %v1789 = vadd.s32 %v1469, 16
  %v1790 = vadd.s32 %v1476, 16
  %v1791 = vadd.s32 %v1483, 16
  %v1792 = vadd.s32 %v1490, 16
  %v1793 = vadd.s32 %v1497, 16
  %v1794 = vadd.s32 %v1504, 16
  %v1795 = vadd.s32 %v1511, 16
  %v1796 = vadd.s32 %v1518, 16
  %v1797 = vadd.s32 %v1525, 16
  %v1798 = vadd.s32 %v1532, 16
  %v1799 = vadd.s32 %v1539, 16
  %v1800 = vadd.s32 %v1546, 16
  %v1801 = vadd.s32 %v1553, 16
  %v1802 = vadd.s32 %v1560, 16
  %v1803 = vadd.s32 %v1567, 16
  %v1804 = vadd.s32 %v1574, 16
  %v1805 = vadd.s32 %v1581, 16
  %v1806 = vsel %vm1694, %v1750, %v1196
  %v1807 = vsel %vm1695, %v1751, %v1203
  %v1808 = vsel %vm1696, %v1752, %v1210
  %v1809 = vsel %vm1697, %v1753, %v1217
  %v1810 = vsel %vm1698, %v1754, %v1224
  %v1811 = vsel %vm1699, %v1755, %v1231
  %v1812 = vsel %vm1700, %v1756, %v1238
  %v1813 = vsel %vm1701, %v1757, %v1245
  %v1814 = vsel %vm1702, %v1758, %v1252
  %v1815 = vsel %vm1703, %v1759, %v1259
  %v1816 = vsel %vm1704, %v1760, %v1266
  %v1817 = vsel %vm1705, %v1761, %v1273
  %v1818 = vsel %vm1706, %v1762, %v1280
  %v1819 = vsel %vm1707, %v1763, %v1287
  %v1820 = vsel %vm1708, %v1764, %v1294
  %v1821 = vsel %vm1709, %v1765, %v1301
  %v1822 = vsel %vm1710, %v1766, %v1308
  %v1823 = vsel %vm1711, %v1767, %v1315
  %v1824 = vsel %vm1712, %v1768, %v1322
  %v1825 = vsel %vm1713, %v1769, %v1329
  %v1826 = vsel %vm1714, %v1770, %v1336
  %v1827 = vsel %vm1715, %v1771, %v1343
  %v1828 = vsel %vm1716, %v1772, %v1350
  %v1829 = vsel %vm1717, %v1773, %v1357
  %v1830 = vsel %vm1718, %v1774, %v1364
  %v1831 = vsel %vm1719, %v1775, %v1371
  %v1832 = vsel %vm1720, %v1776, %v1378
  %v1833 = vsel %vm1721, %v1777, %v1385
  %v1834 = vsel %vm1722, %v1778, %v1392
  %v1835 = vsel %vm1723, %v1779, %v1399
  %v1836 = vsel %vm1724, %v1780, %v1406
  %v1837 = vsel %vm1725, %v1781, %v1413
  %v1838 = vsel %vm1726, %v1782, %v1420
  %v1839 = vsel %vm1727, %v1783, %v1427
  %v1840 = vsel %vm1728, %v1784, %v1434
  %v1841 = vsel %vm1729, %v1785, %v1441
  %v1842 = vsel %vm1730, %v1786, %v1448
  %v1843 = vsel %vm1731, %v1787, %v1455
  %v1844 = vsel %vm1732, %v1788, %v1462
  %v1845 = vsel %vm1733, %v1789, %v1469
  %v1846 = vsel %vm1734, %v1790, %v1476
  %v1847 = vsel %vm1735, %v1791, %v1483
  %v1848 = vsel %vm1736, %v1792, %v1490
  %v1849 = vsel %vm1737, %v1793, %v1497
  %v1850 = vsel %vm1738, %v1794, %v1504
  %v1851 = vsel %vm1739, %v1795, %v1511
  %v1852 = vsel %vm1740, %v1796, %v1518
  %v1853 = vsel %vm1741, %v1797, %v1525
  %v1854 = vsel %vm1742, %v1798, %v1532
  %v1855 = vsel %vm1743, %v1799, %v1539
  %v1856 = vsel %vm1744, %v1800, %v1546
  %v1857 = vsel %vm1745, %v1801, %v1553
  %v1858 = vsel %vm1746, %v1802, %v1560
  %v1859 = vsel %vm1747, %v1803, %v1567
  %v1860 = vsel %vm1748, %v1804, %v1574
  %v1861 = vsel %vm1749, %v1805, %v1581
  %vm1862 = vcmp.lt.s32.totalorder %v1806, 15
  %vm1863 = vcmp.lt.s32.totalorder %v1807, 15
  %vm1864 = vcmp.lt.s32.totalorder %v1808, 15
  %vm1865 = vcmp.lt.s32.totalorder %v1809, 15
  %vm1866 = vcmp.lt.s32.totalorder %v1810, 15
  %vm1867 = vcmp.lt.s32.totalorder %v1811, 15
  %vm1868 = vcmp.lt.s32.totalorder %v1812, 15
  %vm1869 = vcmp.lt.s32.totalorder %v1813, 15
  %vm1870 = vcmp.lt.s32.totalorder %v1814, 15
  %vm1871 = vcmp.lt.s32.totalorder %v1815, 15
  %vm1872 = vcmp.lt.s32.totalorder %v1816, 15
  %vm1873 = vcmp.lt.s32.totalorder %v1817, 15
  %vm1874 = vcmp.lt.s32.totalorder %v1818, 15
  %vm1875 = vcmp.lt.s32.totalorder %v1819, 15
  %vm1876 = vcmp.lt.s32.totalorder %v1820, 15
  %vm1877 = vcmp.lt.s32.totalorder %v1821, 15
  %vm1878 = vcmp.lt.s32.totalorder %v1822, 15
  %vm1879 = vcmp.lt.s32.totalorder %v1823, 15
  %vm1880 = vcmp.lt.s32.totalorder %v1824, 15
  %vm1881 = vcmp.lt.s32.totalorder %v1825, 15
  %vm1882 = vcmp.lt.s32.totalorder %v1826, 15
  %vm1883 = vcmp.lt.s32.totalorder %v1827, 15
  %vm1884 = vcmp.lt.s32.totalorder %v1828, 15
  %vm1885 = vcmp.lt.s32.totalorder %v1829, 15
  %vm1886 = vcmp.lt.s32.totalorder %v1830, 15
  %vm1887 = vcmp.lt.s32.totalorder %v1831, 15
  %vm1888 = vcmp.lt.s32.totalorder %v1832, 15
  %vm1889 = vcmp.lt.s32.totalorder %v1833, 15
  %vm1890 = vcmp.lt.s32.totalorder %v1834, 15
  %vm1891 = vcmp.lt.s32.totalorder %v1835, 15
  %vm1892 = vcmp.lt.s32.totalorder %v1836, 15
  %vm1893 = vcmp.lt.s32.totalorder %v1837, 15
  %vm1894 = vcmp.lt.s32.totalorder %v1838, 15
  %vm1895 = vcmp.lt.s32.totalorder %v1839, 15
  %vm1896 = vcmp.lt.s32.totalorder %v1840, 15
  %vm1897 = vcmp.lt.s32.totalorder %v1841, 15
  %vm1898 = vcmp.lt.s32.totalorder %v1842, 15
  %vm1899 = vcmp.lt.s32.totalorder %v1843, 15
  %vm1900 = vcmp.lt.s32.totalorder %v1844, 15
  %vm1901 = vcmp.lt.s32.totalorder %v1845, 15
  %vm1902 = vcmp.lt.s32.totalorder %v1846, 15
  %vm1903 = vcmp.lt.s32.totalorder %v1847, 15
  %vm1904 = vcmp.lt.s32.totalorder %v1848, 15
  %vm1905 = vcmp.lt.s32.totalorder %v1849, 15
  %vm1906 = vcmp.lt.s32.totalorder %v1850, 15
  %vm1907 = vcmp.lt.s32.totalorder %v1851, 15
  %vm1908 = vcmp.lt.s32.totalorder %v1852, 15
  %vm1909 = vcmp.lt.s32.totalorder %v1853, 15
  %vm1910 = vcmp.lt.s32.totalorder %v1854, 15
  %vm1911 = vcmp.lt.s32.totalorder %v1855, 15
  %vm1912 = vcmp.lt.s32.totalorder %v1856, 15
  %vm1913 = vcmp.lt.s32.totalorder %v1857, 15
  %vm1914 = vcmp.lt.s32.totalorder %v1858, 15
  %vm1915 = vcmp.lt.s32.totalorder %v1859, 15
  %vm1916 = vcmp.lt.s32.totalorder %v1860, 15
  %vm1917 = vcmp.lt.s32.totalorder %v1861, 15
  %v1918 = vsel %vm1862, %v1077, 0.0
  %v1919 = vsel %vm1863, %v1078, 0.0
  %v1920 = vsel %vm1864, %v1079, 0.0
  %v1921 = vsel %vm1865, %v1080, 0.0
  %v1922 = vsel %vm1866, %v1081, 0.0
  %v1923 = vsel %vm1867, %v1082, 0.0
  %v1924 = vsel %vm1868, %v1083, 0.0
  %v1925 = vsel %vm1869, %v1084, 0.0
  %v1926 = vsel %vm1870, %v1085, 0.0
  %v1927 = vsel %vm1871, %v1086, 0.0
  %v1928 = vsel %vm1872, %v1087, 0.0
  %v1929 = vsel %vm1873, %v1088, 0.0
  %v1930 = vsel %vm1874, %v1089, 0.0
  %v1931 = vsel %vm1875, %v1090, 0.0
  %v1932 = vsel %vm1876, %v1091, 0.0
  %v1933 = vsel %vm1877, %v1092, 0.0
  %v1934 = vsel %vm1878, %v1093, 0.0
  %v1935 = vsel %vm1879, %v1094, 0.0
  %v1936 = vsel %vm1880, %v1095, 0.0
  %v1937 = vsel %vm1881, %v1096, 0.0
  %v1938 = vsel %vm1882, %v1097, 0.0
  %v1939 = vsel %vm1883, %v1098, 0.0
  %v1940 = vsel %vm1884, %v1099, 0.0
  %v1941 = vsel %vm1885, %v1100, 0.0
  %v1942 = vsel %vm1886, %v1101, 0.0
  %v1943 = vsel %vm1887, %v1102, 0.0
  %v1944 = vsel %vm1888, %v1103, 0.0
  %v1945 = vsel %vm1889, %v1104, 0.0
  %v1946 = vsel %vm1890, %v1105, 0.0
  %v1947 = vsel %vm1891, %v1106, 0.0
  %v1948 = vsel %vm1892, %v1107, 0.0
  %v1949 = vsel %vm1893, %v1108, 0.0
  %v1950 = vsel %vm1894, %v1109, 0.0
  %v1951 = vsel %vm1895, %v1110, 0.0
  %v1952 = vsel %vm1896, %v1111, 0.0
  %v1953 = vsel %vm1897, %v1112, 0.0
  %v1954 = vsel %vm1898, %v1113, 0.0
  %v1955 = vsel %vm1899, %v1114, 0.0
  %v1956 = vsel %vm1900, %v1115, 0.0
  %v1957 = vsel %vm1901, %v1116, 0.0
  %v1958 = vsel %vm1902, %v1117, 0.0
  %v1959 = vsel %vm1903, %v1118, 0.0
  %v1960 = vsel %vm1904, %v1119, 0.0
  %v1961 = vsel %vm1905, %v1120, 0.0
  %v1962 = vsel %vm1906, %v1121, 0.0
  %v1963 = vsel %vm1907, %v1122, 0.0
  %v1964 = vsel %vm1908, %v1123, 0.0
  %v1965 = vsel %vm1909, %v1124, 0.0
  %v1966 = vsel %vm1910, %v1125, 0.0
  %v1967 = vsel %vm1911, %v1126, 0.0
  %v1968 = vsel %vm1912, %v1127, 0.0
  %v1969 = vsel %vm1913, %v1128, 0.0
  %v1970 = vsel %vm1914, %v1129, 0.0
  %v1971 = vsel %vm1915, %v1130, 0.0
  %v1972 = vsel %vm1916, %v1131, 0.0
  %v1973 = vsel %vm1917, %v1132, 0.0
  %v1974 = vpack.c.bf16 %v1919, %v1918
  %v1975 = vpack.c.bf16 %v1921, %v1920
  %v1976 = vpack.c.bf16 %v1923, %v1922
  %v1977 = vpack.c.bf16 %v1925, %v1924
  %v1978 = vpack.c.bf16 %v1927, %v1926
  %v1979 = vpack.c.bf16 %v1929, %v1928
  %v1980 = vpack.c.bf16 %v1931, %v1930
  %v1981 = vpack.c.bf16 %v1933, %v1932
  %v1982 = vpack.c.bf16 %v1935, %v1934
  %v1983 = vpack.c.bf16 %v1937, %v1936
  %v1984 = vpack.c.bf16 %v1939, %v1938
  %v1985 = vpack.c.bf16 %v1941, %v1940
  %v1986 = vpack.c.bf16 %v1943, %v1942
  %v1987 = vpack.c.bf16 %v1945, %v1944
  %v1988 = vpack.c.bf16 %v1947, %v1946
  %v1989 = vpack.c.bf16 %v1949, %v1948
  %v1990 = vpack.c.bf16 %v1951, %v1950
  %v1991 = vpack.c.bf16 %v1953, %v1952
  %v1992 = vpack.c.bf16 %v1955, %v1954
  %v1993 = vpack.c.bf16 %v1957, %v1956
  %v1994 = vpack.c.bf16 %v1959, %v1958
  %v1995 = vpack.c.bf16 %v1961, %v1960
  %v1996 = vpack.c.bf16 %v1963, %v1962
  %v1997 = vpack.c.bf16 %v1965, %v1964
  %v1998 = vpack.c.bf16 %v1967, %v1966
  %v1999 = vpack.c.bf16 %v1969, %v1968
  %v2000 = vpack.c.bf16 %v1971, %v1970
  %v2001 = vpack.c.bf16 %v1973, %v1972
  %v2030 = vunpack.c.l.b16 %v1974
  %v2031 = vunpack.c.h.b16 %v1974
  %v2032 = vunpack.c.l.b16 %v1975
  %v2033 = vunpack.c.h.b16 %v1975
  %v2034 = vunpack.c.l.b16 %v1976
  %v2035 = vunpack.c.h.b16 %v1976
  %v2036 = vunpack.c.l.b16 %v1977
  %v2037 = vunpack.c.h.b16 %v1977
  %v2038 = vunpack.c.l.b16 %v1978
  %v2039 = vunpack.c.h.b16 %v1978
  %v2040 = vunpack.c.l.b16 %v1979
  %v2041 = vunpack.c.h.b16 %v1979
  %v2042 = vunpack.c.l.b16 %v1980
  %v2043 = vunpack.c.h.b16 %v1980
  %v2044 = vunpack.c.l.b16 %v1981
  %v2045 = vunpack.c.h.b16 %v1981
  %v2046 = vunpack.c.l.b16 %v1982
  %v2047 = vunpack.c.h.b16 %v1982
  %v2048 = vunpack.c.l.b16 %v1983
  %v2049 = vunpack.c.h.b16 %v1983
  %v2050 = vunpack.c.l.b16 %v1984
  %v2051 = vunpack.c.h.b16 %v1984
  %v2052 = vunpack.c.l.b16 %v1985
  %v2053 = vunpack.c.h.b16 %v1985
  %v2054 = vunpack.c.l.b16 %v1986
  %v2055 = vunpack.c.h.b16 %v1986
  %v2056 = vunpack.c.l.b16 %v1987
  %v2057 = vunpack.c.h.b16 %v1987
  %v2058 = vunpack.c.l.b16 %v1988
  %v2059 = vunpack.c.h.b16 %v1988
  %v2060 = vunpack.c.l.b16 %v1989
  %v2061 = vunpack.c.h.b16 %v1989
  %v2062 = vunpack.c.l.b16 %v1990
  %v2063 = vunpack.c.h.b16 %v1990
  %v2064 = vunpack.c.l.b16 %v1991
  %v2065 = vunpack.c.h.b16 %v1991
  %v2066 = vunpack.c.l.b16 %v1992
  %v2067 = vunpack.c.h.b16 %v1992
  %v2068 = vunpack.c.l.b16 %v1993
  %v2069 = vunpack.c.h.b16 %v1993
  %v2070 = vunpack.c.l.b16 %v1994
  %v2071 = vunpack.c.h.b16 %v1994
  %v2072 = vunpack.c.l.b16 %v1995
  %v2073 = vunpack.c.h.b16 %v1995
  %v2074 = vunpack.c.l.b16 %v1996
  %v2075 = vunpack.c.h.b16 %v1996
  %v2076 = vunpack.c.l.b16 %v1997
  %v2077 = vunpack.c.h.b16 %v1997
  %v2078 = vunpack.c.l.b16 %v1998
  %v2079 = vunpack.c.h.b16 %v1998
  %v2080 = vunpack.c.l.b16 %v1999
  %v2081 = vunpack.c.h.b16 %v1999
  %v2082 = vunpack.c.l.b16 %v2000
  %v2083 = vunpack.c.h.b16 %v2000
  %v2084 = vunpack.c.l.b16 %v2001
  %v2085 = vunpack.c.h.b16 %v2001
  %v2086 = vpack.c.b16 %v2030, %v2030
  %v2087 = vpack.c.b16 %v2031, %v2031
  %v2088 = vpack.c.b16 %v2032, %v2032
  %v2089 = vpack.c.b16 %v2033, %v2033
  %v2090 = vpack.c.b16 %v2034, %v2034
  %v2091 = vpack.c.b16 %v2035, %v2035
  %v2092 = vpack.c.b16 %v2036, %v2036
  %v2093 = vpack.c.b16 %v2037, %v2037
  %v2094 = vpack.c.b16 %v2038, %v2038
  %v2095 = vpack.c.b16 %v2039, %v2039
  %v2096 = vpack.c.b16 %v2040, %v2040
  %v2097 = vpack.c.b16 %v2041, %v2041
  %v2098 = vpack.c.b16 %v2042, %v2042
  %v2099 = vpack.c.b16 %v2043, %v2043
  %v2100 = vpack.c.b16 %v2044, %v2044
  %v2101 = vpack.c.b16 %v2045, %v2045
  %v2102 = vpack.c.b16 %v2046, %v2046
  %v2103 = vpack.c.b16 %v2047, %v2047
  %v2104 = vpack.c.b16 %v2048, %v2048
  %v2105 = vpack.c.b16 %v2049, %v2049
  %v2106 = vpack.c.b16 %v2050, %v2050
  %v2107 = vpack.c.b16 %v2051, %v2051
  %v2108 = vpack.c.b16 %v2052, %v2052
  %v2109 = vpack.c.b16 %v2053, %v2053
  %v2110 = vpack.c.b16 %v2054, %v2054
  %v2111 = vpack.c.b16 %v2055, %v2055
  %v2112 = vpack.c.b16 %v2056, %v2056
  %v2113 = vpack.c.b16 %v2057, %v2057
  %v2114 = vpack.c.b16 %v2058, %v2058
  %v2115 = vpack.c.b16 %v2059, %v2059
  %v2116 = vpack.c.b16 %v2060, %v2060
  %v2117 = vpack.c.b16 %v2061, %v2061
  %v2118 = vpack.c.b16 %v2062, %v2062
  %v2119 = vpack.c.b16 %v2063, %v2063
  %v2120 = vpack.c.b16 %v2064, %v2064
  %v2121 = vpack.c.b16 %v2065, %v2065
  %v2122 = vpack.c.b16 %v2066, %v2066
  %v2123 = vpack.c.b16 %v2067, %v2067
  %v2124 = vpack.c.b16 %v2068, %v2068
  %v2125 = vpack.c.b16 %v2069, %v2069
  %v2126 = vpack.c.b16 %v2070, %v2070
  %v2127 = vpack.c.b16 %v2071, %v2071
  %v2128 = vpack.c.b16 %v2072, %v2072
  %v2129 = vpack.c.b16 %v2073, %v2073
  %v2130 = vpack.c.b16 %v2074, %v2074
  %v2131 = vpack.c.b16 %v2075, %v2075
  %v2132 = vpack.c.b16 %v2076, %v2076
  %v2133 = vpack.c.b16 %v2077, %v2077
  %v2134 = vpack.c.b16 %v2078, %v2078
  %v2135 = vpack.c.b16 %v2079, %v2079
  %v2136 = vpack.c.b16 %v2080, %v2080
  %v2137 = vpack.c.b16 %v2081, %v2081
  %v2138 = vpack.c.b16 %v2082, %v2082
  %v2139 = vpack.c.b16 %v2083, %v2083
  %v2140 = vpack.c.b16 %v2084, %v2084
  %v2141 = vpack.c.b16 %v2085, %v2085
  %2198 = vst [vmem:[#allocation2] sm:$0xf] %v2086
  %2199 = vst [vmem:[#allocation2 + $0x4] sm:$0xf] %v2087
  %2200 = vst [vmem:[#allocation2 + $0x8] sm:$0xf] %v2088
  %2201 = vst [vmem:[#allocation2 + $0xc] sm:$0xf] %v2089
  %2202 = vst [vmem:[#allocation2 + $0x10] sm:$0xf] %v2090
  %2203 = vst [vmem:[#allocation2 + $0x14] sm:$0xf] %v2091
  %2204 = vst [vmem:[#allocation2 + $0x18] sm:$0xf] %v2092
  %2205 = vst [vmem:[#allocation2 + $0x1c] sm:$0xf] %v2093
  %2206 = vst [vmem:[#allocation2 + $0x20] sm:$0xf] %v2094
  %2207 = vst [vmem:[#allocation2 + $0x24] sm:$0xf] %v2095
  %2208 = vst [vmem:[#allocation2 + $0x28] sm:$0xf] %v2096
  %2209 = vst [vmem:[#allocation2 + $0x2c] sm:$0xf] %v2097
  %2210 = vst [vmem:[#allocation2 + $0x30] sm:$0xf] %v2098
  %2211 = vst [vmem:[#allocation2 + $0x34] sm:$0xf] %v2099
  %2212 = vst [vmem:[#allocation2 + $0x38] sm:$0xf] %v2100
  %2213 = vst [vmem:[#allocation2 + $0x3c] sm:$0xf] %v2101
  %2214 = vst [vmem:[#allocation2 + $0x40] sm:$0xf] %v2102
  %2215 = vst [vmem:[#allocation2 + $0x44] sm:$0xf] %v2103
  %2216 = vst [vmem:[#allocation2 + $0x48] sm:$0xf] %v2104
  %2217 = vst [vmem:[#allocation2 + $0x4c] sm:$0xf] %v2105
  %2218 = vst [vmem:[#allocation2 + $0x50] sm:$0xf] %v2106
  %2219 = vst [vmem:[#allocation2 + $0x54] sm:$0xf] %v2107
  %2220 = vst [vmem:[#allocation2 + $0x58] sm:$0xf] %v2108
  %2221 = vst [vmem:[#allocation2 + $0x5c] sm:$0xf] %v2109
  %2222 = vst [vmem:[#allocation2 + $0x60] sm:$0xf] %v2110
  %2223 = vst [vmem:[#allocation2 + $0x64] sm:$0xf] %v2111
  %2224 = vst [vmem:[#allocation2 + $0x68] sm:$0xf] %v2112
  %2225 = vst [vmem:[#allocation2 + $0x6c] sm:$0xf] %v2113
  %2226 = vst [vmem:[#allocation2 + $0x70] sm:$0xf] %v2114
  %2227 = vst [vmem:[#allocation2 + $0x74] sm:$0xf] %v2115
  %2228 = vst [vmem:[#allocation2 + $0x78] sm:$0xf] %v2116
  %2229 = vst [vmem:[#allocation2 + $0x7c] sm:$0xf] %v2117
  %2230 = vst [vmem:[#allocation2 + $0x80] sm:$0xf] %v2118
  %2231 = vst [vmem:[#allocation2 + $0x84] sm:$0xf] %v2119
  %2232 = vst [vmem:[#allocation2 + $0x88] sm:$0xf] %v2120
  %2233 = vst [vmem:[#allocation2 + $0x8c] sm:$0xf] %v2121
  %2234 = vst [vmem:[#allocation2 + $0x90] sm:$0xf] %v2122
  %2235 = vst [vmem:[#allocation2 + $0x94] sm:$0xf] %v2123
  %2236 = vst [vmem:[#allocation2 + $0x98] sm:$0xf] %v2124
  %2237 = vst [vmem:[#allocation2 + $0x9c] sm:$0xf] %v2125
  %2238 = vst [vmem:[#allocation2 + $0xa0] sm:$0xf] %v2126
  %2239 = vst [vmem:[#allocation2 + $0xa4] sm:$0xf] %v2127
  %2240 = vst [vmem:[#allocation2 + $0xa8] sm:$0xf] %v2128
  %2241 = vst [vmem:[#allocation2 + $0xac] sm:$0xf] %v2129
  %2242 = vst [vmem:[#allocation2 + $0xb0] sm:$0xf] %v2130
  %2243 = vst [vmem:[#allocation2 + $0xb4] sm:$0xf] %v2131
  %2244 = vst [vmem:[#allocation2 + $0xb8] sm:$0xf] %v2132
  %2245 = vst [vmem:[#allocation2 + $0xbc] sm:$0xf] %v2133
  %2246 = vst [vmem:[#allocation2 + $0xc0] sm:$0xf] %v2134
  %2247 = vst [vmem:[#allocation2 + $0xc4] sm:$0xf] %v2135
  %2248 = vst [vmem:[#allocation2 + $0xc8] sm:$0xf] %v2136
  %2249 = vst [vmem:[#allocation2 + $0xcc] sm:$0xf] %v2137
  %2250 = vst [vmem:[#allocation2 + $0xd0] sm:$0xf] %v2138
  %2251 = vst [vmem:[#allocation2 + $0xd4] sm:$0xf] %v2139
  %2252 = vst [vmem:[#allocation2 + $0xd8] sm:$0xf] %v2140
  %2253 = vst [vmem:[#allocation2 + $0xdc] sm:$0xf] %v2141
  %v2254 = vld [vmem:[#allocation2] sm:$0xf]
  %v2255 = vld [vmem:[#allocation2 + $0x4] sm:$0xf]
  %v2256 = vld [vmem:[#allocation2 + $0x8] sm:$0xf]
  %v2257 = vld [vmem:[#allocation2 + $0xc] sm:$0xf]
  %v2258 = vld [vmem:[#allocation2 + $0x10] sm:$0xf]
  %v2259 = vld [vmem:[#allocation2 + $0x14] sm:$0xf]
  %v2260 = vld [vmem:[#allocation2 + $0x18] sm:$0xf]
  %v2261 = vld [vmem:[#allocation2 + $0x1c] sm:$0xf]
  %v2262 = vld [vmem:[#allocation2 + $0x20] sm:$0xf]
  %v2263 = vld [vmem:[#allocation2 + $0x24] sm:$0xf]
  %v2264 = vld [vmem:[#allocation2 + $0x28] sm:$0xf]
  %v2265 = vld [vmem:[#allocation2 + $0x2c] sm:$0xf]
  %v2266 = vld [vmem:[#allocation2 + $0x30] sm:$0xf]
  %v2267 = vld [vmem:[#allocation2 + $0x34] sm:$0xf]
  %v2268 = vld [vmem:[#allocation2 + $0x38] sm:$0xf]
  %v2269 = vld [vmem:[#allocation2 + $0x3c] sm:$0xf]
  %v2270 = vld [vmem:[#allocation2 + $0x40] sm:$0xf]
  %v2271 = vld [vmem:[#allocation2 + $0x44] sm:$0xf]
  %v2272 = vld [vmem:[#allocation2 + $0x48] sm:$0xf]
  %v2273 = vld [vmem:[#allocation2 + $0x4c] sm:$0xf]
  %v2274 = vld [vmem:[#allocation2 + $0x50] sm:$0xf]
  %v2275 = vld [vmem:[#allocation2 + $0x54] sm:$0xf]
  %v2276 = vld [vmem:[#allocation2 + $0x58] sm:$0xf]
  %v2277 = vld [vmem:[#allocation2 + $0x5c] sm:$0xf]
  %v2278 = vld [vmem:[#allocation2 + $0x60] sm:$0xf]
  %v2279 = vld [vmem:[#allocation2 + $0x64] sm:$0xf]
  %v2280 = vld [vmem:[#allocation2 + $0x68] sm:$0xf]
  %v2281 = vld [vmem:[#allocation2 + $0x6c] sm:$0xf]
  %v2302 = vunpack.c.l.b16 %v2254
  %v2303 = vunpack.c.l.b16 %v2255
  %v2304 = vunpack.c.l.b16 %v2256
  %v2305 = vunpack.c.l.b16 %v2257
  %v2306 = vunpack.c.l.b16 %v2258
  %v2307 = vunpack.c.l.b16 %v2259
  %v2308 = vunpack.c.l.b16 %v2260
  %v2309 = vunpack.c.l.b16 %v2261
  %v2310 = vunpack.c.l.b16 %v2262
  %v2311 = vunpack.c.l.b16 %v2263
  %v2312 = vunpack.c.l.b16 %v2264
  %v2313 = vunpack.c.l.b16 %v2265
  %v2314 = vunpack.c.l.b16 %v2266
  %v2315 = vunpack.c.l.b16 %v2267
  %v2316 = vunpack.c.l.b16 %v2268
  %v2317 = vunpack.c.l.b16 %v2269
  %v2318 = vunpack.c.l.b16 %v2270
  %v2319 = vunpack.c.l.b16 %v2271
  %v2320 = vunpack.c.l.b16 %v2272
  %v2321 = vunpack.c.l.b16 %v2273
  %v2322 = vpack.c.b16 %v2303, %v2302
  %v2323 = vpack.c.b16 %v2305, %v2304
  %v2324 = vpack.c.b16 %v2307, %v2306
  %v2325 = vpack.c.b16 %v2309, %v2308
  %v2326 = vpack.c.b16 %v2311, %v2310
  %v2327 = vpack.c.b16 %v2313, %v2312
  %v2328 = vpack.c.b16 %v2315, %v2314
  %v2329 = vpack.c.b16 %v2317, %v2316
  %v2330 = vpack.c.b16 %v2319, %v2318
  %v2331 = vpack.c.b16 %v2321, %v2320
  %v2334 = vunpack.c.l.b16 %v2274
  %v2335 = vunpack.c.l.b16 %v2275
  %v2336 = vpack.c.b16 %v2335, %v2334
  %2337 = vrot.lane.b32.xlu0 %v2323, 64
  %v2338 = vpop.permute.xlu0 %2337
  %2339 = vrot.lane.b32.xlu0 %v2324, 64
  %v2340 = vpop.permute.xlu0 %2339
  %2341 = vrot.lane.b32.xlu0 %v2325, 64
  %v2342 = vpop.permute.xlu0 %2341
  %2343 = vrot.lane.b32.xlu0 %v2326, 64
  %v2344 = vpop.permute.xlu0 %2343
  %2345 = vrot.lane.b32.xlu0 %v2327, 64
  %v2346 = vpop.permute.xlu0 %2345
  %2347 = vrot.lane.b32.xlu0 %v2328, 64
  %v2348 = vpop.permute.xlu0 %2347
  %2349 = vrot.lane.b32.xlu0 %v2329, 64
  %v2350 = vpop.permute.xlu0 %2349
  %2351 = vrot.lane.b32.xlu0 %v2330, 64
  %v2352 = vpop.permute.xlu0 %2351
  %2353 = vrot.lane.b32.xlu0 %v2331, 64
  %v2354 = vpop.permute.xlu0 %2353
  %2355 = vrot.lane.b32.xlu0 %v2336, 64
  %v2356 = vpop.permute.xlu0 %2355
  %v2359 = vunpack.c.l.b16 %v2276
  %v2360 = vunpack.c.l.b16 %v2277
  %v2361 = vpack.c.b16 %v2360, %v2359
  %v2364 = vunpack.c.l.b16 %v2278
  %v2365 = vunpack.c.l.b16 %v2279
  %v2366 = vpack.c.b16 %v2365, %v2364
  %2367 = vrot.lane.b32.xlu0 %v2361, 64
  %v2368 = vpop.permute.xlu0 %2367
  %2369 = vrot.lane.b32.xlu0 %v2366, 64
  %v2370 = vpop.permute.xlu0 %2369
  %v2373 = vunpack.c.l.b16 %v2280
  %v2374 = vunpack.c.l.b16 %v2281
  %v2375 = vpack.c.b16 %v2374, %v2373
  %vm2376 = vcmask 523264
  %v2379 = vsel %vm2376, %v2322, %v2338
  %v2383 = vsel %vm2376, %v2323, %v2340
  %v2387 = vsel %vm2376, %v2324, %v2342
  %v2391 = vsel %vm2376, %v2325, %v2344
  %v2395 = vsel %vm2376, %v2326, %v2346
  %v2399 = vsel %vm2376, %v2327, %v2348
  %v2403 = vsel %vm2376, %v2328, %v2350
  %v2407 = vsel %vm2376, %v2329, %v2352
  %v2411 = vsel %vm2376, %v2330, %v2354
  %v2415 = vsel %vm2376, %v2331, %v2356
  %v2419 = vsel %vm2376, %v2336, %v2368
  %v2423 = vsel %vm2376, %v2361, %v2370
  %v2425 = vld [vmem:[#allocation2 + $0x70] sm:$0xf]
  %v2426 = vld [vmem:[#allocation2 + $0x74] sm:$0xf]
  %v2427 = vld [vmem:[#allocation2 + $0x78] sm:$0xf]
  %v2428 = vld [vmem:[#allocation2 + $0x7c] sm:$0xf]
  %v2429 = vld [vmem:[#allocation2 + $0x80] sm:$0xf]
  %v2430 = vld [vmem:[#allocation2 + $0x84] sm:$0xf]
  %v2431 = vld [vmem:[#allocation2 + $0x88] sm:$0xf]
  %v2432 = vld [vmem:[#allocation2 + $0x8c] sm:$0xf]
  %v2433 = vld [vmem:[#allocation2 + $0x90] sm:$0xf]
  %v2434 = vld [vmem:[#allocation2 + $0x94] sm:$0xf]
  %v2435 = vld [vmem:[#allocation2 + $0x98] sm:$0xf]
  %v2436 = vld [vmem:[#allocation2 + $0x9c] sm:$0xf]
  %v2437 = vld [vmem:[#allocation2 + $0xa0] sm:$0xf]
  %v2438 = vld [vmem:[#allocation2 + $0xa4] sm:$0xf]
  %v2439 = vld [vmem:[#allocation2 + $0xa8] sm:$0xf]
  %v2440 = vld [vmem:[#allocation2 + $0xac] sm:$0xf]
  %v2441 = vld [vmem:[#allocation2 + $0xb0] sm:$0xf]
  %v2442 = vld [vmem:[#allocation2 + $0xb4] sm:$0xf]
  %v2443 = vld [vmem:[#allocation2 + $0xb8] sm:$0xf]
  %v2444 = vld [vmem:[#allocation2 + $0xbc] sm:$0xf]
  %v2445 = vld [vmem:[#allocation2 + $0xc0] sm:$0xf]
  %v2446 = vld [vmem:[#allocation2 + $0xc4] sm:$0xf]
  %v2447 = vld [vmem:[#allocation2 + $0xc8] sm:$0xf]
  %v2448 = vld [vmem:[#allocation2 + $0xcc] sm:$0xf]
  %v2449 = vld [vmem:[#allocation2 + $0xd0] sm:$0xf]
  %v2450 = vld [vmem:[#allocation2 + $0xd4] sm:$0xf]
  %v2451 = vld [vmem:[#allocation2 + $0x90] sm:$0xf]
  %v2452 = vld [vmem:[#allocation2 + $0x94] sm:$0xf]
  %v2453 = vld [vmem:[#allocation2 + $0x98] sm:$0xf]
  %v2454 = vld [vmem:[#allocation2 + $0x9c] sm:$0xf]
  %v2455 = vld [vmem:[#allocation2 + $0xa0] sm:$0xf]
  %v2456 = vld [vmem:[#allocation2 + $0xa4] sm:$0xf]
  %v2457 = vld [vmem:[#allocation2 + $0xa8] sm:$0xf]
  %v2458 = vld [vmem:[#allocation2 + $0xac] sm:$0xf]
  %v2459 = vld [vmem:[#allocation2 + $0xb0] sm:$0xf]
  %v2460 = vld [vmem:[#allocation2 + $0xb4] sm:$0xf]
  %v2461 = vld [vmem:[#allocation2 + $0xb8] sm:$0xf]
  %v2462 = vld [vmem:[#allocation2 + $0xbc] sm:$0xf]
  %v2463 = vld [vmem:[#allocation2 + $0xc0] sm:$0xf]
  %v2464 = vld [vmem:[#allocation2 + $0xc4] sm:$0xf]
  %v2465 = vld [vmem:[#allocation2 + $0xc8] sm:$0xf]
  %v2466 = vld [vmem:[#allocation2 + $0xcc] sm:$0xf]
  %v2467 = vld [vmem:[#allocation2 + $0xd0] sm:$0xf]
  %v2468 = vld [vmem:[#allocation2 + $0xd4] sm:$0xf]
  %v2469 = vld [vmem:[#allocation2 + $0xd8] sm:$0xf]
  %v2470 = vld [vmem:[#allocation2 + $0xdc] sm:$0xf]
  %v2491 = vunpack.c.l.b16 %v2425
  %v2492 = vunpack.c.l.b16 %v2426
  %v2493 = vunpack.c.l.b16 %v2427
  %v2494 = vunpack.c.l.b16 %v2428
  %v2495 = vunpack.c.l.b16 %v2429
  %v2496 = vunpack.c.l.b16 %v2430
  %v2497 = vunpack.c.l.b16 %v2431
  %v2498 = vunpack.c.l.b16 %v2432
  %v2499 = vunpack.c.l.b16 %v2433
  %v2500 = vunpack.c.l.b16 %v2434
  %v2501 = vunpack.c.l.b16 %v2435
  %v2502 = vunpack.c.l.b16 %v2436
  %v2503 = vunpack.c.l.b16 %v2437
  %v2504 = vunpack.c.l.b16 %v2438
  %v2505 = vunpack.c.l.b16 %v2439
  %v2506 = vunpack.c.l.b16 %v2440
  %v2507 = vunpack.c.l.b16 %v2441
  %v2508 = vunpack.c.l.b16 %v2442
  %v2509 = vunpack.c.l.b16 %v2443
  %v2510 = vunpack.c.l.b16 %v2444
  %v2511 = vpack.c.b16 %v2492, %v2491
  %v2512 = vpack.c.b16 %v2494, %v2493
  %v2513 = vpack.c.b16 %v2496, %v2495
  %v2514 = vpack.c.b16 %v2498, %v2497
  %v2515 = vpack.c.b16 %v2500, %v2499
  %v2516 = vpack.c.b16 %v2502, %v2501
  %v2517 = vpack.c.b16 %v2504, %v2503
  %v2518 = vpack.c.b16 %v2506, %v2505
  %v2519 = vpack.c.b16 %v2508, %v2507
  %v2520 = vpack.c.b16 %v2510, %v2509
  %v2523 = vunpack.c.l.b16 %v2445
  %v2524 = vunpack.c.l.b16 %v2446
  %v2525 = vpack.c.b16 %v2524, %v2523
  %2526 = vrot.lane.b32.xlu0 %v2512, 64
  %v2527 = vpop.permute.xlu0 %2526
  %2528 = vrot.lane.b32.xlu0 %v2513, 64
  %v2529 = vpop.permute.xlu0 %2528
  %2530 = vrot.lane.b32.xlu0 %v2514, 64
  %v2531 = vpop.permute.xlu0 %2530
  %2532 = vrot.lane.b32.xlu0 %v2515, 64
  %v2533 = vpop.permute.xlu0 %2532
  %2534 = vrot.lane.b32.xlu0 %v2516, 64
  %v2535 = vpop.permute.xlu0 %2534
  %2536 = vrot.lane.b32.xlu0 %v2517, 64
  %v2537 = vpop.permute.xlu0 %2536
  %2538 = vrot.lane.b32.xlu0 %v2518, 64
  %v2539 = vpop.permute.xlu0 %2538
  %2540 = vrot.lane.b32.xlu0 %v2519, 64
  %v2541 = vpop.permute.xlu0 %2540
  %2542 = vrot.lane.b32.xlu0 %v2520, 64
  %v2543 = vpop.permute.xlu0 %2542
  %2544 = vrot.lane.b32.xlu0 %v2525, 64
  %v2545 = vpop.permute.xlu0 %2544
  %v2548 = vunpack.c.l.b16 %v2447
  %v2549 = vunpack.c.l.b16 %v2448
  %v2550 = vpack.c.b16 %v2549, %v2548
  %v2553 = vunpack.c.l.b16 %v2449
  %v2554 = vunpack.c.l.b16 %v2450
  %v2555 = vpack.c.b16 %v2554, %v2553
  %2556 = vrot.lane.b32.xlu0 %v2550, 64
  %v2557 = vpop.permute.xlu0 %2556
  %2558 = vrot.lane.b32.xlu0 %v2555, 64
  %v2559 = vpop.permute.xlu0 %2558
  %v2580 = vunpack.c.l.b16 %v2451
  %v2581 = vunpack.c.l.b16 %v2452
  %v2582 = vunpack.c.l.b16 %v2453
  %v2583 = vunpack.c.l.b16 %v2454
  %v2584 = vunpack.c.l.b16 %v2455
  %v2585 = vunpack.c.l.b16 %v2456
  %v2586 = vunpack.c.l.b16 %v2457
  %v2587 = vunpack.c.l.b16 %v2458
  %v2588 = vunpack.c.l.b16 %v2459
  %v2589 = vunpack.c.l.b16 %v2460
  %v2590 = vunpack.c.l.b16 %v2461
  %v2591 = vunpack.c.l.b16 %v2462
  %v2592 = vunpack.c.l.b16 %v2463
  %v2593 = vunpack.c.l.b16 %v2464
  %v2594 = vunpack.c.l.b16 %v2465
  %v2595 = vunpack.c.l.b16 %v2466
  %v2596 = vunpack.c.l.b16 %v2467
  %v2597 = vunpack.c.l.b16 %v2468
  %v2598 = vunpack.c.l.b16 %v2469
  %v2599 = vunpack.c.l.b16 %v2470
  %v2600 = vpack.c.b16 %v2581, %v2580
  %v2601 = vpack.c.b16 %v2583, %v2582
  %v2602 = vpack.c.b16 %v2585, %v2584
  %v2603 = vpack.c.b16 %v2587, %v2586
  %v2604 = vpack.c.b16 %v2589, %v2588
  %v2605 = vpack.c.b16 %v2591, %v2590
  %v2606 = vpack.c.b16 %v2593, %v2592
  %v2607 = vpack.c.b16 %v2595, %v2594
  %v2608 = vpack.c.b16 %v2597, %v2596
  %v2609 = vpack.c.b16 %v2599, %v2598
  %v2612 = vsel %vm2376, %v2511, %v2527
  %v2616 = vsel %vm2376, %v2512, %v2529
  %v2620 = vsel %vm2376, %v2513, %v2531
  %v2624 = vsel %vm2376, %v2514, %v2533
  %v2628 = vsel %vm2376, %v2515, %v2535
  %v2632 = vsel %vm2376, %v2516, %v2537
  %v2636 = vsel %vm2376, %v2517, %v2539
  %v2640 = vsel %vm2376, %v2518, %v2541
  %v2644 = vsel %vm2376, %v2519, %v2543
  %v2648 = vsel %vm2376, %v2520, %v2545
  %v2652 = vsel %vm2376, %v2525, %v2557
  %v2656 = vsel %vm2376, %v2550, %v2559
  %v2658 = vld [vmem:[%s4] sm:$0xf]
  %v2659 = vld [vmem:[%s4 + $0x4] sm:$0xf]
  %v2660 = vld [vmem:[%s4 + $0x8] sm:$0xf]
  %v2661 = vld [vmem:[%s4 + $0xc] sm:$0xf]
  %v2662 = vld [vmem:[%s4 + $0x10] sm:$0xf]
  %v2663 = vld [vmem:[%s4 + $0x14] sm:$0xf]
  %v2664 = vld [vmem:[%s4 + $0x18] sm:$0xf]
  %v2665 = vld [vmem:[%s4 + $0x1c] sm:$0xf]
  %v2666 = vld [vmem:[%s4 + $0x20] sm:$0xf]
  %v2667 = vld [vmem:[%s4 + $0x24] sm:$0xf]
  %v2668 = vld [vmem:[%s4 + $0x28] sm:$0xf]
  %v2669 = vld [vmem:[%s4 + $0x2c] sm:$0xf]
  %v2670 = vld [vmem:[%s4 + $0x30] sm:$0xf]
  %v2671 = vld [vmem:[%s4 + $0x34] sm:$0xf]
  %v2672 = vld [vmem:[%s4 + $0x38] sm:$0xf]
  %v2673 = vld [vmem:[%s4 + $0x3c] sm:$0xf]
  %v2674 = vld [vmem:[%s4 + $0x40] sm:$0xf]
  %v2675 = vld [vmem:[%s4 + $0x44] sm:$0xf]
  %v2676 = vld [vmem:[%s4 + $0x48] sm:$0xf]
  %v2677 = vld [vmem:[%s4 + $0x4c] sm:$0xf]
  %v2678 = vld [vmem:[%s4 + $0x50] sm:$0xf]
  %v2679 = vld [vmem:[%s4 + $0x54] sm:$0xf]
  %v2680 = vld [vmem:[%s4 + $0x58] sm:$0xf]
  %v2681 = vld [vmem:[%s4 + $0x5c] sm:$0xf]
  %v2682 = vld [vmem:[%s4 + $0x60] sm:$0xf]
  %v2683 = vld [vmem:[%s4 + $0x64] sm:$0xf]
  %v2684 = vld [vmem:[%s4 + $0x68] sm:$0xf]
  %v2685 = vld [vmem:[%s4 + $0x6c] sm:$0xf]
  %v2686 = vld [vmem:[%s4 + $0x70] sm:$0xf]
  %v2687 = vld [vmem:[%s4 + $0x74] sm:$0xf]
  %v2688 = vld [vmem:[%s4 + $0x78] sm:$0xf]
  %v2689 = vld [vmem:[%s4 + $0x7c] sm:$0xf]
  %v2690 = vld [vmem:[%s4 + $0x80] sm:$0xf]
  %v2691 = vld [vmem:[%s4 + $0x84] sm:$0xf]
  %v2692 = vld [vmem:[%s4 + $0x88] sm:$0xf]
  %v2693 = vld [vmem:[%s4 + $0x8c] sm:$0xf]
  %v2694 = vld [vmem:[%s4 + $0x90] sm:$0xf]
  %v2695 = vld [vmem:[%s4 + $0x94] sm:$0xf]
  %v2696 = vld [vmem:[%s4 + $0x98] sm:$0xf]
  %v2697 = vld [vmem:[%s4 + $0x9c] sm:$0xf]
  %v2738 = vunpack.c.l.b16 %v2658
  %v2739 = vunpack.c.l.b16 %v2659
  %v2740 = vunpack.c.l.b16 %v2660
  %v2741 = vunpack.c.l.b16 %v2661
  %v2742 = vunpack.c.l.b16 %v2662
  %v2743 = vunpack.c.l.b16 %v2663
  %v2744 = vunpack.c.l.b16 %v2664
  %v2745 = vunpack.c.l.b16 %v2665
  %v2746 = vunpack.c.l.b16 %v2666
  %v2747 = vunpack.c.l.b16 %v2667
  %v2748 = vunpack.c.l.b16 %v2668
  %v2749 = vunpack.c.l.b16 %v2669
  %v2750 = vunpack.c.l.b16 %v2670
  %v2751 = vunpack.c.l.b16 %v2671
  %v2752 = vunpack.c.l.b16 %v2672
  %v2753 = vunpack.c.l.b16 %v2673
  %v2754 = vunpack.c.l.b16 %v2674
  %v2755 = vunpack.c.l.b16 %v2675
  %v2756 = vunpack.c.l.b16 %v2676
  %v2757 = vunpack.c.l.b16 %v2677
  %v2758 = vunpack.c.l.b16 %v2678
  %v2759 = vunpack.c.l.b16 %v2679
  %v2760 = vunpack.c.l.b16 %v2680
  %v2761 = vunpack.c.l.b16 %v2681
  %v2762 = vunpack.c.l.b16 %v2682
  %v2763 = vunpack.c.l.b16 %v2683
  %v2764 = vunpack.c.l.b16 %v2684
  %v2765 = vunpack.c.l.b16 %v2685
  %v2766 = vunpack.c.l.b16 %v2686
  %v2767 = vunpack.c.l.b16 %v2687
  %v2768 = vunpack.c.l.b16 %v2688
  %v2769 = vunpack.c.l.b16 %v2689
  %v2770 = vunpack.c.l.b16 %v2690
  %v2771 = vunpack.c.l.b16 %v2691
  %v2772 = vunpack.c.l.b16 %v2692
  %v2773 = vunpack.c.l.b16 %v2693
  %v2774 = vunpack.c.l.b16 %v2694
  %v2775 = vunpack.c.l.b16 %v2695
  %v2776 = vunpack.c.l.b16 %v2696
  %v2777 = vunpack.c.l.b16 %v2697
  %v2778 = vpack.c.b16 %v2739, %v2738
  %v2779 = vpack.c.b16 %v2741, %v2740
  %v2780 = vpack.c.b16 %v2743, %v2742
  %v2781 = vpack.c.b16 %v2745, %v2744
  %v2782 = vpack.c.b16 %v2747, %v2746
  %v2783 = vpack.c.b16 %v2749, %v2748
  %v2784 = vpack.c.b16 %v2751, %v2750
  %v2785 = vpack.c.b16 %v2753, %v2752
  %v2786 = vpack.c.b16 %v2755, %v2754
  %v2787 = vpack.c.b16 %v2757, %v2756
  %v2788 = vpack.c.b16 %v2759, %v2758
  %v2789 = vpack.c.b16 %v2761, %v2760
  %v2790 = vpack.c.b16 %v2763, %v2762
  %v2791 = vpack.c.b16 %v2765, %v2764
  %v2792 = vpack.c.b16 %v2767, %v2766
  %v2793 = vpack.c.b16 %v2769, %v2768
  %v2794 = vpack.c.b16 %v2771, %v2770
  %v2795 = vpack.c.b16 %v2773, %v2772
  %v2796 = vpack.c.b16 %v2775, %v2774
  %v2797 = vpack.c.b16 %v2777, %v2776
  %v2818 = vsel %vm2376, %v2326, 0
  %v2820 = vsel %vm2376, %v2327, 0
  %v2822 = vsel %vm2376, %v2328, 0
  %v2824 = vsel %vm2376, %v2329, 0
  %v2826 = vsel %vm2376, %v2330, 0
  %v2828 = vsel %vm2376, %v2331, 0
  %v2830 = vsel %vm2376, %v2336, 0
  %v2832 = vsel %vm2376, %v2361, 0
  %v2835 = vsel %vm2376, %v2366, 0
  %v2838 = vsel %vm2376, %v2375, 0
  %v2841 = vsel %vm2376, %v2600, 0
  %v2844 = vsel %vm2376, %v2601, 0
  %v2847 = vsel %vm2376, %v2602, 0
  %v2850 = vsel %vm2376, %v2603, 0
  %v2853 = vsel %vm2376, %v2604, 0
  %v2856 = vsel %vm2376, %v2605, 0
  %v2859 = vsel %vm2376, %v2606, 0
  %v2862 = vsel %vm2376, %v2607, 0
  %v2865 = vsel %vm2376, %v2608, 0
  %v2868 = vsel %vm2376, %v2609, 0
  %2870 = vmatprep.subr.bf16.mxu0 0
  %2871 = vmatpush1.bf16.msra.mxu0 %v2785
  %2872 = vmatprep.subr.bf16.mxu0 0
  %2873 = vmatpush1.bf16.msra.mxu0 %v2784
  %2874 = vmatprep.subr.bf16.mxu0 0
  %2875 = vmatpush1.bf16.msra.mxu0 %v2783
  %2876 = vmatprep.subr.bf16.mxu0 0
  %2877 = vmatpush1.bf16.msra.mxu0 %v2782
  %2878 = vmatprep.subr.bf16.mxu0 0
  %2879 = vmatpush1.bf16.msra.mxu0 %v2781
  %2880 = vmatprep.subr.bf16.mxu0 0
  %2881 = vmatpush1.bf16.msra.mxu0 %v2780
  %2882 = vmatprep.subr.bf16.mxu0 0
  %2883 = vmatpush1.bf16.msra.mxu0 %v2779
  %2884 = vmatprep.subr.bf16.mxu0 0
  %2885 = vmatpush1.bf16.msra.mxu0 %v2778
  %2886 = vmatprep.subr.bf16.mxu0 0
  %2887 = vmatpush2.bf16.msra.mxu0 %v2793
  %2888 = vmatprep.subr.bf16.mxu0 0
  %2889 = vmatpush2.bf16.msra.mxu0 %v2792
  %2890 = vmatprep.subr.bf16.mxu0 0
  %2891 = vmatpush2.bf16.msra.mxu0 %v2791
  %2892 = vmatprep.subr.bf16.mxu0 0
  %2893 = vmatpush2.bf16.msra.mxu0 %v2790
  %2894 = vmatprep.subr.bf16.mxu0 0
  %2895 = vmatpush2.bf16.msra.mxu0 %v2789
  %2896 = vmatprep.subr.bf16.mxu0 0
  %2897 = vmatpush2.bf16.msra.mxu0 %v2788
  %2898 = vmatprep.subr.bf16.mxu0 0
  %2899 = vmatpush2.bf16.msra.mxu0 %v2787
  %2900 = vmatprep.subr.bf16.mxu0 0
  %2901 = vmatpush2.bf16.msra.mxu0 %v2786
  %2902 = vmatprep.mubr.bf16.mxu0 %v2387
  %2903 = vmatmul.mubr.bf16.gmra.mxu0 %v2379
  %v2904 = vpop.f32.mrf.mxu0
  %v2905 = vadd.f32 0.0, %v2904
  %v2906 = vpop.f32.mrf.mxu0
  %v2907 = vpop.f32.mrf.mxu0
  %v2908 = vadd.f32 0.0, %v2907
  %v2909 = vpop.f32.mrf.mxu0
  %2910 = vmatprep.mubr.bf16.mxu0 %v2391
  %2911 = vmatmul.mubr.bf16.gmra.mxu0 %v2383
  %v2912 = vpop.f32.mrf.mxu0
  %v2913 = vadd.f32 0.0, %v2912
  %v2914 = vpop.f32.mrf.mxu0
  %v2915 = vpop.f32.mrf.mxu0
  %v2916 = vadd.f32 0.0, %v2915
  %v2917 = vpop.f32.mrf.mxu0
  %2918 = vmatprep.mubr.bf16.mxu0 %v2395
  %2919 = vmatmul.mubr.bf16.gmra.mxu0 %v2387
  %v2920 = vpop.f32.mrf.mxu0
  %v2921 = vadd.f32 0.0, %v2920
  %v2922 = vpop.f32.mrf.mxu0
  %v2923 = vpop.f32.mrf.mxu0
  %v2924 = vadd.f32 0.0, %v2923
  %v2925 = vpop.f32.mrf.mxu0
  %2926 = vmatprep.mubr.bf16.mxu0 %v2399
  %2927 = vmatmul.mubr.bf16.gmra.mxu0 %v2391
  %v2928 = vpop.f32.mrf.mxu0
  %v2929 = vadd.f32 0.0, %v2928
  %v2930 = vpop.f32.mrf.mxu0
  %v2931 = vpop.f32.mrf.mxu0
  %v2932 = vadd.f32 0.0, %v2931
  %v2933 = vpop.f32.mrf.mxu0
  %2934 = vmatprep.mubr.bf16.mxu0 %v2403
  %2935 = vmatmul.mubr.bf16.gmra.mxu0 %v2395
  %v2936 = vpop.f32.mrf.mxu0
  %v2937 = vadd.f32 0.0, %v2936
  %v2938 = vpop.f32.mrf.mxu0
  %v2939 = vpop.f32.mrf.mxu0
  %v2940 = vadd.f32 0.0, %v2939
  %v2941 = vpop.f32.mrf.mxu0
  %2942 = vmatprep.mubr.bf16.mxu0 %v2407
  %2943 = vmatmul.mubr.bf16.gmra.mxu0 %v2399
  %v2944 = vpop.f32.mrf.mxu0
  %v2945 = vadd.f32 0.0, %v2944
  %v2946 = vpop.f32.mrf.mxu0
  %v2947 = vpop.f32.mrf.mxu0
  %v2948 = vadd.f32 0.0, %v2947
  %v2949 = vpop.f32.mrf.mxu0
  %2950 = vmatprep.mubr.bf16.mxu0 %v2411
  %2951 = vmatmul.mubr.bf16.gmra.mxu0 %v2403
  %v2952 = vpop.f32.mrf.mxu0
  %v2953 = vadd.f32 0.0, %v2952
  %v2954 = vpop.f32.mrf.mxu0
  %v2955 = vpop.f32.mrf.mxu0
  %v2956 = vadd.f32 0.0, %v2955
  %v2957 = vpop.f32.mrf.mxu0
  %2958 = vmatprep.mubr.bf16.mxu0 %v2415
  %2959 = vmatmul.mubr.bf16.gmra.mxu0 %v2407
  %v2960 = vpop.f32.mrf.mxu0
  %v2961 = vadd.f32 0.0, %v2960
  %v2962 = vpop.f32.mrf.mxu0
  %v2963 = vpop.f32.mrf.mxu0
  %v2964 = vadd.f32 0.0, %v2963
  %v2965 = vpop.f32.mrf.mxu0
  %2966 = vmatprep.mubr.bf16.mxu0 %v2419
  %2967 = vmatmul.mubr.bf16.gmra.mxu0 %v2411
  %v2968 = vpop.f32.mrf.mxu0
  %v2969 = vadd.f32 0.0, %v2968
  %v2970 = vpop.f32.mrf.mxu0
  %v2971 = vpop.f32.mrf.mxu0
  %v2972 = vadd.f32 0.0, %v2971
  %v2973 = vpop.f32.mrf.mxu0
  %2974 = vmatprep.mubr.bf16.mxu0 %v2423
  %2975 = vmatmul.mubr.bf16.gmra.mxu0 %v2415
  %v2976 = vpop.f32.mrf.mxu0
  %v2977 = vadd.f32 0.0, %v2976
  %v2978 = vpop.f32.mrf.mxu0
  %v2979 = vpop.f32.mrf.mxu0
  %v2980 = vadd.f32 0.0, %v2979
  %v2981 = vpop.f32.mrf.mxu0
  %2982 = vmatprep.mubr.bf16.mxu0 %v2620
  %2983 = vmatmul.mubr.bf16.gmra.mxu0 %v2612
  %v2984 = vpop.f32.mrf.mxu0
  %v2985 = vadd.f32 0.0, %v2984
  %v2986 = vpop.f32.mrf.mxu0
  %v2987 = vpop.f32.mrf.mxu0
  %v2988 = vadd.f32 0.0, %v2987
  %v2989 = vpop.f32.mrf.mxu0
  %2990 = vmatprep.mubr.bf16.mxu0 %v2624
  %2991 = vmatmul.mubr.bf16.gmra.mxu0 %v2616
  %v2992 = vpop.f32.mrf.mxu0
  %v2993 = vadd.f32 0.0, %v2992
  %v2994 = vpop.f32.mrf.mxu0
  %v2995 = vpop.f32.mrf.mxu0
  %v2996 = vadd.f32 0.0, %v2995
  %v2997 = vpop.f32.mrf.mxu0
  %2998 = vmatprep.mubr.bf16.mxu0 %v2628
  %2999 = vmatmul.mubr.bf16.gmra.mxu0 %v2620
  %v3000 = vpop.f32.mrf.mxu0
  %v3001 = vadd.f32 0.0, %v3000
  %v3002 = vpop.f32.mrf.mxu0
  %v3003 = vpop.f32.mrf.mxu0
  %v3004 = vadd.f32 0.0, %v3003
  %v3005 = vpop.f32.mrf.mxu0
  %3006 = vmatprep.mubr.bf16.mxu0 %v2632
  %3007 = vmatmul.mubr.bf16.gmra.mxu0 %v2624
  %v3008 = vpop.f32.mrf.mxu0
  %v3009 = vadd.f32 0.0, %v3008
  %v3010 = vpop.f32.mrf.mxu0
  %v3011 = vpop.f32.mrf.mxu0
  %v3012 = vadd.f32 0.0, %v3011
  %v3013 = vpop.f32.mrf.mxu0
  %3014 = vmatprep.mubr.bf16.mxu0 %v2636
  %3015 = vmatmul.mubr.bf16.gmra.mxu0 %v2628
  %v3016 = vpop.f32.mrf.mxu0
  %v3017 = vadd.f32 0.0, %v3016
  %v3018 = vpop.f32.mrf.mxu0
  %v3019 = vpop.f32.mrf.mxu0
  %v3020 = vadd.f32 0.0, %v3019
  %v3021 = vpop.f32.mrf.mxu0
  %3022 = vmatprep.mubr.bf16.mxu0 %v2640
  %3023 = vmatmul.mubr.bf16.gmra.mxu0 %v2632
  %v3024 = vpop.f32.mrf.mxu0
  %v3025 = vadd.f32 0.0, %v3024
  %v3026 = vpop.f32.mrf.mxu0
  %v3027 = vpop.f32.mrf.mxu0
  %v3028 = vadd.f32 0.0, %v3027
  %v3029 = vpop.f32.mrf.mxu0
  %3030 = vmatprep.mubr.bf16.mxu0 %v2644
  %3031 = vmatmul.mubr.bf16.gmra.mxu0 %v2636
  %v3032 = vpop.f32.mrf.mxu0
  %v3033 = vadd.f32 0.0, %v3032
  %v3034 = vpop.f32.mrf.mxu0
  %v3035 = vpop.f32.mrf.mxu0
  %v3036 = vadd.f32 0.0, %v3035
  %v3037 = vpop.f32.mrf.mxu0
  %3038 = vmatprep.mubr.bf16.mxu0 %v2648
  %3039 = vmatmul.mubr.bf16.gmra.mxu0 %v2640
  %v3040 = vpop.f32.mrf.mxu0
  %v3041 = vadd.f32 0.0, %v3040
  %v3042 = vpop.f32.mrf.mxu0
  %v3043 = vpop.f32.mrf.mxu0
  %v3044 = vadd.f32 0.0, %v3043
  %v3045 = vpop.f32.mrf.mxu0
  %3046 = vmatprep.mubr.bf16.mxu0 %v2652
  %3047 = vmatmul.mubr.bf16.gmra.mxu0 %v2644
  %v3048 = vpop.f32.mrf.mxu0
  %v3049 = vadd.f32 0.0, %v3048
  %v3050 = vpop.f32.mrf.mxu0
  %v3051 = vpop.f32.mrf.mxu0
  %v3052 = vadd.f32 0.0, %v3051
  %v3053 = vpop.f32.mrf.mxu0
  %3054 = vmatprep.mubr.bf16.mxu0 %v2656
  %3055 = vmatmul.mubr.bf16.gmra.mxu0 %v2648
  %v3056 = vpop.f32.mrf.mxu0
  %v3057 = vadd.f32 0.0, %v3056
  %v3058 = vpop.f32.mrf.mxu0
  %v3059 = vpop.f32.mrf.mxu0
  %v3060 = vadd.f32 0.0, %v3059
  %v3061 = vpop.f32.mrf.mxu0
  %3062 = vdwg.mxu0
  %3063 = vmatprep.subr.bf16.mxu0 0
  %3064 = vmatpush1.bf16.msra.mxu0 0
  %3065 = vmatprep.subr.bf16.mxu0 0
  %3066 = vmatpush1.bf16.msra.mxu0 0
  %3067 = vmatprep.subr.bf16.mxu0 0
  %3068 = vmatpush1.bf16.msra.mxu0 0
  %3069 = vmatprep.subr.bf16.mxu0 0
  %3070 = vmatpush1.bf16.msra.mxu0 0
  %3071 = vmatprep.subr.bf16.mxu0 0
  %3072 = vmatpush1.bf16.msra.mxu0 %v2797
  %3073 = vmatprep.subr.bf16.mxu0 0
  %3074 = vmatpush1.bf16.msra.mxu0 %v2796
  %3075 = vmatprep.subr.bf16.mxu0 0
  %3076 = vmatpush1.bf16.msra.mxu0 %v2795
  %3077 = vmatprep.subr.bf16.mxu0 0
  %3078 = vmatpush1.bf16.msra.mxu0 %v2794
  %3079 = vmatprep.subr.bf16.mxu0 0
  %3080 = vmatpush2.bf16.msra.mxu0 0
  %3081 = vmatprep.subr.bf16.mxu0 0
  %3082 = vmatpush2.bf16.msra.mxu0 0
  %3083 = vmatprep.subr.bf16.mxu0 0
  %3084 = vmatpush2.bf16.msra.mxu0 0
  %3085 = vmatprep.subr.bf16.mxu0 0
  %3086 = vmatpush2.bf16.msra.mxu0 0
  %3087 = vmatprep.subr.bf16.mxu0 0
  %3088 = vmatpush2.bf16.msra.mxu0 0
  %3089 = vmatprep.subr.bf16.mxu0 0
  %3090 = vmatpush2.bf16.msra.mxu0 0
  %3091 = vmatprep.subr.bf16.mxu0 0
  %3092 = vmatpush2.bf16.msra.mxu0 0
  %3093 = vmatprep.subr.bf16.mxu0 0
  %3094 = vmatpush2.bf16.msra.mxu0 0
  %3095 = vmatprep.mubr.bf16.mxu0 0
  %3096 = vmatmul.mubr.bf16.gmra.mxu0 %v2818
  %v3097 = vpop.f32.mrf.mxu0
  %v3098 = vadd.f32 %v2905, %v3097
  %v3099 = vpop.f32.mrf.mxu0
  %v3100 = vpop.f32.mrf.mxu0
  %v3101 = vadd.f32 %v2908, %v3100
  %v3102 = vpop.f32.mrf.mxu0
  %3103 = vmatprep.mubr.bf16.mxu0 0
  %3104 = vmatmul.mubr.bf16.gmra.mxu0 %v2820
  %v3105 = vpop.f32.mrf.mxu0
  %v3106 = vadd.f32 %v2913, %v3105
  %v3107 = vpop.f32.mrf.mxu0
  %v3108 = vpop.f32.mrf.mxu0
  %v3109 = vadd.f32 %v2916, %v3108
  %v3110 = vpop.f32.mrf.mxu0
  %3111 = vmatprep.mubr.bf16.mxu0 0
  %3112 = vmatmul.mubr.bf16.gmra.mxu0 %v2822
  %v3113 = vpop.f32.mrf.mxu0
  %v3114 = vadd.f32 %v2921, %v3113
  %v3115 = vpop.f32.mrf.mxu0
  %v3116 = vpop.f32.mrf.mxu0
  %v3117 = vadd.f32 %v2924, %v3116
  %v3118 = vpop.f32.mrf.mxu0
  %3119 = vmatprep.mubr.bf16.mxu0 0
  %3120 = vmatmul.mubr.bf16.gmra.mxu0 %v2824
  %v3121 = vpop.f32.mrf.mxu0
  %v3122 = vadd.f32 %v2929, %v3121
  %v3123 = vpop.f32.mrf.mxu0
  %v3124 = vpop.f32.mrf.mxu0
  %v3125 = vadd.f32 %v2932, %v3124
  %v3126 = vpop.f32.mrf.mxu0
  %3127 = vmatprep.mubr.bf16.mxu0 0
  %3128 = vmatmul.mubr.bf16.gmra.mxu0 %v2826
  %v3129 = vpop.f32.mrf.mxu0
  %v3130 = vadd.f32 %v2937, %v3129
  %v3131 = vpop.f32.mrf.mxu0
  %v3132 = vpop.f32.mrf.mxu0
  %v3133 = vadd.f32 %v2940, %v3132
  %v3134 = vpop.f32.mrf.mxu0
  %3135 = vmatprep.mubr.bf16.mxu0 0
  %3136 = vmatmul.mubr.bf16.gmra.mxu0 %v2828
  %v3137 = vpop.f32.mrf.mxu0
  %v3138 = vadd.f32 %v2945, %v3137
  %v3139 = vpop.f32.mrf.mxu0
  %v3140 = vpop.f32.mrf.mxu0
  %v3141 = vadd.f32 %v2948, %v3140
  %v3142 = vpop.f32.mrf.mxu0
  %3143 = vmatprep.mubr.bf16.mxu0 0
  %3144 = vmatmul.mubr.bf16.gmra.mxu0 %v2830
  %v3145 = vpop.f32.mrf.mxu0
  %v3146 = vadd.f32 %v2953, %v3145
  %v3147 = vpop.f32.mrf.mxu0
  %v3148 = vpop.f32.mrf.mxu0
  %v3149 = vadd.f32 %v2956, %v3148
  %v3150 = vpop.f32.mrf.mxu0
  %3151 = vmatprep.mubr.bf16.mxu0 0
  %3152 = vmatmul.mubr.bf16.gmra.mxu0 %v2832
  %v3153 = vpop.f32.mrf.mxu0
  %v3154 = vadd.f32 %v2961, %v3153
  %v3155 = vpop.f32.mrf.mxu0
  %v3156 = vpop.f32.mrf.mxu0
  %v3157 = vadd.f32 %v2964, %v3156
  %v3158 = vpop.f32.mrf.mxu0
  %3159 = vmatprep.mubr.bf16.mxu0 0
  %3160 = vmatmul.mubr.bf16.gmra.mxu0 %v2835
  %v3161 = vpop.f32.mrf.mxu0
  %v3162 = vadd.f32 %v2969, %v3161
  %v3163 = vpop.f32.mrf.mxu0
  %v3164 = vpop.f32.mrf.mxu0
  %v3165 = vadd.f32 %v2972, %v3164
  %v3166 = vpop.f32.mrf.mxu0
  %3167 = vmatprep.mubr.bf16.mxu0 0
  %3168 = vmatmul.mubr.bf16.gmra.mxu0 %v2838
  %v3169 = vpop.f32.mrf.mxu0
  %v3170 = vadd.f32 %v2977, %v3169
  %v3171 = vpop.f32.mrf.mxu0
  %v3172 = vpop.f32.mrf.mxu0
  %v3173 = vadd.f32 %v2980, %v3172
  %v3174 = vpop.f32.mrf.mxu0
  %3175 = vmatprep.mubr.bf16.mxu0 0
  %3176 = vmatmul.mubr.bf16.gmra.mxu0 %v2841
  %v3177 = vpop.f32.mrf.mxu0
  %v3178 = vadd.f32 %v2985, %v3177
  %v3179 = vpop.f32.mrf.mxu0
  %v3180 = vpop.f32.mrf.mxu0
  %v3181 = vadd.f32 %v2988, %v3180
  %v3182 = vpop.f32.mrf.mxu0
  %3183 = vmatprep.mubr.bf16.mxu0 0
  %3184 = vmatmul.mubr.bf16.gmra.mxu0 %v2844
  %v3185 = vpop.f32.mrf.mxu0
  %v3186 = vadd.f32 %v2993, %v3185
  %v3187 = vpop.f32.mrf.mxu0
  %v3188 = vpop.f32.mrf.mxu0
  %v3189 = vadd.f32 %v2996, %v3188
  %v3190 = vpop.f32.mrf.mxu0
  %3191 = vmatprep.mubr.bf16.mxu0 0
  %3192 = vmatmul.mubr.bf16.gmra.mxu0 %v2847
  %v3193 = vpop.f32.mrf.mxu0
  %v3194 = vadd.f32 %v3001, %v3193
  %v3195 = vpop.f32.mrf.mxu0
  %v3196 = vpop.f32.mrf.mxu0
  %v3197 = vadd.f32 %v3004, %v3196
  %v3198 = vpop.f32.mrf.mxu0
  %3199 = vmatprep.mubr.bf16.mxu0 0
  %3200 = vmatmul.mubr.bf16.gmra.mxu0 %v2850
  %v3201 = vpop.f32.mrf.mxu0
  %v3202 = vadd.f32 %v3009, %v3201
  %v3203 = vpop.f32.mrf.mxu0
  %v3204 = vpop.f32.mrf.mxu0
  %v3205 = vadd.f32 %v3012, %v3204
  %v3206 = vpop.f32.mrf.mxu0
  %3207 = vmatprep.mubr.bf16.mxu0 0
  %3208 = vmatmul.mubr.bf16.gmra.mxu0 %v2853
  %v3209 = vpop.f32.mrf.mxu0
  %v3210 = vadd.f32 %v3017, %v3209
  %v3211 = vpop.f32.mrf.mxu0
  %v3212 = vpop.f32.mrf.mxu0
  %v3213 = vadd.f32 %v3020, %v3212
  %v3214 = vpop.f32.mrf.mxu0
  %3215 = vmatprep.mubr.bf16.mxu0 0
  %3216 = vmatmul.mubr.bf16.gmra.mxu0 %v2856
  %v3217 = vpop.f32.mrf.mxu0
  %v3218 = vadd.f32 %v3025, %v3217
  %v3219 = vpop.f32.mrf.mxu0
  %v3220 = vpop.f32.mrf.mxu0
  %v3221 = vadd.f32 %v3028, %v3220
  %v3222 = vpop.f32.mrf.mxu0
  %3223 = vmatprep.mubr.bf16.mxu0 0
  %3224 = vmatmul.mubr.bf16.gmra.mxu0 %v2859
  %v3225 = vpop.f32.mrf.mxu0
  %v3226 = vadd.f32 %v3033, %v3225
  %v3227 = vpop.f32.mrf.mxu0
  %v3228 = vpop.f32.mrf.mxu0
  %v3229 = vadd.f32 %v3036, %v3228
  %v3230 = vpop.f32.mrf.mxu0
  %3231 = vmatprep.mubr.bf16.mxu0 0
  %3232 = vmatmul.mubr.bf16.gmra.mxu0 %v2862
  %v3233 = vpop.f32.mrf.mxu0
  %v3234 = vadd.f32 %v3041, %v3233
  %v3235 = vpop.f32.mrf.mxu0
  %v3236 = vpop.f32.mrf.mxu0
  %v3237 = vadd.f32 %v3044, %v3236
  %v3238 = vpop.f32.mrf.mxu0
  %3239 = vmatprep.mubr.bf16.mxu0 0
  %3240 = vmatmul.mubr.bf16.gmra.mxu0 %v2865
  %v3241 = vpop.f32.mrf.mxu0
  %v3242 = vadd.f32 %v3049, %v3241
  %v3243 = vpop.f32.mrf.mxu0
  %v3244 = vpop.f32.mrf.mxu0
  %v3245 = vadd.f32 %v3052, %v3244
  %v3246 = vpop.f32.mrf.mxu0
  %3247 = vmatprep.mubr.bf16.mxu0 0
  %3248 = vmatmul.mubr.bf16.gmra.mxu0 %v2868
  %v3249 = vpop.f32.mrf.mxu0
  %v3250 = vadd.f32 %v3057, %v3249
  %v3251 = vpop.f32.mrf.mxu0
  %v3252 = vpop.f32.mrf.mxu0
  %v3253 = vadd.f32 %v3060, %v3252
  %v3254 = vpop.f32.mrf.mxu0
  %3255 = vdwg.mxu0
  %v3256 = vadd.f32 %v3098, %v3101
  %v3257 = vadd.f32 %v3256, %v3106
  %v3258 = vadd.f32 %v3257, %v3109
  %v3259 = vadd.f32 %v3258, %v3114
  %v3260 = vadd.f32 %v3259, %v3117
  %v3261 = vadd.f32 %v3260, %v3122
  %v3262 = vadd.f32 %v3261, %v3125
  %v3263 = vadd.f32 %v3262, %v3130
  %v3264 = vadd.f32 %v3263, %v3133
  %v3265 = vadd.f32 %v3264, %v3138
  %v3266 = vadd.f32 %v3265, %v3141
  %v3267 = vadd.f32 %v3266, %v3146
  %v3268 = vadd.f32 %v3267, %v3149
  %v3269 = vadd.f32 %v3268, %v3154
  %v3270 = vadd.f32 %v3269, %v3157
  %v3271 = vadd.f32 %v3270, %v3162
  %v3272 = vadd.f32 %v3271, %v3165
  %v3273 = vadd.f32 %v3272, %v3170
  %v3274 = vadd.f32 %v3273, %v3173
  %v3275 = vadd.f32 %v3274, %v3178
  %v3276 = vadd.f32 %v3275, %v3181
  %v3277 = vadd.f32 %v3276, %v3186
  %v3278 = vadd.f32 %v3277, %v3189
  %v3279 = vadd.f32 %v3278, %v3194
  %v3280 = vadd.f32 %v3279, %v3197
  %v3281 = vadd.f32 %v3280, %v3202
  %v3282 = vadd.f32 %v3281, %v3205
  %v3283 = vadd.f32 %v3282, %v3210
  %v3284 = vadd.f32 %v3283, %v3213
  %v3285 = vadd.f32 %v3284, %v3218
  %v3286 = vadd.f32 %v3285, %v3221
  %v3287 = vadd.f32 %v3286, %v3226
  %v3288 = vadd.f32 %v3287, %v3229
  %v3289 = vadd.f32 %v3288, %v3234
  %v3290 = vadd.f32 %v3289, %v3237
  %v3291 = vadd.f32 %v3290, %v3242
  %v3292 = vadd.f32 %v3291, %v3245
  %v3293 = vadd.f32 %v3292, %v3250
  %v3294 = vadd.f32 %v3293, %v3253
  %v3295 = vrot.slane %v3294, 4
  %v3296 = vadd.f32 %v3294, %v3295
  %v3297 = vrot.slane %v3296, 2
  %v3298 = vadd.f32 %v3296, %v3297
  %v3299 = vrot.slane %v3298, 1
  %v3300 = vadd.f32 %v3298, %v3299
  %v3301 = vmul.f32 %v3300, 0.0033333334
  %v3302 = vmul.f32 %v3098, %v3098
  %v3303 = vmul.f32 %v3101, %v3101
  %v3304 = vmul.f32 %v3106, %v3106
  %v3305 = vmul.f32 %v3109, %v3109
  %v3306 = vmul.f32 %v3114, %v3114
  %v3307 = vmul.f32 %v3117, %v3117
  %v3308 = vmul.f32 %v3122, %v3122
  %v3309 = vmul.f32 %v3125, %v3125
  %v3310 = vmul.f32 %v3130, %v3130
  %v3311 = vmul.f32 %v3133, %v3133
  %v3312 = vmul.f32 %v3138, %v3138
  %v3313 = vmul.f32 %v3141, %v3141
  %v3314 = vmul.f32 %v3146, %v3146
  %v3315 = vmul.f32 %v3149, %v3149
  %v3316 = vmul.f32 %v3154, %v3154
  %v3317 = vmul.f32 %v3157, %v3157
  %v3318 = vmul.f32 %v3162, %v3162
  %v3319 = vmul.f32 %v3165, %v3165
  %v3320 = vmul.f32 %v3170, %v3170
  %v3321 = vmul.f32 %v3173, %v3173
  %v3322 = vmul.f32 %v3178, %v3178
  %v3323 = vmul.f32 %v3181, %v3181
  %v3324 = vmul.f32 %v3186, %v3186
  %v3325 = vmul.f32 %v3189, %v3189
  %v3326 = vmul.f32 %v3194, %v3194
  %v3327 = vmul.f32 %v3197, %v3197
  %v3328 = vmul.f32 %v3202, %v3202
  %v3329 = vmul.f32 %v3205, %v3205
  %v3330 = vmul.f32 %v3210, %v3210
  %v3331 = vmul.f32 %v3213, %v3213
  %v3332 = vmul.f32 %v3218, %v3218
  %v3333 = vmul.f32 %v3221, %v3221
  %v3334 = vmul.f32 %v3226, %v3226
  %v3335 = vmul.f32 %v3229, %v3229
  %v3336 = vmul.f32 %v3234, %v3234
  %v3337 = vmul.f32 %v3237, %v3237
  %v3338 = vmul.f32 %v3242, %v3242
  %v3339 = vmul.f32 %v3245, %v3245
  %v3340 = vmul.f32 %v3250, %v3250
  %v3341 = vmul.f32 %v3253, %v3253
  %v3342 = vadd.f32 %v3302, %v3303
  %v3343 = vadd.f32 %v3342, %v3304
  %v3344 = vadd.f32 %v3343, %v3305
  %v3345 = vadd.f32 %v3344, %v3306
  %v3346 = vadd.f32 %v3345, %v3307
  %v3347 = vadd.f32 %v3346, %v3308
  %v3348 = vadd.f32 %v3347, %v3309
  %v3349 = vadd.f32 %v3348, %v3310
  %v3350 = vadd.f32 %v3349, %v3311
  %v3351 = vadd.f32 %v3350, %v3312
  %v3352 = vadd.f32 %v3351, %v3313
  %v3353 = vadd.f32 %v3352, %v3314
  %v3354 = vadd.f32 %v3353, %v3315
  %v3355 = vadd.f32 %v3354, %v3316
  %v3356 = vadd.f32 %v3355, %v3317
  %v3357 = vadd.f32 %v3356, %v3318
  %v3358 = vadd.f32 %v3357, %v3319
  %v3359 = vadd.f32 %v3358, %v3320
  %v3360 = vadd.f32 %v3359, %v3321
  %v3361 = vadd.f32 %v3360, %v3322
  %v3362 = vadd.f32 %v3361, %v3323
  %v3363 = vadd.f32 %v3362, %v3324
  %v3364 = vadd.f32 %v3363, %v3325
  %v3365 = vadd.f32 %v3364, %v3326
  %v3366 = vadd.f32 %v3365, %v3327
  %v3367 = vadd.f32 %v3366, %v3328
  %v3368 = vadd.f32 %v3367, %v3329
  %v3369 = vadd.f32 %v3368, %v3330
  %v3370 = vadd.f32 %v3369, %v3331
  %v3371 = vadd.f32 %v3370, %v3332
  %v3372 = vadd.f32 %v3371, %v3333
  %v3373 = vadd.f32 %v3372, %v3334
  %v3374 = vadd.f32 %v3373, %v3335
  %v3375 = vadd.f32 %v3374, %v3336
  %v3376 = vadd.f32 %v3375, %v3337
  %v3377 = vadd.f32 %v3376, %v3338
  %v3378 = vadd.f32 %v3377, %v3339
  %v3379 = vadd.f32 %v3378, %v3340
  %v3380 = vadd.f32 %v3379, %v3341
  %v3381 = vrot.slane %v3380, 4
  %v3382 = vadd.f32 %v3380, %v3381
  %v3383 = vrot.slane %v3382, 2
  %v3384 = vadd.f32 %v3382, %v3383
  %v3385 = vrot.slane %v3384, 1
  %v3386 = vadd.f32 %v3384, %v3385
  %v3387 = vmul.f32 %v3386, 0.0033333334
  %v3388 = vmul.f32 %v3301, %v3301
  %v3389 = vsub.f32 %v3387, %v3388
  %v3390 = vmax.f32 %v3389, 0.0
  %v3391 = vadd.f32 %v3390, 1e-05
  %v3392 = vrsqrt.pop %v3391
  %v3393 = vld [vmem:[%s5] sm:$0x1]
  %v3394 = vmul.f32 %v3392, %v3393
  %v3395 = vld [vmem:[%s6] sm:$0x1]
  %v3396 = vmul.f32 %v3301, %v3394
  %v3397 = vsub.f32 %v3395, %v3396
  %v3398 = vlaneseq
  %v3399 = vshrl.u32 %v3398, 7
  %v3400 = vsub.s32 0, %v3399
  %v3401 = vrot.slane %v3394, %v3400
  %v3402 = vmul.f32 %v3098, %v3401
  %v3403 = vmul.f32 %v3101, %v3401
  %v3404 = vmul.f32 %v3106, %v3401
  %v3405 = vmul.f32 %v3109, %v3401
  %v3406 = vmul.f32 %v3114, %v3401
  %v3407 = vmul.f32 %v3117, %v3401
  %v3408 = vmul.f32 %v3122, %v3401
  %v3409 = vmul.f32 %v3125, %v3401
  %v3410 = vmul.f32 %v3130, %v3401
  %v3411 = vmul.f32 %v3133, %v3401
  %v3412 = vmul.f32 %v3138, %v3401
  %v3413 = vmul.f32 %v3141, %v3401
  %v3414 = vmul.f32 %v3146, %v3401
  %v3415 = vmul.f32 %v3149, %v3401
  %v3416 = vmul.f32 %v3154, %v3401
  %v3417 = vmul.f32 %v3157, %v3401
  %v3418 = vmul.f32 %v3162, %v3401
  %v3419 = vmul.f32 %v3165, %v3401
  %v3420 = vmul.f32 %v3170, %v3401
  %v3421 = vmul.f32 %v3173, %v3401
  %v3422 = vmul.f32 %v3178, %v3401
  %v3423 = vmul.f32 %v3181, %v3401
  %v3424 = vmul.f32 %v3186, %v3401
  %v3425 = vmul.f32 %v3189, %v3401
  %v3426 = vmul.f32 %v3194, %v3401
  %v3427 = vmul.f32 %v3197, %v3401
  %v3428 = vmul.f32 %v3202, %v3401
  %v3429 = vmul.f32 %v3205, %v3401
  %v3430 = vmul.f32 %v3210, %v3401
  %v3431 = vmul.f32 %v3213, %v3401
  %v3432 = vmul.f32 %v3218, %v3401
  %v3433 = vmul.f32 %v3221, %v3401
  %v3434 = vmul.f32 %v3226, %v3401
  %v3435 = vmul.f32 %v3229, %v3401
  %v3436 = vmul.f32 %v3234, %v3401
  %v3437 = vmul.f32 %v3237, %v3401
  %v3438 = vmul.f32 %v3242, %v3401
  %v3439 = vmul.f32 %v3245, %v3401
  %v3440 = vmul.f32 %v3250, %v3401
  %v3441 = vmul.f32 %v3253, %v3401
  %v3443 = vlaneseq
  %v3444 = vshrl.u32 %v3443, 7
  %v3445 = vsub.s32 0, %v3444
  %v3446 = vrot.slane %v3397, %v3445
  %v3448 = vadd.f32 %v3402, %v3446
  %v3449 = vadd.f32 %v3403, %v3446
  %v3450 = vadd.f32 %v3404, %v3446
  %v3451 = vadd.f32 %v3405, %v3446
  %v3452 = vadd.f32 %v3406, %v3446
  %v3453 = vadd.f32 %v3407, %v3446
  %v3454 = vadd.f32 %v3408, %v3446
  %v3455 = vadd.f32 %v3409, %v3446
  %v3456 = vadd.f32 %v3410, %v3446
  %v3457 = vadd.f32 %v3411, %v3446
  %v3458 = vadd.f32 %v3412, %v3446
  %v3459 = vadd.f32 %v3413, %v3446
  %v3460 = vadd.f32 %v3414, %v3446
  %v3461 = vadd.f32 %v3415, %v3446
  %v3462 = vadd.f32 %v3416, %v3446
  %v3463 = vadd.f32 %v3417, %v3446
  %v3464 = vadd.f32 %v3418, %v3446
  %v3465 = vadd.f32 %v3419, %v3446
  %v3466 = vadd.f32 %v3420, %v3446
  %v3467 = vadd.f32 %v3421, %v3446
  %v3468 = vadd.f32 %v3422, %v3446
  %v3469 = vadd.f32 %v3423, %v3446
  %v3470 = vadd.f32 %v3424, %v3446
  %v3471 = vadd.f32 %v3425, %v3446
  %v3472 = vadd.f32 %v3426, %v3446
  %v3473 = vadd.f32 %v3427, %v3446
  %v3474 = vadd.f32 %v3428, %v3446
  %v3475 = vadd.f32 %v3429, %v3446
  %v3476 = vadd.f32 %v3430, %v3446
  %v3477 = vadd.f32 %v3431, %v3446
  %v3478 = vadd.f32 %v3432, %v3446
  %v3479 = vadd.f32 %v3433, %v3446
  %v3480 = vadd.f32 %v3434, %v3446
  %v3481 = vadd.f32 %v3435, %v3446
  %v3482 = vadd.f32 %v3436, %v3446
  %v3483 = vadd.f32 %v3437, %v3446
  %v3484 = vadd.f32 %v3438, %v3446
  %v3485 = vadd.f32 %v3439, %v3446
  %v3486 = vadd.f32 %v3440, %v3446
  %v3487 = vadd.f32 %v3441, %v3446
  %v3488 = vmax.f32 %v3448, 0.0
  %v3489 = vmax.f32 %v3449, 0.0
  %v3490 = vmax.f32 %v3450, 0.0
  %v3491 = vmax.f32 %v3451, 0.0
  %v3492 = vmax.f32 %v3452, 0.0
  %v3493 = vmax.f32 %v3453, 0.0
  %v3494 = vmax.f32 %v3454, 0.0
  %v3495 = vmax.f32 %v3455, 0.0
  %v3496 = vmax.f32 %v3456, 0.0
  %v3497 = vmax.f32 %v3457, 0.0
  %v3498 = vmax.f32 %v3458, 0.0
  %v3499 = vmax.f32 %v3459, 0.0
  %v3500 = vmax.f32 %v3460, 0.0
  %v3501 = vmax.f32 %v3461, 0.0
  %v3502 = vmax.f32 %v3462, 0.0
  %v3503 = vmax.f32 %v3463, 0.0
  %v3504 = vmax.f32 %v3464, 0.0
  %v3505 = vmax.f32 %v3465, 0.0
  %v3506 = vmax.f32 %v3466, 0.0
  %v3507 = vmax.f32 %v3467, 0.0
  %v3508 = vmax.f32 %v3468, 0.0
  %v3509 = vmax.f32 %v3469, 0.0
  %v3510 = vmax.f32 %v3470, 0.0
  %v3511 = vmax.f32 %v3471, 0.0
  %v3512 = vmax.f32 %v3472, 0.0
  %v3513 = vmax.f32 %v3473, 0.0
  %v3514 = vmax.f32 %v3474, 0.0
  %v3515 = vmax.f32 %v3475, 0.0
  %v3516 = vmax.f32 %v3476, 0.0
  %v3517 = vmax.f32 %v3477, 0.0
  %v3518 = vmax.f32 %v3478, 0.0
  %v3519 = vmax.f32 %v3479, 0.0
  %v3520 = vmax.f32 %v3480, 0.0
  %v3521 = vmax.f32 %v3481, 0.0
  %v3522 = vmax.f32 %v3482, 0.0
  %v3523 = vmax.f32 %v3483, 0.0
  %v3524 = vmax.f32 %v3484, 0.0
  %v3525 = vmax.f32 %v3485, 0.0
  %v3526 = vmax.f32 %v3486, 0.0
  %v3527 = vmax.f32 %v3487, 0.0
  %v3528 = vmax.f32 %v3488, %v3490
  %v3529 = vmax.f32 %v3489, %v3491
  %v3530 = vmax.f32 %v3492, %v3494
  %v3531 = vmax.f32 %v3493, %v3495
  %v3532 = vmax.f32 %v3496, %v3498
  %v3533 = vmax.f32 %v3497, %v3499
  %v3534 = vmax.f32 %v3500, %v3502
  %v3535 = vmax.f32 %v3501, %v3503
  %v3536 = vmax.f32 %v3504, %v3506
  %v3537 = vmax.f32 %v3505, %v3507
  %v3538 = vmax.f32 %v3508, %v3510
  %v3539 = vmax.f32 %v3509, %v3511
  %v3540 = vmax.f32 %v3512, %v3514
  %v3541 = vmax.f32 %v3513, %v3515
  %v3542 = vmax.f32 %v3516, %v3518
  %v3543 = vmax.f32 %v3517, %v3519
  %v3544 = vmax.f32 %v3520, %v3522
  %v3545 = vmax.f32 %v3521, %v3523
  %v3546 = vmax.f32 %v3524, %v3526
  %v3547 = vmax.f32 %v3525, %v3527
  %3548 = vst [vmem:[%s7] sm:$0xff] %v3528
  %3549 = vst [vmem:[%s7 + $0x8] sm:$0xff] %v3529
  %3550 = vst [vmem:[%s7 + $0x10] sm:$0xff] %v3530
  %3551 = vst [vmem:[%s7 + $0x18] sm:$0xff] %v3531
  %3552 = vst [vmem:[%s7 + $0x20] sm:$0xff] %v3532
  %3553 = vst [vmem:[%s7 + $0x28] sm:$0xff] %v3533
  %3554 = vst [vmem:[%s7 + $0x30] sm:$0xff] %v3534
  %3555 = vst [vmem:[%s7 + $0x38] sm:$0xff] %v3535
  %3556 = vst [vmem:[%s7 + $0x40] sm:$0xff] %v3536
  %3557 = vst [vmem:[%s7 + $0x48] sm:$0xff] %v3537
  %3558 = vst [vmem:[%s7 + $0x50] sm:$0xff] %v3538
  %3559 = vst [vmem:[%s7 + $0x58] sm:$0xff] %v3539
  %3560 = vst [vmem:[%s7 + $0x60] sm:$0xff] %v3540
  %3561 = vst [vmem:[%s7 + $0x68] sm:$0xff] %v3541
  %3562 = vst [vmem:[%s7 + $0x70] sm:$0xff] %v3542
  %3563 = vst [vmem:[%s7 + $0x78] sm:$0xff] %v3543
  %3564 = vst [vmem:[%s7 + $0x80] sm:$0xff] %v3544
  %3565 = vst [vmem:[%s7 + $0x88] sm:$0xff] %v3545
  %3566 = vst [vmem:[%s7 + $0x90] sm:$0xff] %v3546
  %3567 = vst [vmem:[%s7 + $0x98] sm:$0xff] %v3547
  // Predicated region
  $region30: #{model_forward.1} parent=0 // pred_check
    _
  $region31: #{model_forward.1} parent=0 // pred_check_branch
    %3569 = sbr.rel (0) target = $region33
  $region32: #{model_forward.1} parent=0 // pred_region
    _
  $region33: #{model_forward.1} parent=0 // pred_fallthru
    _
  // Predicated region
  $region34: #{model_forward.1} parent=0 // pred_check
    _
  $region35: #{model_forward.1} parent=0 // pred_check_branch
    %3571 = sbr.rel (0) target = $region37
  $region36: #{model_forward.1} parent=0 // pred_region
    _
  $region37: #{model_forward.1} parent=0 // pred_fallthru
    _

</llo_original>
